<compile_context>
chip_gen: v5e
topology: v5e:2x2
jax: 0.10.0
libtpu: 0.0.40
codegen_flags: <defaults>
</compile_context>

<pallas_src>
import functools

import jax
import jax.numpy as jnp
from jax.experimental import pallas as pl
from jax.experimental.pallas import tpu as pltpu


HIDDEN = 750  # fixed by the PyTorch module


def _round_up(x, m):
    return (x + m - 1) // m * m


def _vae_kernel(max_action, latent_dim,
                state_ref, action_ref, eps2_ref,
                w1s_ref, w1a_ref, b1_ref,
                w2_ref, b2_ref,
                wms_ref, bms_ref,
                wd1s_ref, wd1z2_ref, bd1_ref,
                wd2_ref, bd2_ref,
                wd3_ref, bd3_ref,
                u_ref, ms_ref):
    f32 = jnp.float32
    bf16 = jnp.bfloat16

    s_b = state_ref[...].astype(bf16)
    a_b = action_ref[...].astype(bf16)
    eps2 = eps2_ref[...]  # [ones | eps], f32, width 2*latent

    # ---- encoder ----
    # e1: Linear(state_dim + action_dim, 750) on cat([state, action], 1)
    # concat expressed as split matmul: [s a] @ [[W1s],[W1a]] = s@W1s + a@W1a
    h = (jnp.dot(s_b, w1s_ref[...], preferred_element_type=f32)
         + jnp.dot(a_b, w1a_ref[...], preferred_element_type=f32)
         + b1_ref[...])
    h = jnp.maximum(h, 0.0)

    # e2: Linear(750, 750) + relu
    h = jnp.dot(h.astype(bf16), w2_ref[...], preferred_element_type=f32) + b2_ref[...]
    h = jnp.maximum(h, 0.0)

    # fused mean/log_std head: heads = [mean | log_std]  (width 2*latent)
    heads = (jnp.dot(h.astype(bf16), wms_ref[...], preferred_element_type=f32)
             + bms_ref[...])
    col = jax.lax.broadcasted_iota(jnp.int32, heads.shape, 1)
    std_all = jnp.exp(jnp.clip(heads, -4.0, 15.0))      # EUP; clip avoids overflow
    ms = jnp.where(col >= latent_dim, std_all, heads)   # packed [mean | std]

    # ---- reparameterize + decoder ----
    # z = mean + std*eps folded into d1:  z @ Wz == (ms * [1|eps]) @ [[Wz],[Wz]]
    t = (ms * eps2).astype(bf16)

    a = (jnp.dot(s_b, wd1s_ref[...], preferred_element_type=f32)
         + jnp.dot(t, wd1z2_ref[...], preferred_element_type=f32)
         + bd1_ref[...])
    a = jnp.maximum(a, 0.0)

    a = jnp.dot(a.astype(bf16), wd2_ref[...], preferred_element_type=f32) + bd2_ref[...]
    a = jnp.maximum(a, 0.0)

    u = jnp.dot(a.astype(bf16), wd3_ref[...], preferred_element_type=f32) + bd3_ref[...]
    u = max_action * jnp.tanh(u)

    u_ref[...] = u.astype(u_ref.dtype)
    ms_ref[...] = ms.astype(ms_ref.dtype)


@functools.partial(jax.jit, static_argnames=("max_action",))
def vae_forward(params, state, action, eps, *, max_action):
    """Full VAE forward pass in a single Pallas call.

    Returns (u, mean, std), matching VAE_.forward in PyTorch.
    """
    B, state_dim = state.shape
    action_dim = action.shape[1]
    latent_dim = eps.shape[1]

    # eps2 = [ones | eps] so the kernel never has to slice/concat narrow lanes.
    eps2 = jnp.concatenate([jnp.ones_like(eps), eps], axis=1)

    # Batch tiling: weights stay VMEM-resident across grid steps; samples stream.
    b_tile = 512 if B >= 512 else _round_up(max(B, 1), 8)
    b_pad = _round_up(B, b_tile)
    grid = (b_pad // b_tile,)

    def pad_b(x):
        return jnp.pad(x, ((0, b_pad - B), (0, 0))) if b_pad != B else x

    state_p = pad_b(state)
    action_p = pad_b(action)
    eps2_p = pad_b(eps2)

    def stream_spec(ncols):
        return pl.BlockSpec((b_tile, ncols), lambda i: (i, 0),
                            memory_space=pltpu.MemorySpace.VMEM)

    def resident_spec(shape):
        # constant index_map -> same block every grid step -> weight stays resident
        return pl.BlockSpec(tuple(shape), lambda i: (0, 0),
                            memory_space=pltpu.MemorySpace.VMEM)

    weights = (
        params["w1s"], params["w1a"], params["b1"],
        params["w2"], params["b2"],
        params["wms"], params["bms"],
        params["wd1s"], params["wd1z2"], params["bd1"],
        params["wd2"], params["bd2"],
        params["wd3"], params["bd3"],
    )

    in_specs = [stream_spec(state_dim), stream_spec(action_dim),
                stream_spec(2 * latent_dim)]
    in_specs += [resident_spec(w.shape) for w in weights]

    out_shapes = (
        jax.ShapeDtypeStruct((b_pad, action_dim), jnp.float32),      # u
        jax.ShapeDtypeStruct((b_pad, 2 * latent_dim), jnp.float32),  # [mean | std]
    )
    out_specs = (stream_spec(action_dim), stream_spec(2 * latent_dim))

    u_pad, ms_pad = pl.pallas_call(
        functools.partial(_vae_kernel, float(max_action), latent_dim),
        grid=grid,
        out_shape=out_shapes,
        in_specs=in_specs,
        out_specs=out_specs,
        compiler_params=pltpu.CompilerParams(
            dimension_semantics=("parallel",),
            vmem_limit_bytes=24 << 20,   # real footprint ~6-10 MiB; safe on v7x
        ),
    )(state_p, action_p, eps2_p, *weights)

    u = u_pad[:B]
    mean = ms_pad[:B, :latent_dim]
    std = ms_pad[:B, latent_dim:]
    return u, mean, std


def init_params(key, state_dim, action_dim, latent_dim):
    """PyTorch-nn.Linear-style init. Weights stored [in, out] in bf16; biases f32."""
    def linear(k, fan_in, fan_out):
        kw, kb = jax.random.split(k)
        bound = 1.0 / jnp.sqrt(jnp.float32(fan_in))
        w = jax.random.uniform(kw, (fan_in, fan_out), jnp.float32, -bound, bound)
        b = jax.random.uniform(kb, (1, fan_out), jnp.float32, -bound, bound)
        return w, b

    ks = jax.random.split(key, 7)
    w1, b1 = linear(ks[0], state_dim + action_dim, HIDDEN)
    w2, b2 = linear(ks[1], HIDDEN, HIDDEN)
    wm, bm = linear(ks[2], HIDDEN, latent_dim)
    ws, bs = linear(ks[3], HIDDEN, latent_dim)
    wd1, bd1 = linear(ks[4], state_dim + latent_dim, HIDDEN)
    wd2, bd2 = linear(ks[5], HIDDEN, HIDDEN)
    wd3, bd3 = linear(ks[6], HIDDEN, action_dim)

    bf = lambda x: x.astype(jnp.bfloat16)

    return {
        # split the concat-weights along the input axis
        "w1s": bf(w1[:state_dim]), "w1a": bf(w1[state_dim:]), "b1": b1,
        "w2": bf(w2), "b2": b2,
        # fused mean/log_std head: wms = [wm | ws], bms = [bm | bs]
        "wms": bf(jnp.concatenate([wm, ws], axis=1)),
        "bms": jnp.concatenate([bm, bs], axis=1),
        "wd1s": bf(wd1[:state_dim]),
        # stacked latent weight so the kernel folds z = mean + std*eps into d1
        "wd1z2": bf(jnp.concatenate([wd1[state_dim:], wd1[state_dim:]], axis=0)),
        "bd1": bd1,
        "wd2": bf(wd2), "bd2": bd2,
        "wd3": bf(wd3), "bd3": bd3,
    }


def vae_forward_ref(params, state, action, eps, *, max_action):
    """Pure-JAX reference mirroring the kernel's bf16 matmul / f32 accumulate math."""
    bf16, f32 = jnp.bfloat16, jnp.float32

    def mm(x, w):
        return jnp.dot(x.astype(bf16), w, preferred_element_type=f32)

    L = eps.shape[1]
    h = jnp.maximum(mm(state, params["w1s"]) + mm(action, params["w1a"])
                    + params["b1"], 0.0)
    h = jnp.maximum(mm(h, params["w2"]) + params["b2"], 0.0)
    heads = mm(h, params["wms"]) + params["bms"]
    mean = heads[:, :L]
    log_std = jnp.clip(heads[:, L:], -4.0, 15.0)
    std = jnp.exp(log_std)
    wd1z = params["wd1z2"][:L]
    a = jnp.maximum(mm(state, params["wd1s"]) + mm(mean, wd1z)
                    + mm(std * eps, wd1z) + params["bd1"], 0.0)
    a = jnp.maximum(mm(a, params["wd2"]) + params["bd2"], 0.0)
    u = max_action * jnp.tanh(mm(a, params["wd3"]) + params["bd3"])
    return u, mean, std


if __name__ == "__main__":
    # Small shapes implied by the module's forward: 2-D [batch, feature] inputs.
    batch, state_dim, action_dim, latent_dim = 2, 8, 4, 6
    max_action = 1.0

    root = jax.random.PRNGKey(0)
    k_params, k_state, k_action, k_eps = jax.random.split(root, 4)

    params = init_params(k_params, state_dim, action_dim, latent_dim)
    state = jax.random.normal(k_state, (batch, state_dim), jnp.float32)
    action = jax.random.normal(k_action, (batch, action_dim), jnp.float32)
    # deterministic stand-in for torch.randn_like(std)
    eps = jax.random.normal(k_eps, (batch, latent_dim), jnp.float32)

    u, mean, std = vae_forward(params, state, action, eps, max_action=max_action)
    jax.block_until_ready((u, mean, std))

    # sanity check against a pure-JAX reference using the same bf16 weights
    u_r, mean_r, std_r = vae_forward_ref(params, state, action, eps,
                                         max_action=max_action)
    assert u.shape == (batch, action_dim)
    assert mean.shape == (batch, latent_dim) and std.shape == (batch, latent_dim)
    assert jnp.allclose(u, u_r, atol=2e-3, rtol=2e-3), "u mismatch"
    assert jnp.allclose(mean, mean_r, atol=2e-3, rtol=2e-3), "mean mismatch"
    assert jnp.allclose(std, std_r, atol=2e-3, rtol=2e-3), "std mismatch"

    print("KERNEL_OK")
</pallas_src>

<mosaic_0001>
module attributes {stable_mosaic.version = 11 : i64} {
  func.func @_vae_kernel(%arg0: i32, %arg1: memref<8x8xf32, #tpu.memory_space<vmem>>, %arg2: memref<8x4xf32, #tpu.memory_space<vmem>>, %arg3: memref<8x12xf32, #tpu.memory_space<vmem>>, %arg4: memref<8x750xbf16, #tpu.memory_space<vmem>>, %arg5: memref<4x750xbf16, #tpu.memory_space<vmem>>, %arg6: memref<1x750xf32, #tpu.memory_space<vmem>>, %arg7: memref<750x750xbf16, #tpu.memory_space<vmem>>, %arg8: memref<1x750xf32, #tpu.memory_space<vmem>>, %arg9: memref<750x12xbf16, #tpu.memory_space<vmem>>, %arg10: memref<1x12xf32, #tpu.memory_space<vmem>>, %arg11: memref<8x750xbf16, #tpu.memory_space<vmem>>, %arg12: memref<12x750xbf16, #tpu.memory_space<vmem>>, %arg13: memref<1x750xf32, #tpu.memory_space<vmem>>, %arg14: memref<750x750xbf16, #tpu.memory_space<vmem>>, %arg15: memref<1x750xf32, #tpu.memory_space<vmem>>, %arg16: memref<750x4xbf16, #tpu.memory_space<vmem>>, %arg17: memref<1x4xf32, #tpu.memory_space<vmem>>, %arg18: memref<8x4xf32, #tpu.memory_space<vmem>>, %arg19: memref<8x12xf32, #tpu.memory_space<vmem>>) attributes {dimension_semantics = [#tpu.dimension_semantics<parallel>], iteration_bounds = array<i64: 1>, scalar_prefetch = 0 : i64, scratch_operands = 0 : i64, tpu.core_type = #tpu.core_type<tc>, window_params = [{transform_indices = @transform_0, window_bounds = array<i64: 8, 8>}, {transform_indices = @transform_1, window_bounds = array<i64: 8, 4>}, {transform_indices = @transform_2, window_bounds = array<i64: 8, 12>}, {pipeline_mode = #tpu.pipeline_mode<synchronous>, transform_indices = @transform_3, window_bounds = array<i64: 8, 750>}, {pipeline_mode = #tpu.pipeline_mode<synchronous>, transform_indices = @transform_4, window_bounds = array<i64: 4, 750>}, {pipeline_mode = #tpu.pipeline_mode<synchronous>, transform_indices = @transform_5, window_bounds = array<i64: 1, 750>}, {pipeline_mode = #tpu.pipeline_mode<synchronous>, transform_indices = @transform_6, window_bounds = array<i64: 750, 750>}, {pipeline_mode = #tpu.pipeline_mode<synchronous>, transform_indices = @transform_7, window_bounds = array<i64: 1, 750>}, {pipeline_mode = #tpu.pipeline_mode<synchronous>, transform_indices = @transform_8, window_bounds = array<i64: 750, 12>}, {pipeline_mode = #tpu.pipeline_mode<synchronous>, transform_indices = @transform_9, window_bounds = array<i64: 1, 12>}, {pipeline_mode = #tpu.pipeline_mode<synchronous>, transform_indices = @transform_10, window_bounds = array<i64: 8, 750>}, {pipeline_mode = #tpu.pipeline_mode<synchronous>, transform_indices = @transform_11, window_bounds = array<i64: 12, 750>}, {pipeline_mode = #tpu.pipeline_mode<synchronous>, transform_indices = @transform_12, window_bounds = array<i64: 1, 750>}, {pipeline_mode = #tpu.pipeline_mode<synchronous>, transform_indices = @transform_13, window_bounds = array<i64: 750, 750>}, {pipeline_mode = #tpu.pipeline_mode<synchronous>, transform_indices = @transform_14, window_bounds = array<i64: 1, 750>}, {pipeline_mode = #tpu.pipeline_mode<synchronous>, transform_indices = @transform_15, window_bounds = array<i64: 750, 4>}, {pipeline_mode = #tpu.pipeline_mode<synchronous>, transform_indices = @transform_16, window_bounds = array<i64: 1, 4>}, {transform_indices = @transform_17, window_bounds = array<i64: 8, 4>}, {transform_indices = @transform_18, window_bounds = array<i64: 8, 12>}]} {
    %c0 = arith.constant 0 : index
    %c0_0 = arith.constant 0 : index
    %0 = vector.load %arg1[%c0, %c0_0] : memref<8x8xf32, #tpu.memory_space<vmem>>, vector<8x8xf32>
    %1 = arith.truncf %0 : vector<8x8xf32> to vector<8x8xbf16>
    %c0_1 = arith.constant 0 : index
    %c0_2 = arith.constant 0 : index
    %2 = vector.load %arg2[%c0_1, %c0_2] : memref<8x4xf32, #tpu.memory_space<vmem>>, vector<8x4xf32>
    %3 = arith.truncf %2 : vector<8x4xf32> to vector<8x4xbf16>
    %c0_3 = arith.constant 0 : index
    %c0_4 = arith.constant 0 : index
    %4 = vector.load %arg3[%c0_3, %c0_4] : memref<8x12xf32, #tpu.memory_space<vmem>>, vector<8x12xf32>
    %c0_5 = arith.constant 0 : index
    %c0_6 = arith.constant 0 : index
    %5 = vector.load %arg4[%c0_5, %c0_6] : memref<8x750xbf16, #tpu.memory_space<vmem>>, vector<8x750xbf16>
    %cst = arith.constant dense<0.000000e+00> : vector<8x750xf32>
    %6 = tpu.matmul %1, %5, %cst {dimension_numbers = #tpu.dot_dimension_numbers<[1], [0], [0], [1], [0, 0, 1, 1], [], []>} : vector<8x8xbf16>, vector<8x750xbf16>, vector<8x750xf32> -> vector<8x750xf32>
    %c0_7 = arith.constant 0 : index
    %c0_8 = arith.constant 0 : index
    %7 = vector.load %arg5[%c0_7, %c0_8] : memref<4x750xbf16, #tpu.memory_space<vmem>>, vector<4x750xbf16>
    %cst_9 = arith.constant dense<0.000000e+00> : vector<8x750xf32>
    %8 = tpu.matmul %3, %7, %cst_9 {dimension_numbers = #tpu.dot_dimension_numbers<[1], [0], [0], [1], [0, 0, 1, 1], [], []>} : vector<8x4xbf16>, vector<4x750xbf16>, vector<8x750xf32> -> vector<8x750xf32>
    %9 = arith.addf %6, %8 : vector<8x750xf32>
    %c0_10 = arith.constant 0 : index
    %c0_11 = arith.constant 0 : index
    %10 = vector.load %arg6[%c0_10, %c0_11] : memref<1x750xf32, #tpu.memory_space<vmem>>, vector<1x750xf32>
    %11 = vector.broadcast %10 : vector<1x750xf32> to vector<8x750xf32>
    %12 = arith.addf %9, %11 : vector<8x750xf32>
    %cst_12 = arith.constant 0.000000e+00 : f32
    %13 = vector.broadcast %cst_12 : f32 to vector<8x750xf32>
    %14 = arith.maximumf %12, %13 : vector<8x750xf32>
    %15 = arith.truncf %14 : vector<8x750xf32> to vector<8x750xbf16>
    %c0_13 = arith.constant 0 : index
    %c0_14 = arith.constant 0 : index
    %16 = vector.load %arg7[%c0_13, %c0_14] : memref<750x750xbf16, #tpu.memory_space<vmem>>, vector<750x750xbf16>
    %cst_15 = arith.constant dense<0.000000e+00> : vector<8x750xf32>
    %17 = tpu.matmul %15, %16, %cst_15 {dimension_numbers = #tpu.dot_dimension_numbers<[1], [0], [0], [1], [0, 0, 1, 1], [], []>} : vector<8x750xbf16>, vector<750x750xbf16>, vector<8x750xf32> -> vector<8x750xf32>
    %c0_16 = arith.constant 0 : index
    %c0_17 = arith.constant 0 : index
    %18 = vector.load %arg8[%c0_16, %c0_17] : memref<1x750xf32, #tpu.memory_space<vmem>>, vector<1x750xf32>
    %19 = vector.broadcast %18 : vector<1x750xf32> to vector<8x750xf32>
    %20 = arith.addf %17, %19 : vector<8x750xf32>
    %cst_18 = arith.constant 0.000000e+00 : f32
    %21 = vector.broadcast %cst_18 : f32 to vector<8x750xf32>
    %22 = arith.maximumf %20, %21 : vector<8x750xf32>
    %23 = arith.truncf %22 : vector<8x750xf32> to vector<8x750xbf16>
    %c0_19 = arith.constant 0 : index
    %c0_20 = arith.constant 0 : index
    %24 = vector.load %arg9[%c0_19, %c0_20] : memref<750x12xbf16, #tpu.memory_space<vmem>>, vector<750x12xbf16>
    %cst_21 = arith.constant dense<0.000000e+00> : vector<8x12xf32>
    %25 = tpu.matmul %23, %24, %cst_21 {dimension_numbers = #tpu.dot_dimension_numbers<[1], [0], [0], [1], [0, 0, 1, 1], [], []>} : vector<8x750xbf16>, vector<750x12xbf16>, vector<8x12xf32> -> vector<8x12xf32>
    %c0_22 = arith.constant 0 : index
    %c0_23 = arith.constant 0 : index
    %26 = vector.load %arg10[%c0_22, %c0_23] : memref<1x12xf32, #tpu.memory_space<vmem>>, vector<1x12xf32>
    %27 = vector.broadcast %26 : vector<1x12xf32> to vector<8x12xf32>
    %28 = arith.addf %25, %27 : vector<8x12xf32>
    %29 = tpu.iota {dimensions = array<i32: 1>} : vector<8x12xi32>
    %cst_24 = arith.constant -4.000000e+00 : f32
    %cst_25 = arith.constant 1.500000e+01 : f32
    %30 = vector.broadcast %cst_24 : f32 to vector<8x12xf32>
    %31 = arith.maximumf %30, %28 : vector<8x12xf32>
    %32 = vector.broadcast %cst_25 : f32 to vector<8x12xf32>
    %33 = arith.minimumf %32, %31 : vector<8x12xf32>
    %34 = math.exp %33 : vector<8x12xf32>
    %c6_i32 = arith.constant 6 : i32
    %35 = vector.broadcast %c6_i32 : i32 to vector<8x12xi32>
    %36 = arith.cmpi sge, %29, %35 : vector<8x12xi32>
    %37 = arith.select %36, %34, %28 : vector<8x12xi1>, vector<8x12xf32>
    %38 = arith.mulf %37, %4 : vector<8x12xf32>
    %39 = arith.truncf %38 : vector<8x12xf32> to vector<8x12xbf16>
    %c0_26 = arith.constant 0 : index
    %c0_27 = arith.constant 0 : index
    %40 = vector.load %arg11[%c0_26, %c0_27] : memref<8x750xbf16, #tpu.memory_space<vmem>>, vector<8x750xbf16>
    %cst_28 = arith.constant dense<0.000000e+00> : vector<8x750xf32>
    %41 = tpu.matmul %1, %40, %cst_28 {dimension_numbers = #tpu.dot_dimension_numbers<[1], [0], [0], [1], [0, 0, 1, 1], [], []>} : vector<8x8xbf16>, vector<8x750xbf16>, vector<8x750xf32> -> vector<8x750xf32>
    %c0_29 = arith.constant 0 : index
    %c0_30 = arith.constant 0 : index
    %42 = vector.load %arg12[%c0_29, %c0_30] : memref<12x750xbf16, #tpu.memory_space<vmem>>, vector<12x750xbf16>
    %cst_31 = arith.constant dense<0.000000e+00> : vector<8x750xf32>
    %43 = tpu.matmul %39, %42, %cst_31 {dimension_numbers = #tpu.dot_dimension_numbers<[1], [0], [0], [1], [0, 0, 1, 1], [], []>} : vector<8x12xbf16>, vector<12x750xbf16>, vector<8x750xf32> -> vector<8x750xf32>
    %44 = arith.addf %41, %43 : vector<8x750xf32>
    %c0_32 = arith.constant 0 : index
    %c0_33 = arith.constant 0 : index
    %45 = vector.load %arg13[%c0_32, %c0_33] : memref<1x750xf32, #tpu.memory_space<vmem>>, vector<1x750xf32>
    %46 = vector.broadcast %45 : vector<1x750xf32> to vector<8x750xf32>
    %47 = arith.addf %44, %46 : vector<8x750xf32>
    %cst_34 = arith.constant 0.000000e+00 : f32
    %48 = vector.broadcast %cst_34 : f32 to vector<8x750xf32>
    %49 = arith.maximumf %47, %48 : vector<8x750xf32>
    %50 = arith.truncf %49 : vector<8x750xf32> to vector<8x750xbf16>
    %c0_35 = arith.constant 0 : index
    %c0_36 = arith.constant 0 : index
    %51 = vector.load %arg14[%c0_35, %c0_36] : memref<750x750xbf16, #tpu.memory_space<vmem>>, vector<750x750xbf16>
    %cst_37 = arith.constant dense<0.000000e+00> : vector<8x750xf32>
    %52 = tpu.matmul %50, %51, %cst_37 {dimension_numbers = #tpu.dot_dimension_numbers<[1], [0], [0], [1], [0, 0, 1, 1], [], []>} : vector<8x750xbf16>, vector<750x750xbf16>, vector<8x750xf32> -> vector<8x750xf32>
    %c0_38 = arith.constant 0 : index
    %c0_39 = arith.constant 0 : index
    %53 = vector.load %arg15[%c0_38, %c0_39] : memref<1x750xf32, #tpu.memory_space<vmem>>, vector<1x750xf32>
    %54 = vector.broadcast %53 : vector<1x750xf32> to vector<8x750xf32>
    %55 = arith.addf %52, %54 : vector<8x750xf32>
    %cst_40 = arith.constant 0.000000e+00 : f32
    %56 = vector.broadcast %cst_40 : f32 to vector<8x750xf32>
    %57 = arith.maximumf %55, %56 : vector<8x750xf32>
    %58 = arith.truncf %57 : vector<8x750xf32> to vector<8x750xbf16>
    %c0_41 = arith.constant 0 : index
    %c0_42 = arith.constant 0 : index
    %59 = vector.load %arg16[%c0_41, %c0_42] : memref<750x4xbf16, #tpu.memory_space<vmem>>, vector<750x4xbf16>
    %cst_43 = arith.constant dense<0.000000e+00> : vector<8x4xf32>
    %60 = tpu.matmul %58, %59, %cst_43 {dimension_numbers = #tpu.dot_dimension_numbers<[1], [0], [0], [1], [0, 0, 1, 1], [], []>} : vector<8x750xbf16>, vector<750x4xbf16>, vector<8x4xf32> -> vector<8x4xf32>
    %c0_44 = arith.constant 0 : index
    %c0_45 = arith.constant 0 : index
    %61 = vector.load %arg17[%c0_44, %c0_45] : memref<1x4xf32, #tpu.memory_space<vmem>>, vector<1x4xf32>
    %62 = vector.broadcast %61 : vector<1x4xf32> to vector<8x4xf32>
    %63 = arith.addf %60, %62 : vector<8x4xf32>
    %64 = math.tanh %63 : vector<8x4xf32>
    %cst_46 = arith.constant 1.000000e+00 : f32
    %65 = vector.broadcast %cst_46 : f32 to vector<8x4xf32>
    %66 = arith.mulf %65, %64 : vector<8x4xf32>
    %c0_47 = arith.constant 0 : index
    %c0_48 = arith.constant 0 : index
    %67 = vector.load %arg18[%c0_47, %c0_48] : memref<8x4xf32, #tpu.memory_space<vmem>>, vector<8x4xf32>
    tpu.vector_store %arg18[%c0_47, %c0_48], %66 {strides = array<i32>} : memref<8x4xf32, #tpu.memory_space<vmem>>, vector<8x4xf32>,
    %c0_49 = arith.constant 0 : index
    %c0_50 = arith.constant 0 : index
    %68 = vector.load %arg19[%c0_49, %c0_50] : memref<8x12xf32, #tpu.memory_space<vmem>>, vector<8x12xf32>
    tpu.vector_store %arg19[%c0_49, %c0_50], %37 {strides = array<i32>} : memref<8x12xf32, #tpu.memory_space<vmem>>, vector<8x12xf32>,
    return
  }
  func.func @transform_0(%arg0: i32) -> (i32, i32) {
    %c0_i32 = arith.constant 0 : i32
    %c0_i32_0 = arith.constant 0 : i32
    return %arg0, %c0_i32 : i32, i32
  }
  func.func @transform_1(%arg0: i32) -> (i32, i32) {
    %c0_i32 = arith.constant 0 : i32
    %c0_i32_0 = arith.constant 0 : i32
    return %arg0, %c0_i32 : i32, i32
  }
  func.func @transform_2(%arg0: i32) -> (i32, i32) {
    %c0_i32 = arith.constant 0 : i32
    %c0_i32_0 = arith.constant 0 : i32
    return %arg0, %c0_i32 : i32, i32
  }
  func.func @transform_3(%arg0: i32) -> (i32, i32) {
    %c0_i32 = arith.constant 0 : i32
    %c0_i32_0 = arith.constant 0 : i32
    %c0_i32_1 = arith.constant 0 : i32
    return %c0_i32, %c0_i32_0 : i32, i32
  }
  func.func @transform_4(%arg0: i32) -> (i32, i32) {
    %c0_i32 = arith.constant 0 : i32
    %c0_i32_0 = arith.constant 0 : i32
    %c0_i32_1 = arith.constant 0 : i32
    return %c0_i32, %c0_i32_0 : i32, i32
  }
  func.func @transform_5(%arg0: i32) -> (i32, i32) {
    %c0_i32 = arith.constant 0 : i32
    %c0_i32_0 = arith.constant 0 : i32
    %c0_i32_1 = arith.constant 0 : i32
    return %c0_i32, %c0_i32_0 : i32, i32
  }
  func.func @transform_6(%arg0: i32) -> (i32, i32) {
    %c0_i32 = arith.constant 0 : i32
    %c0_i32_0 = arith.constant 0 : i32
    %c0_i32_1 = arith.constant 0 : i32
    return %c0_i32, %c0_i32_0 : i32, i32
  }
  func.func @transform_7(%arg0: i32) -> (i32, i32) {
    %c0_i32 = arith.constant 0 : i32
    %c0_i32_0 = arith.constant 0 : i32
    %c0_i32_1 = arith.constant 0 : i32
    return %c0_i32, %c0_i32_0 : i32, i32
  }
  func.func @transform_8(%arg0: i32) -> (i32, i32) {
    %c0_i32 = arith.constant 0 : i32
    %c0_i32_0 = arith.constant 0 : i32
    %c0_i32_1 = arith.constant 0 : i32
    return %c0_i32, %c0_i32_0 : i32, i32
  }
  func.func @transform_9(%arg0: i32) -> (i32, i32) {
    %c0_i32 = arith.constant 0 : i32
    %c0_i32_0 = arith.constant 0 : i32
    %c0_i32_1 = arith.constant 0 : i32
    return %c0_i32, %c0_i32_0 : i32, i32
  }
  func.func @transform_10(%arg0: i32) -> (i32, i32) {
    %c0_i32 = arith.constant 0 : i32
    %c0_i32_0 = arith.constant 0 : i32
    %c0_i32_1 = arith.constant 0 : i32
    return %c0_i32, %c0_i32_0 : i32, i32
  }
  func.func @transform_11(%arg0: i32) -> (i32, i32) {
    %c0_i32 = arith.constant 0 : i32
    %c0_i32_0 = arith.constant 0 : i32
    %c0_i32_1 = arith.constant 0 : i32
    return %c0_i32, %c0_i32_0 : i32, i32
  }
  func.func @transform_12(%arg0: i32) -> (i32, i32) {
    %c0_i32 = arith.constant 0 : i32
    %c0_i32_0 = arith.constant 0 : i32
    %c0_i32_1 = arith.constant 0 : i32
    return %c0_i32, %c0_i32_0 : i32, i32
  }
  func.func @transform_13(%arg0: i32) -> (i32, i32) {
    %c0_i32 = arith.constant 0 : i32
    %c0_i32_0 = arith.constant 0 : i32
    %c0_i32_1 = arith.constant 0 : i32
    return %c0_i32, %c0_i32_0 : i32, i32
  }
  func.func @transform_14(%arg0: i32) -> (i32, i32) {
    %c0_i32 = arith.constant 0 : i32
    %c0_i32_0 = arith.constant 0 : i32
    %c0_i32_1 = arith.constant 0 : i32
    return %c0_i32, %c0_i32_0 : i32, i32
  }
  func.func @transform_15(%arg0: i32) -> (i32, i32) {
    %c0_i32 = arith.constant 0 : i32
    %c0_i32_0 = arith.constant 0 : i32
    %c0_i32_1 = arith.constant 0 : i32
    return %c0_i32, %c0_i32_0 : i32, i32
  }
  func.func @transform_16(%arg0: i32) -> (i32, i32) {
    %c0_i32 = arith.constant 0 : i32
    %c0_i32_0 = arith.constant 0 : i32
    %c0_i32_1 = arith.constant 0 : i32
    return %c0_i32, %c0_i32_0 : i32, i32
  }
  func.func @transform_17(%arg0: i32) -> (i32, i32) {
    %c0_i32 = arith.constant 0 : i32
    %c0_i32_0 = arith.constant 0 : i32
    return %arg0, %c0_i32 : i32, i32
  }
  func.func @transform_18(%arg0: i32) -> (i32, i32) {
    %c0_i32 = arith.constant 0 : i32
    %c0_i32_0 = arith.constant 0 : i32
    return %arg0, %c0_i32 : i32, i32
  }
}

</mosaic_0001>

<llo_original>
// kernel: vae_forward.1
$region0: #{vae_forward.1}
  #allocation0 [shape = 'u32[]', space=smem, size = 0x4, offset = 0x4, fixed_abs, tag = 'smem constant byte address 0x4 - core index']
  #allocation1 [shape = 'u32[72,128]{1,0:T(1,128)}', space=vmem, size = 0x9000, scoped, tag = 'internal scratch']
  %s0 = inlined_call_operand.vmem [shape: f32[8,8], index: 0, kind: input, shape index: {}]
  %s1 = inlined_call_operand.vmem [shape: f32[8,4], index: 1, kind: input, shape index: {}]
  %s2 = inlined_call_operand.vmem [shape: f32[8,12], index: 2, kind: input, shape index: {}]
  %s3 = inlined_call_operand.hbm [shape: bf16[8,750], index: 3, kind: input, shape index: {}]
  %s4 = inlined_call_operand.hbm [shape: bf16[4,750], index: 4, kind: input, shape index: {}]
  %s5 = inlined_call_operand.hbm [shape: f32[1,750], index: 5, kind: input, shape index: {}]
  %s6 = inlined_call_operand.hbm [shape: bf16[750,750], index: 6, kind: input, shape index: {}]
  %s7 = inlined_call_operand.hbm [shape: f32[1,750], index: 7, kind: input, shape index: {}]
  %s8 = inlined_call_operand.vmem [shape: bf16[750,12], index: 8, kind: input, shape index: {}]
  %s9 = inlined_call_operand.hbm [shape: f32[1,12], index: 9, kind: input, shape index: {}]
  %s10 = inlined_call_operand.hbm [shape: bf16[8,750], index: 10, kind: input, shape index: {}]
  %s11 = inlined_call_operand.hbm [shape: bf16[12,750], index: 11, kind: input, shape index: {}]
  %s12 = inlined_call_operand.hbm [shape: f32[1,750], index: 12, kind: input, shape index: {}]
  %s13 = inlined_call_operand.hbm [shape: bf16[750,750], index: 13, kind: input, shape index: {}]
  %s14 = inlined_call_operand.hbm [shape: f32[1,750], index: 14, kind: input, shape index: {}]
  %s15 = inlined_call_operand.vmem [shape: bf16[750,4], index: 15, kind: input, shape index: {}]
  %s16 = inlined_call_operand.hbm [shape: f32[1,4], index: 16, kind: input, shape index: {}]
  %s17 = inlined_call_operand.vmem [shape: f32[8,4], index: 17, kind: output, shape index: {0}]
  %s18 = inlined_call_operand.vmem [shape: f32[8,12], index: 18, kind: output, shape index: {1}]
  %19 = xla_tuple %s17, %s18
  %s20 = sld [smem:[#allocation0]]
  $region134: #{vae_forward.1} parent=0
    _
  %s22 = ssub.s32 1, %s20
  %s23 = scalar_select 0, %s22, %s20
  $region1: #{vae_forward.1} parent=0
    #allocation2 [shape = 'u8[12288]{0}', space=vmem, size = 0x3000, scoped, tag = 'input window, operand 3, single buffered']
    #allocation3 [shape = 's32[1]{0}', space=sflag, size = 0x4, scoped, tag = 'scoped memory for vae_forward.1']
    #allocation4 [shape = 'u8[6144]{0}', space=vmem, size = 0x1800, scoped, tag = 'input window, operand 4, single buffered']
    #allocation5 [shape = 's32[1]{0}', space=sflag, size = 0x4, scoped, tag = 'scoped memory for vae_forward.1']
    #allocation6 [shape = 'u8[3072]{0}', space=vmem, size = 0xc00, scoped, tag = 'input window, operand 5, single buffered']
    #allocation7 [shape = 'u8[1155072]{0}', space=vmem, size = 0x11a000, scoped, tag = 'input window, operand 6, single buffered']
    #allocation8 [shape = 's32[1]{0}', space=sflag, size = 0x4, scoped, tag = 'scoped memory for vae_forward.1']
    #allocation9 [shape = 'u8[3072]{0}', space=vmem, size = 0xc00, scoped, tag = 'input window, operand 7, single buffered']
    #allocation10 [shape = 'u8[512]{0}', space=vmem, size = 0x400, scoped, tag = 'input window, operand 9, single buffered']
    #allocation11 [shape = 's32[1]{0}', space=sflag, size = 0x4, scoped, tag = 'scoped memory for vae_forward.1']
    #allocation12 [shape = 'u8[12288]{0}', space=vmem, size = 0x3000, scoped, tag = 'input window, operand 10, single buffered']
    #allocation13 [shape = 'u8[24576]{0}', space=vmem, size = 0x6000, scoped, tag = 'input window, operand 11, single buffered']
    #allocation14 [shape = 's32[1]{0}', space=sflag, size = 0x4, scoped, tag = 'scoped memory for vae_forward.1']
    #allocation15 [shape = 'u8[3072]{0}', space=vmem, size = 0xc00, scoped, tag = 'input window, operand 12, single buffered']
    #allocation16 [shape = 'u8[1155072]{0}', space=vmem, size = 0x11a000, scoped, tag = 'input window, operand 13, single buffered']
    #allocation17 [shape = 's32[1]{0}', space=sflag, size = 0x4, scoped, tag = 'scoped memory for vae_forward.1']
    #allocation18 [shape = 'u8[3072]{0}', space=vmem, size = 0xc00, scoped, tag = 'input window, operand 14, single buffered']
    #allocation19 [shape = 'u8[512]{0}', space=vmem, size = 0x400, scoped, tag = 'input window, operand 16, single buffered']
    #allocation20 [shape = 's32[1]{0}', space=sflag, size = 0x4, scoped, tag = 'scoped memory for vae_forward.1']
    %24 = vsyncpa [#allocation3], 0
    %25 = vsyncpa [#allocation5], 0
    %26 = vsyncpa [#allocation8], 0
    %27 = vsyncpa [#allocation11], 0
    %28 = vsyncpa [#allocation14], 0
    %29 = vsyncpa [#allocation17], 0
    %30 = vsyncpa [#allocation20], 0
    // Predicated region
    $region2: #{vae_forward.1} parent=1 // pred_check
      _
    $region3: #{vae_forward.1} parent=1 // pred_check_branch
      %32 = sbr.rel (0) target = $region5
    $region4: #{vae_forward.1} parent=1 // pred_region
      _
    $region5: #{vae_forward.1} parent=1 // pred_fallthru
      _
    // Predicated region
    $region6: #{vae_forward.1} parent=1 // pred_check
      _
    $region7: #{vae_forward.1} parent=1 // pred_check_branch
      %34 = sbr.rel (0) target = $region9
    $region8: #{vae_forward.1} parent=1 // pred_region
      _
    $region9: #{vae_forward.1} parent=1 // pred_fallthru
      _
    // Predicated region
    $region10: #{vae_forward.1} parent=1 // pred_check
      _
    $region11: #{vae_forward.1} parent=1 // pred_check_branch
      %36 = sbr.rel (0) target = $region13
    $region12: #{vae_forward.1} parent=1 // pred_region
      _
    $region13: #{vae_forward.1} parent=1 // pred_fallthru
      _
    // Predicated region
    $region14: #{vae_forward.1} parent=1 // pred_check
      _
    $region15: #{vae_forward.1} parent=1 // pred_check_branch
      %38 = sbr.rel (0) target = $region17
    $region16: #{vae_forward.1} parent=1 // pred_region
      %40 = vsyncadd [#allocation3], 0
      %s42 = sshll.u32 %s3, 4
      %s43 = int_to_ptr.hbm [resolvable:$true] %s42
      %s44 = sshll.u32 [#allocation2], 4
      %s45 = int_to_ptr.vmem [resolvable:$true] %s44
      %47 = dma.hbm_to_vmem [thread:$0]  %s43, 384, %s45, [#allocation3]
    $region17: #{vae_forward.1} parent=1 // pred_fallthru
      _
    // Predicated region
    $region18: #{vae_forward.1} parent=1 // pred_check
      _
    $region19: #{vae_forward.1} parent=1 // pred_check_branch
      %49 = sbr.rel (0) target = $region21
    $region20: #{vae_forward.1} parent=1 // pred_region
      %51 = vsyncadd [#allocation5], 0
      %s53 = sshll.u32 %s4, 4
      %s54 = int_to_ptr.hbm [resolvable:$true] %s53
      %s55 = sshll.u32 [#allocation4], 4
      %s56 = int_to_ptr.vmem [resolvable:$true] %s55
      %58 = dma.hbm_to_vmem [thread:$0]  %s54, 192, %s56, [#allocation5]
    $region21: #{vae_forward.1} parent=1 // pred_fallthru
      _
    // Predicated region
    $region22: #{vae_forward.1} parent=1 // pred_check
      _
    $region23: #{vae_forward.1} parent=1 // pred_check_branch
      %60 = sbr.rel (0) target = $region25
    $region24: #{vae_forward.1} parent=1 // pred_region
      %62 = vsyncadd [#allocation5], 0
      %s64 = sshll.u32 %s5, 4
      %s65 = int_to_ptr.hbm [resolvable:$true] %s64
      %s66 = sshll.u32 [#allocation6], 4
      %s67 = int_to_ptr.vmem [resolvable:$true] %s66
      %69 = dma.hbm_to_vmem [thread:$0]  %s65, 96, %s67, [#allocation5]
    $region25: #{vae_forward.1} parent=1 // pred_fallthru
      _
    // Predicated region
    $region26: #{vae_forward.1} parent=1 // pred_check
      _
    $region27: #{vae_forward.1} parent=1 // pred_check_branch
      %71 = sbr.rel (0) target = $region29
    $region28: #{vae_forward.1} parent=1 // pred_region
      %73 = vsyncadd [#allocation8], 0
      %s74 = sshll.u32 %s6, 4
      %s75 = int_to_ptr.hbm [resolvable:$true] %s74
      %s76 = sshll.u32 [#allocation7], 4
      %s77 = int_to_ptr.vmem [resolvable:$true] %s76
      %82 = dma.hbm_to_vmem [thread:$0]  %s75, 36096, %s77, [#allocation8], 384, 384, 24
    $region29: #{vae_forward.1} parent=1 // pred_fallthru
      _
    // Predicated region
    $region30: #{vae_forward.1} parent=1 // pred_check
      _
    $region31: #{vae_forward.1} parent=1 // pred_check_branch
      %84 = sbr.rel (0) target = $region33
    $region32: #{vae_forward.1} parent=1 // pred_region
      %86 = vsyncadd [#allocation8], 0
      %s88 = sshll.u32 %s7, 4
      %s89 = int_to_ptr.hbm [resolvable:$true] %s88
      %s90 = sshll.u32 [#allocation9], 4
      %s91 = int_to_ptr.vmem [resolvable:$true] %s90
      %93 = dma.hbm_to_vmem [thread:$0]  %s89, 96, %s91, [#allocation8]
    $region33: #{vae_forward.1} parent=1 // pred_fallthru
      _
    // Predicated region
    $region34: #{vae_forward.1} parent=1 // pred_check
      _
    $region35: #{vae_forward.1} parent=1 // pred_check_branch
      %95 = sbr.rel (0) target = $region37
    $region36: #{vae_forward.1} parent=1 // pred_region
      _
    $region37: #{vae_forward.1} parent=1 // pred_fallthru
      _
    // Predicated region
    $region38: #{vae_forward.1} parent=1 // pred_check
      _
    $region39: #{vae_forward.1} parent=1 // pred_check_branch
      %97 = sbr.rel (0) target = $region41
    $region40: #{vae_forward.1} parent=1 // pred_region
      %99 = vsyncadd [#allocation11], 0
      %s101 = sshll.u32 %s9, 4
      %s102 = int_to_ptr.hbm [resolvable:$true] %s101
      %s103 = sshll.u32 [#allocation10], 4
      %s104 = int_to_ptr.vmem [resolvable:$true] %s103
      %106 = dma.hbm_to_vmem [thread:$0]  %s102, 16, %s104, [#allocation11]
    $region41: #{vae_forward.1} parent=1 // pred_fallthru
      _
    // Predicated region
    $region42: #{vae_forward.1} parent=1 // pred_check
      _
    $region43: #{vae_forward.1} parent=1 // pred_check_branch
      %108 = sbr.rel (0) target = $region45
    $region44: #{vae_forward.1} parent=1 // pred_region
      %110 = vsyncadd [#allocation11], 0
      %s112 = sshll.u32 %s10, 4
      %s113 = int_to_ptr.hbm [resolvable:$true] %s112
      %s114 = sshll.u32 [#allocation12], 4
      %s115 = int_to_ptr.vmem [resolvable:$true] %s114
      %117 = dma.hbm_to_vmem [thread:$0]  %s113, 384, %s115, [#allocation11]
    $region45: #{vae_forward.1} parent=1 // pred_fallthru
      _
    // Predicated region
    $region46: #{vae_forward.1} parent=1 // pred_check
      _
    $region47: #{vae_forward.1} parent=1 // pred_check_branch
      %119 = sbr.rel (0) target = $region49
    $region48: #{vae_forward.1} parent=1 // pred_region
      %121 = vsyncadd [#allocation14], 0
      %s122 = sshll.u32 %s11, 4
      %s123 = int_to_ptr.hbm [resolvable:$true] %s122
      %s124 = sshll.u32 [#allocation13], 4
      %s125 = int_to_ptr.vmem [resolvable:$true] %s124
      %130 = dma.hbm_to_vmem [thread:$0]  %s123, 768, %s125, [#allocation14], 384, 384, 24
    $region49: #{vae_forward.1} parent=1 // pred_fallthru
      _
    // Predicated region
    $region50: #{vae_forward.1} parent=1 // pred_check
      _
    $region51: #{vae_forward.1} parent=1 // pred_check_branch
      %132 = sbr.rel (0) target = $region53
    $region52: #{vae_forward.1} parent=1 // pred_region
      %134 = vsyncadd [#allocation14], 0
      %s136 = sshll.u32 %s12, 4
      %s137 = int_to_ptr.hbm [resolvable:$true] %s136
      %s138 = sshll.u32 [#allocation15], 4
      %s139 = int_to_ptr.vmem [resolvable:$true] %s138
      %141 = dma.hbm_to_vmem [thread:$0]  %s137, 96, %s139, [#allocation14]
    $region53: #{vae_forward.1} parent=1 // pred_fallthru
      _
    // Predicated region
    $region54: #{vae_forward.1} parent=1 // pred_check
      _
    $region55: #{vae_forward.1} parent=1 // pred_check_branch
      %143 = sbr.rel (0) target = $region57
    $region56: #{vae_forward.1} parent=1 // pred_region
      %145 = vsyncadd [#allocation17], 0
      %s146 = sshll.u32 %s13, 4
      %s147 = int_to_ptr.hbm [resolvable:$true] %s146
      %s148 = sshll.u32 [#allocation16], 4
      %s149 = int_to_ptr.vmem [resolvable:$true] %s148
      %154 = dma.hbm_to_vmem [thread:$0]  %s147, 36096, %s149, [#allocation17], 384, 384, 24
    $region57: #{vae_forward.1} parent=1 // pred_fallthru
      _
    // Predicated region
    $region58: #{vae_forward.1} parent=1 // pred_check
      _
    $region59: #{vae_forward.1} parent=1 // pred_check_branch
      %156 = sbr.rel (0) target = $region61
    $region60: #{vae_forward.1} parent=1 // pred_region
      %158 = vsyncadd [#allocation17], 0
      %s160 = sshll.u32 %s14, 4
      %s161 = int_to_ptr.hbm [resolvable:$true] %s160
      %s162 = sshll.u32 [#allocation18], 4
      %s163 = int_to_ptr.vmem [resolvable:$true] %s162
      %165 = dma.hbm_to_vmem [thread:$0]  %s161, 96, %s163, [#allocation17]
    $region61: #{vae_forward.1} parent=1 // pred_fallthru
      _
    // Predicated region
    $region62: #{vae_forward.1} parent=1 // pred_check
      _
    $region63: #{vae_forward.1} parent=1 // pred_check_branch
      %167 = sbr.rel (0) target = $region65
    $region64: #{vae_forward.1} parent=1 // pred_region
      _
    $region65: #{vae_forward.1} parent=1 // pred_fallthru
      _
    // Predicated region
    $region66: #{vae_forward.1} parent=1 // pred_check
      _
    $region67: #{vae_forward.1} parent=1 // pred_check_branch
      %169 = sbr.rel (0) target = $region69
    $region68: #{vae_forward.1} parent=1 // pred_region
      %171 = vsyncadd [#allocation20], 0
      %s173 = sshll.u32 %s16, 4
      %s174 = int_to_ptr.hbm [resolvable:$true] %s173
      %s175 = sshll.u32 [#allocation19], 4
      %s176 = int_to_ptr.vmem [resolvable:$true] %s175
      %178 = dma.hbm_to_vmem [thread:$0]  %s174, 16, %s176, [#allocation20]
    $region69: #{vae_forward.1} parent=1 // pred_fallthru
      _
    // Predicated region
    $region70: #{vae_forward.1} parent=1 // pred_check
      _
    $region71: #{vae_forward.1} parent=1 // pred_check_branch
      %180 = sbr.rel (0) target = $region73
    $region72: #{vae_forward.1} parent=1 // pred_region
      %182 = dma.done [#allocation3], 384
    $region73: #{vae_forward.1} parent=1 // pred_fallthru
      _
    // Predicated region
    $region74: #{vae_forward.1} parent=1 // pred_check
      _
    $region75: #{vae_forward.1} parent=1 // pred_check_branch
      %184 = sbr.rel (0) target = $region77
    $region76: #{vae_forward.1} parent=1 // pred_region
      %186 = dma.done [#allocation5], 192
    $region77: #{vae_forward.1} parent=1 // pred_fallthru
      _
    // Predicated region
    $region78: #{vae_forward.1} parent=1 // pred_check
      _
    $region79: #{vae_forward.1} parent=1 // pred_check_branch
      %188 = sbr.rel (0) target = $region81
    $region80: #{vae_forward.1} parent=1 // pred_region
      %190 = dma.done [#allocation5], 96
    $region81: #{vae_forward.1} parent=1 // pred_fallthru
      _
    // Predicated region
    $region82: #{vae_forward.1} parent=1 // pred_check
      _
    $region83: #{vae_forward.1} parent=1 // pred_check_branch
      %192 = sbr.rel (0) target = $region85
    $region84: #{vae_forward.1} parent=1 // pred_region
      %194 = dma.done [#allocation8], 36096
    $region85: #{vae_forward.1} parent=1 // pred_fallthru
      _
    // Predicated region
    $region86: #{vae_forward.1} parent=1 // pred_check
      _
    $region87: #{vae_forward.1} parent=1 // pred_check_branch
      %196 = sbr.rel (0) target = $region89
    $region88: #{vae_forward.1} parent=1 // pred_region
      %198 = dma.done [#allocation8], 96
    $region89: #{vae_forward.1} parent=1 // pred_fallthru
      _
    // Predicated region
    $region90: #{vae_forward.1} parent=1 // pred_check
      _
    $region91: #{vae_forward.1} parent=1 // pred_check_branch
      %200 = sbr.rel (0) target = $region93
    $region92: #{vae_forward.1} parent=1 // pred_region
      %202 = dma.done [#allocation11], 16
    $region93: #{vae_forward.1} parent=1 // pred_fallthru
      _
    // Predicated region
    $region94: #{vae_forward.1} parent=1 // pred_check
      _
    $region95: #{vae_forward.1} parent=1 // pred_check_branch
      %204 = sbr.rel (0) target = $region97
    $region96: #{vae_forward.1} parent=1 // pred_region
      %206 = dma.done [#allocation11], 384
    $region97: #{vae_forward.1} parent=1 // pred_fallthru
      _
    // Predicated region
    $region98: #{vae_forward.1} parent=1 // pred_check
      _
    $region99: #{vae_forward.1} parent=1 // pred_check_branch
      %208 = sbr.rel (0) target = $region101
    $region100: #{vae_forward.1} parent=1 // pred_region
      %210 = dma.done [#allocation14], 768
    $region101: #{vae_forward.1} parent=1 // pred_fallthru
      _
    // Predicated region
    $region102: #{vae_forward.1} parent=1 // pred_check
      _
    $region103: #{vae_forward.1} parent=1 // pred_check_branch
      %212 = sbr.rel (0) target = $region105
    $region104: #{vae_forward.1} parent=1 // pred_region
      %214 = dma.done [#allocation14], 96
    $region105: #{vae_forward.1} parent=1 // pred_fallthru
      _
    // Predicated region
    $region106: #{vae_forward.1} parent=1 // pred_check
      _
    $region107: #{vae_forward.1} parent=1 // pred_check_branch
      %216 = sbr.rel (0) target = $region109
    $region108: #{vae_forward.1} parent=1 // pred_region
      %218 = dma.done [#allocation17], 36096
    $region109: #{vae_forward.1} parent=1 // pred_fallthru
      _
    // Predicated region
    $region110: #{vae_forward.1} parent=1 // pred_check
      _
    $region111: #{vae_forward.1} parent=1 // pred_check_branch
      %220 = sbr.rel (0) target = $region113
    $region112: #{vae_forward.1} parent=1 // pred_region
      %222 = dma.done [#allocation17], 96
    $region113: #{vae_forward.1} parent=1 // pred_fallthru
      _
    // Predicated region
    $region114: #{vae_forward.1} parent=1 // pred_check
      _
    $region115: #{vae_forward.1} parent=1 // pred_check_branch
      %224 = sbr.rel (0) target = $region117
    $region116: #{vae_forward.1} parent=1 // pred_region
      %226 = dma.done [#allocation20], 16
    $region117: #{vae_forward.1} parent=1 // pred_fallthru
      _
    %v228 = vld [vmem:[%s0] sm:$0xff]
    %v229 = vpack.c.bf16 %v228, %v228
    %v230 = vld [vmem:[%s1] sm:$0xff]
    %v231 = vpack.c.bf16 %v230, %v230
    %v232 = vld [vmem:[%s2] sm:$0xff]
    %v233 = vld [vmem:[#allocation2] sm:$0xff]
    %v234 = vld [vmem:[#allocation2 + $0x8] sm:$0xff]
    %v235 = vld [vmem:[#allocation2 + $0x10] sm:$0xff]
    %v236 = vld [vmem:[#allocation4] sm:$0xff]
    %v237 = vld [vmem:[#allocation4 + $0x8] sm:$0xf]
    %239 = vst [vmem:[#allocation1] ss:$4 sm:$0xff] %v236
    %s241 = scalar_lea.vmem [#allocation1], 32
    %242 = vst [vmem:[%s241] ss:$4 sm:$0xff] %v237
    %v243 = vld.sshfl [vmem:[#allocation1] sm:$0xff pattern:$0x73625140]
    %v244 = vld.sshfl [vmem:[#allocation1 + $0x8] sm:$0xff pattern:$0x73625140]
    %v245 = vld.sshfl [vmem:[#allocation1 + $0x10] sm:$0xff pattern:$0x73625140]
    %v246 = vld.sshfl [vmem:[#allocation1 + $0x18] sm:$0xff pattern:$0x73625140]
    %v247 = vld.sshfl [vmem:[#allocation1 + $0x20] sm:$0xff pattern:$0x73625140]
    %v248 = vld.sshfl [vmem:[#allocation1 + $0x28] sm:$0xff pattern:$0x73625140]
    %vm249 = vcmask 31744
    %v251 = vsel %vm249, %v231, 0
    %vm253 = vcmask 1041408
    %v254 = vsel %vm253, %v243, 0
    %v256 = vsel %vm253, %v244, 0
    %v258 = vsel %vm253, %v245, 0
    %v260 = vsel %vm253, %v246, 0
    %v262 = vsel %vm253, %v247, 0
    %v264 = vsel %vm253, %v248, 0
    %266 = vmatpush.bf16.msra.mxu0 0
    %267 = vmatpush.bf16.msra.mxu0 0
    %268 = vmatpush.bf16.msra.mxu0 0
    %269 = vmatpush.bf16.msra.mxu0 0
    %270 = vmatpush.bf16.msra.mxu0 0
    %271 = vmatpush.bf16.msra.mxu0 0
    %272 = vmatpush.bf16.msra.mxu0 0
    %273 = vmatpush.bf16.msra.mxu0 %v254
    %274 = vmatmul.bf16.gmra.mxu0 %v251
    %v275 = vpop.f32.mrf.mxu0
    %v276 = vadd.f32 0.0, %v275
    %v277 = vpop.f32.mrf.mxu0
    %278 = vdwg.mxu0
    %279 = vmatpush.bf16.msra.mxu0 0
    %280 = vmatpush.bf16.msra.mxu0 0
    %281 = vmatpush.bf16.msra.mxu0 0
    %282 = vmatpush.bf16.msra.mxu0 0
    %283 = vmatpush.bf16.msra.mxu0 0
    %284 = vmatpush.bf16.msra.mxu0 0
    %285 = vmatpush.bf16.msra.mxu0 0
    %286 = vmatpush.bf16.msra.mxu0 %v256
    %287 = vmatmul.bf16.gmra.mxu0 %v251
    %v288 = vpop.f32.mrf.mxu0
    %v289 = vadd.f32 0.0, %v288
    %v290 = vpop.f32.mrf.mxu0
    %291 = vdwg.mxu0
    %292 = vmatpush.bf16.msra.mxu0 0
    %293 = vmatpush.bf16.msra.mxu0 0
    %294 = vmatpush.bf16.msra.mxu0 0
    %295 = vmatpush.bf16.msra.mxu0 0
    %296 = vmatpush.bf16.msra.mxu0 0
    %297 = vmatpush.bf16.msra.mxu0 0
    %298 = vmatpush.bf16.msra.mxu0 0
    %299 = vmatpush.bf16.msra.mxu0 %v258
    %300 = vmatmul.bf16.gmra.mxu0 %v251
    %v301 = vpop.f32.mrf.mxu0
    %v302 = vadd.f32 0.0, %v301
    %v303 = vpop.f32.mrf.mxu0
    %304 = vdwg.mxu0
    %305 = vmatpush.bf16.msra.mxu0 0
    %306 = vmatpush.bf16.msra.mxu0 0
    %307 = vmatpush.bf16.msra.mxu0 0
    %308 = vmatpush.bf16.msra.mxu0 0
    %309 = vmatpush.bf16.msra.mxu0 0
    %310 = vmatpush.bf16.msra.mxu0 0
    %311 = vmatpush.bf16.msra.mxu0 0
    %312 = vmatpush.bf16.msra.mxu0 %v260
    %313 = vmatmul.bf16.gmra.mxu0 %v251
    %v314 = vpop.f32.mrf.mxu0
    %v315 = vadd.f32 0.0, %v314
    %v316 = vpop.f32.mrf.mxu0
    %317 = vdwg.mxu0
    %318 = vmatpush.bf16.msra.mxu0 0
    %319 = vmatpush.bf16.msra.mxu0 0
    %320 = vmatpush.bf16.msra.mxu0 0
    %321 = vmatpush.bf16.msra.mxu0 0
    %322 = vmatpush.bf16.msra.mxu0 0
    %323 = vmatpush.bf16.msra.mxu0 0
    %324 = vmatpush.bf16.msra.mxu0 0
    %325 = vmatpush.bf16.msra.mxu0 %v262
    %326 = vmatmul.bf16.gmra.mxu0 %v251
    %v327 = vpop.f32.mrf.mxu0
    %v328 = vadd.f32 0.0, %v327
    %v329 = vpop.f32.mrf.mxu0
    %330 = vdwg.mxu0
    %331 = vmatpush.bf16.msra.mxu0 0
    %332 = vmatpush.bf16.msra.mxu0 0
    %333 = vmatpush.bf16.msra.mxu0 0
    %334 = vmatpush.bf16.msra.mxu0 0
    %335 = vmatpush.bf16.msra.mxu0 0
    %336 = vmatpush.bf16.msra.mxu0 0
    %337 = vmatpush.bf16.msra.mxu0 0
    %338 = vmatpush.bf16.msra.mxu0 %v264
    %339 = vmatmul.bf16.gmra.mxu0 %v251
    %v340 = vpop.f32.mrf.mxu0
    %v341 = vadd.f32 0.0, %v340
    %v342 = vpop.f32.mrf.mxu0
    %343 = vdwg.mxu0
    %v347 = vunpack.c.l.b16 %v233
    %v348 = vunpack.c.h.b16 %v233
    %v349 = vunpack.c.l.b16 %v234
    %v350 = vunpack.c.h.b16 %v234
    %v351 = vunpack.c.l.b16 %v235
    %v352 = vunpack.c.h.b16 %v235
    %v353 = vpack.c.b16 %v347, %v347
    %v354 = vpack.c.b16 %v348, %v348
    %v355 = vpack.c.b16 %v349, %v349
    %v356 = vpack.c.b16 %v350, %v350
    %v357 = vpack.c.b16 %v351, %v351
    %v358 = vpack.c.b16 %v352, %v352
    %vm359 = vcmask 64512
    %v361 = vsel %vm359, %v229, 0
    %vm363 = vcmask 1043456
    %v365 = vsel %vm363, %v353, 0
    %v368 = vsel %vm363, %v354, 0
    %v371 = vsel %vm363, %v355, 0
    %v374 = vsel %vm363, %v356, 0
    %v377 = vsel %vm363, %v357, 0
    %v380 = vsel %vm363, %v358, 0
    %382 = vmatpush.bf16.msra.mxu0 0
    %383 = vmatpush.bf16.msra.mxu0 0
    %384 = vmatpush.bf16.msra.mxu0 0
    %385 = vmatpush.bf16.msra.mxu0 0
    %386 = vmatpush.bf16.msra.mxu0 0
    %387 = vmatpush.bf16.msra.mxu0 0
    %388 = vmatpush.bf16.msra.mxu0 0
    %389 = vmatpush.bf16.msra.mxu0 %v365
    %390 = vmatmul.bf16.gmra.mxu0 %v361
    %v391 = vpop.f32.mrf.mxu0
    %v392 = vadd.f32 %v276, %v391
    %v393 = vpop.f32.mrf.mxu0
    %394 = vdwg.mxu0
    %395 = vmatpush.bf16.msra.mxu0 0
    %396 = vmatpush.bf16.msra.mxu0 0
    %397 = vmatpush.bf16.msra.mxu0 0
    %398 = vmatpush.bf16.msra.mxu0 0
    %399 = vmatpush.bf16.msra.mxu0 0
    %400 = vmatpush.bf16.msra.mxu0 0
    %401 = vmatpush.bf16.msra.mxu0 0
    %402 = vmatpush.bf16.msra.mxu0 %v368
    %403 = vmatmul.bf16.gmra.mxu0 %v361
    %v404 = vpop.f32.mrf.mxu0
    %v405 = vadd.f32 %v289, %v404
    %v406 = vpop.f32.mrf.mxu0
    %407 = vdwg.mxu0
    %408 = vmatpush.bf16.msra.mxu0 0
    %409 = vmatpush.bf16.msra.mxu0 0
    %410 = vmatpush.bf16.msra.mxu0 0
    %411 = vmatpush.bf16.msra.mxu0 0
    %412 = vmatpush.bf16.msra.mxu0 0
    %413 = vmatpush.bf16.msra.mxu0 0
    %414 = vmatpush.bf16.msra.mxu0 0
    %415 = vmatpush.bf16.msra.mxu0 %v371
    %416 = vmatmul.bf16.gmra.mxu0 %v361
    %v417 = vpop.f32.mrf.mxu0
    %v418 = vadd.f32 %v302, %v417
    %v419 = vpop.f32.mrf.mxu0
    %420 = vdwg.mxu0
    %421 = vmatpush.bf16.msra.mxu0 0
    %422 = vmatpush.bf16.msra.mxu0 0
    %423 = vmatpush.bf16.msra.mxu0 0
    %424 = vmatpush.bf16.msra.mxu0 0
    %425 = vmatpush.bf16.msra.mxu0 0
    %426 = vmatpush.bf16.msra.mxu0 0
    %427 = vmatpush.bf16.msra.mxu0 0
    %428 = vmatpush.bf16.msra.mxu0 %v374
    %429 = vmatmul.bf16.gmra.mxu0 %v361
    %v430 = vpop.f32.mrf.mxu0
    %v431 = vadd.f32 %v315, %v430
    %v432 = vpop.f32.mrf.mxu0
    %433 = vdwg.mxu0
    %434 = vmatpush.bf16.msra.mxu0 0
    %435 = vmatpush.bf16.msra.mxu0 0
    %436 = vmatpush.bf16.msra.mxu0 0
    %437 = vmatpush.bf16.msra.mxu0 0
    %438 = vmatpush.bf16.msra.mxu0 0
    %439 = vmatpush.bf16.msra.mxu0 0
    %440 = vmatpush.bf16.msra.mxu0 0
    %441 = vmatpush.bf16.msra.mxu0 %v377
    %442 = vmatmul.bf16.gmra.mxu0 %v361
    %v443 = vpop.f32.mrf.mxu0
    %v444 = vadd.f32 %v328, %v443
    %v445 = vpop.f32.mrf.mxu0
    %446 = vdwg.mxu0
    %447 = vmatpush.bf16.msra.mxu0 0
    %448 = vmatpush.bf16.msra.mxu0 0
    %449 = vmatpush.bf16.msra.mxu0 0
    %450 = vmatpush.bf16.msra.mxu0 0
    %451 = vmatpush.bf16.msra.mxu0 0
    %452 = vmatpush.bf16.msra.mxu0 0
    %453 = vmatpush.bf16.msra.mxu0 0
    %454 = vmatpush.bf16.msra.mxu0 %v380
    %455 = vmatmul.bf16.gmra.mxu0 %v361
    %v456 = vpop.f32.mrf.mxu0
    %v457 = vadd.f32 %v341, %v456
    %v458 = vpop.f32.mrf.mxu0
    %459 = vdwg.mxu0
    %v460 = vld [vmem:[#allocation6] sm:$0x3f]
    %v462 = vperm.slane %v460, 0
    %v463 = vperm.slane %v460, 1
    %v464 = vperm.slane %v460, 2
    %v465 = vperm.slane %v460, 3
    %v466 = vperm.slane %v460, 4
    %v467 = vperm.slane %v460, 5
    %v474 = vadd.f32 %v392, %v462
    %v475 = vadd.f32 %v405, %v463
    %v476 = vadd.f32 %v418, %v464
    %v477 = vadd.f32 %v431, %v465
    %v478 = vadd.f32 %v444, %v466
    %v479 = vadd.f32 %v457, %v467
    %v480 = vmax.f32 %v474, 0.0
    %v481 = vmax.f32 %v475, 0.0
    %v482 = vmax.f32 %v476, 0.0
    %v483 = vmax.f32 %v477, 0.0
    %v484 = vmax.f32 %v478, 0.0
    %v485 = vmax.f32 %v479, 0.0
    %v486 = vpack.c.bf16 %v480, %v480
    %v487 = vpack.c.bf16 %v481, %v481
    %v488 = vpack.c.bf16 %v482, %v482
    %v489 = vpack.c.bf16 %v483, %v483
    %v490 = vpack.c.bf16 %v484, %v484
    %v491 = vpack.c.bf16 %v485, %v485
    %v492 = vld [vmem:[#allocation7] sm:$0xff]
    %v493 = vld [vmem:[#allocation7 + $0x8] sm:$0xff]
    %v494 = vld [vmem:[#allocation7 + $0x10] sm:$0xff]
    %v495 = vld [vmem:[#allocation7 + $0x18] sm:$0xff]
    %v496 = vld [vmem:[#allocation7 + $0x20] sm:$0xff]
    %v497 = vld [vmem:[#allocation7 + $0x28] sm:$0xff]
    %v498 = vld [vmem:[#allocation7 + $0x30] sm:$0xff]
    %v499 = vld [vmem:[#allocation7 + $0x38] sm:$0xff]
    %v500 = vld [vmem:[#allocation7 + $0x40] sm:$0xff]
    %v501 = vld [vmem:[#allocation7 + $0x48] sm:$0xff]
    %v502 = vld [vmem:[#allocation7 + $0x50] sm:$0xff]
    %v503 = vld [vmem:[#allocation7 + $0x58] sm:$0xff]
    %v504 = vld [vmem:[#allocation7 + $0x60] sm:$0xff]
    %v505 = vld [vmem:[#allocation7 + $0x68] sm:$0xff]
    %v506 = vld [vmem:[#allocation7 + $0x70] sm:$0xff]
    %v507 = vld [vmem:[#allocation7 + $0x78] sm:$0xff]
    %v508 = vld [vmem:[#allocation7 + $0x80] sm:$0xff]
    %v509 = vld [vmem:[#allocation7 + $0x88] sm:$0xff]
    %v510 = vld [vmem:[#allocation7 + $0x90] sm:$0xff]
    %v511 = vld [vmem:[#allocation7 + $0x98] sm:$0xff]
    %v512 = vld [vmem:[#allocation7 + $0xa0] sm:$0xff]
    %v513 = vld [vmem:[#allocation7 + $0xa8] sm:$0xff]
    %v514 = vld [vmem:[#allocation7 + $0xb0] sm:$0xff]
    %v515 = vld [vmem:[#allocation7 + $0xb8] sm:$0xff]
    %v516 = vld [vmem:[#allocation7 + $0xc0] sm:$0xff]
    %v517 = vld [vmem:[#allocation7 + $0xc8] sm:$0xff]
    %v518 = vld [vmem:[#allocation7 + $0xd0] sm:$0xff]
    %v519 = vld [vmem:[#allocation7 + $0xd8] sm:$0xff]
    %v520 = vld [vmem:[#allocation7 + $0xe0] sm:$0xff]
    %v521 = vld [vmem:[#allocation7 + $0xe8] sm:$0xff]
    %v522 = vld [vmem:[#allocation7 + $0xf0] sm:$0xff]
    %v523 = vld [vmem:[#allocation7 + $0xf8] sm:$0xff]
    %v524 = vld [vmem:[#allocation7 + $0x100] sm:$0xff]
    %v525 = vld [vmem:[#allocation7 + $0x108] sm:$0xff]
    %v526 = vld [vmem:[#allocation7 + $0x110] sm:$0xff]
    %v527 = vld [vmem:[#allocation7 + $0x118] sm:$0xff]
    %v528 = vld [vmem:[#allocation7 + $0x120] sm:$0xff]
    %v529 = vld [vmem:[#allocation7 + $0x128] sm:$0xff]
    %v530 = vld [vmem:[#allocation7 + $0x130] sm:$0xff]
    %v531 = vld [vmem:[#allocation7 + $0x138] sm:$0xff]
    %v532 = vld [vmem:[#allocation7 + $0x140] sm:$0xff]
    %v533 = vld [vmem:[#allocation7 + $0x148] sm:$0xff]
    %v534 = vld [vmem:[#allocation7 + $0x150] sm:$0xff]
    %v535 = vld [vmem:[#allocation7 + $0x158] sm:$0xff]
    %v536 = vld [vmem:[#allocation7 + $0x160] sm:$0xff]
    %v537 = vld [vmem:[#allocation7 + $0x168] sm:$0xff]
    %v538 = vld [vmem:[#allocation7 + $0x170] sm:$0xff]
    %v539 = vld [vmem:[#allocation7 + $0x178] sm:$0xff]
    %v540 = vld [vmem:[#allocation7 + $0x180] sm:$0xff]
    %v541 = vld [vmem:[#allocation7 + $0x188] sm:$0xff]
    %v542 = vld [vmem:[#allocation7 + $0x190] sm:$0xff]
    %v543 = vld [vmem:[#allocation7 + $0x198] sm:$0xff]
    %v544 = vld [vmem:[#allocation7 + $0x1a0] sm:$0xff]
    %v545 = vld [vmem:[#allocation7 + $0x1a8] sm:$0xff]
    %v546 = vld [vmem:[#allocation7 + $0x1b0] sm:$0xff]
    %v547 = vld [vmem:[#allocation7 + $0x1b8] sm:$0xff]
    %v548 = vld [vmem:[#allocation7 + $0x1c0] sm:$0xff]
    %v549 = vld [vmem:[#allocation7 + $0x1c8] sm:$0xff]
    %v550 = vld [vmem:[#allocation7 + $0x1d0] sm:$0xff]
    %v551 = vld [vmem:[#allocation7 + $0x1d8] sm:$0xff]
    %v552 = vld [vmem:[#allocation7 + $0x1e0] sm:$0xff]
    %v553 = vld [vmem:[#allocation7 + $0x1e8] sm:$0xff]
    %v554 = vld [vmem:[#allocation7 + $0x1f0] sm:$0xff]
    %v555 = vld [vmem:[#allocation7 + $0x1f8] sm:$0xff]
    %v556 = vld [vmem:[#allocation7 + $0x200] sm:$0xff]
    %v557 = vld [vmem:[#allocation7 + $0x208] sm:$0xff]
    %v558 = vld [vmem:[#allocation7 + $0x210] sm:$0xff]
    %v559 = vld [vmem:[#allocation7 + $0x218] sm:$0xff]
    %v560 = vld [vmem:[#allocation7 + $0x220] sm:$0xff]
    %v561 = vld [vmem:[#allocation7 + $0x228] sm:$0xff]
    %v562 = vld [vmem:[#allocation7 + $0x230] sm:$0xff]
    %v563 = vld [vmem:[#allocation7 + $0x238] sm:$0xff]
    %v564 = vld [vmem:[#allocation7 + $0x240] sm:$0xff]
    %v565 = vld [vmem:[#allocation7 + $0x248] sm:$0xff]
    %v566 = vld [vmem:[#allocation7 + $0x250] sm:$0xff]
    %v567 = vld [vmem:[#allocation7 + $0x258] sm:$0xff]
    %v568 = vld [vmem:[#allocation7 + $0x260] sm:$0xff]
    %v569 = vld [vmem:[#allocation7 + $0x268] sm:$0xff]
    %v570 = vld [vmem:[#allocation7 + $0x270] sm:$0xff]
    %v571 = vld [vmem:[#allocation7 + $0x278] sm:$0xff]
    %v572 = vld [vmem:[#allocation7 + $0x280] sm:$0xff]
    %v573 = vld [vmem:[#allocation7 + $0x288] sm:$0xff]
    %v574 = vld [vmem:[#allocation7 + $0x290] sm:$0xff]
    %v575 = vld [vmem:[#allocation7 + $0x298] sm:$0xff]
    %v576 = vld [vmem:[#allocation7 + $0x2a0] sm:$0xff]
    %v577 = vld [vmem:[#allocation7 + $0x2a8] sm:$0xff]
    %v578 = vld [vmem:[#allocation7 + $0x2b0] sm:$0xff]
    %v579 = vld [vmem:[#allocation7 + $0x2b8] sm:$0xff]
    %v580 = vld [vmem:[#allocation7 + $0x2c0] sm:$0xff]
    %v581 = vld [vmem:[#allocation7 + $0x2c8] sm:$0xff]
    %v582 = vld [vmem:[#allocation7 + $0x2d0] sm:$0xff]
    %v583 = vld [vmem:[#allocation7 + $0x2d8] sm:$0xff]
    %v584 = vld [vmem:[#allocation7 + $0x2e0] sm:$0xff]
    %v585 = vld [vmem:[#allocation7 + $0x2e8] sm:$0xff]
    %v586 = vld [vmem:[#allocation7 + $0x2f0] sm:$0xff]
    %v587 = vld [vmem:[#allocation7 + $0x2f8] sm:$0xff]
    %v588 = vld [vmem:[#allocation7 + $0x300] sm:$0xff]
    %v589 = vld [vmem:[#allocation7 + $0x308] sm:$0xff]
    %v590 = vld [vmem:[#allocation7 + $0x310] sm:$0xff]
    %v591 = vld [vmem:[#allocation7 + $0x318] sm:$0xff]
    %v592 = vld [vmem:[#allocation7 + $0x320] sm:$0xff]
    %v593 = vld [vmem:[#allocation7 + $0x328] sm:$0xff]
    %v594 = vld [vmem:[#allocation7 + $0x330] sm:$0xff]
    %v595 = vld [vmem:[#allocation7 + $0x338] sm:$0xff]
    %v596 = vld [vmem:[#allocation7 + $0x340] sm:$0xff]
    %v597 = vld [vmem:[#allocation7 + $0x348] sm:$0xff]
    %v598 = vld [vmem:[#allocation7 + $0x350] sm:$0xff]
    %v599 = vld [vmem:[#allocation7 + $0x358] sm:$0xff]
    %v600 = vld [vmem:[#allocation7 + $0x360] sm:$0xff]
    %v601 = vld [vmem:[#allocation7 + $0x368] sm:$0xff]
    %v602 = vld [vmem:[#allocation7 + $0x370] sm:$0xff]
    %v603 = vld [vmem:[#allocation7 + $0x378] sm:$0xff]
    %v604 = vld [vmem:[#allocation7 + $0x380] sm:$0xff]
    %v605 = vld [vmem:[#allocation7 + $0x388] sm:$0xff]
    %v606 = vld [vmem:[#allocation7 + $0x390] sm:$0xff]
    %v607 = vld [vmem:[#allocation7 + $0x398] sm:$0xff]
    %v608 = vld [vmem:[#allocation7 + $0x3a0] sm:$0xff]
    %v609 = vld [vmem:[#allocation7 + $0x3a8] sm:$0xff]
    %v610 = vld [vmem:[#allocation7 + $0x3b0] sm:$0xff]
    %v611 = vld [vmem:[#allocation7 + $0x3b8] sm:$0xff]
    %v612 = vld [vmem:[#allocation7 + $0x3c0] sm:$0xff]
    %v613 = vld [vmem:[#allocation7 + $0x3c8] sm:$0xff]
    %v614 = vld [vmem:[#allocation7 + $0x3d0] sm:$0xff]
    %v615 = vld [vmem:[#allocation7 + $0x3d8] sm:$0xff]
    %v616 = vld [vmem:[#allocation7 + $0x3e0] sm:$0xff]
    %v617 = vld [vmem:[#allocation7 + $0x3e8] sm:$0xff]
    %v618 = vld [vmem:[#allocation7 + $0x3f0] sm:$0xff]
    %v619 = vld [vmem:[#allocation7 + $0x3f8] sm:$0xff]
    %v620 = vld [vmem:[#allocation7 + $0x400] sm:$0xff]
    %v621 = vld [vmem:[#allocation7 + $0x408] sm:$0xff]
    %v622 = vld [vmem:[#allocation7 + $0x410] sm:$0xff]
    %v623 = vld [vmem:[#allocation7 + $0x418] sm:$0xff]
    %v624 = vld [vmem:[#allocation7 + $0x420] sm:$0xff]
    %v625 = vld [vmem:[#allocation7 + $0x428] sm:$0xff]
    %v626 = vld [vmem:[#allocation7 + $0x430] sm:$0xff]
    %v627 = vld [vmem:[#allocation7 + $0x438] sm:$0xff]
    %v628 = vld [vmem:[#allocation7 + $0x440] sm:$0xff]
    %v629 = vld [vmem:[#allocation7 + $0x448] sm:$0xff]
    %v630 = vld [vmem:[#allocation7 + $0x450] sm:$0xff]
    %v631 = vld [vmem:[#allocation7 + $0x458] sm:$0xff]
    %v632 = vld [vmem:[#allocation7 + $0x460] sm:$0xff]
    %v633 = vld [vmem:[#allocation7 + $0x468] sm:$0xff]
    %v634 = vld [vmem:[#allocation7 + $0x470] sm:$0xff]
    %v635 = vld [vmem:[#allocation7 + $0x478] sm:$0xff]
    %v636 = vld [vmem:[#allocation7 + $0x480] sm:$0xff]
    %v637 = vld [vmem:[#allocation7 + $0x488] sm:$0xff]
    %v638 = vld [vmem:[#allocation7 + $0x490] sm:$0xff]
    %v639 = vld [vmem:[#allocation7 + $0x498] sm:$0xff]
    %v640 = vld [vmem:[#allocation7 + $0x4a0] sm:$0xff]
    %v641 = vld [vmem:[#allocation7 + $0x4a8] sm:$0xff]
    %v642 = vld [vmem:[#allocation7 + $0x4b0] sm:$0xff]
    %v643 = vld [vmem:[#allocation7 + $0x4b8] sm:$0xff]
    %v644 = vld [vmem:[#allocation7 + $0x4c0] sm:$0xff]
    %v645 = vld [vmem:[#allocation7 + $0x4c8] sm:$0xff]
    %v646 = vld [vmem:[#allocation7 + $0x4d0] sm:$0xff]
    %v647 = vld [vmem:[#allocation7 + $0x4d8] sm:$0xff]
    %v648 = vld [vmem:[#allocation7 + $0x4e0] sm:$0xff]
    %v649 = vld [vmem:[#allocation7 + $0x4e8] sm:$0xff]
    %v650 = vld [vmem:[#allocation7 + $0x4f0] sm:$0xff]
    %v651 = vld [vmem:[#allocation7 + $0x4f8] sm:$0xff]
    %v652 = vld [vmem:[#allocation7 + $0x500] sm:$0xff]
    %v653 = vld [vmem:[#allocation7 + $0x508] sm:$0xff]
    %v654 = vld [vmem:[#allocation7 + $0x510] sm:$0xff]
    %v655 = vld [vmem:[#allocation7 + $0x518] sm:$0xff]
    %v656 = vld [vmem:[#allocation7 + $0x520] sm:$0xff]
    %v657 = vld [vmem:[#allocation7 + $0x528] sm:$0xff]
    %v658 = vld [vmem:[#allocation7 + $0x530] sm:$0xff]
    %v659 = vld [vmem:[#allocation7 + $0x538] sm:$0xff]
    %v660 = vld [vmem:[#allocation7 + $0x540] sm:$0xff]
    %v661 = vld [vmem:[#allocation7 + $0x548] sm:$0xff]
    %v662 = vld [vmem:[#allocation7 + $0x550] sm:$0xff]
    %v663 = vld [vmem:[#allocation7 + $0x558] sm:$0xff]
    %v664 = vld [vmem:[#allocation7 + $0x560] sm:$0xff]
    %v665 = vld [vmem:[#allocation7 + $0x568] sm:$0xff]
    %v666 = vld [vmem:[#allocation7 + $0x570] sm:$0xff]
    %v667 = vld [vmem:[#allocation7 + $0x578] sm:$0xff]
    %v668 = vld [vmem:[#allocation7 + $0x580] sm:$0xff]
    %v669 = vld [vmem:[#allocation7 + $0x588] sm:$0xff]
    %v670 = vld [vmem:[#allocation7 + $0x590] sm:$0xff]
    %v671 = vld [vmem:[#allocation7 + $0x598] sm:$0xff]
    %v672 = vld [vmem:[#allocation7 + $0x5a0] sm:$0xff]
    %v673 = vld [vmem:[#allocation7 + $0x5a8] sm:$0xff]
    %v674 = vld [vmem:[#allocation7 + $0x5b0] sm:$0xff]
    %v675 = vld [vmem:[#allocation7 + $0x5b8] sm:$0xff]
    %v676 = vld [vmem:[#allocation7 + $0x5c0] sm:$0xff]
    %v677 = vld [vmem:[#allocation7 + $0x5c8] sm:$0xff]
    %v678 = vld [vmem:[#allocation7 + $0x5d0] sm:$0xff]
    %v679 = vld [vmem:[#allocation7 + $0x5d8] sm:$0xff]
    %v680 = vld [vmem:[#allocation7 + $0x5e0] sm:$0xff]
    %v681 = vld [vmem:[#allocation7 + $0x5e8] sm:$0xff]
    %v682 = vld [vmem:[#allocation7 + $0x5f0] sm:$0xff]
    %v683 = vld [vmem:[#allocation7 + $0x5f8] sm:$0xff]
    %v684 = vld [vmem:[#allocation7 + $0x600] sm:$0xff]
    %v685 = vld [vmem:[#allocation7 + $0x608] sm:$0xff]
    %v686 = vld [vmem:[#allocation7 + $0x610] sm:$0xff]
    %v687 = vld [vmem:[#allocation7 + $0x618] sm:$0xff]
    %v688 = vld [vmem:[#allocation7 + $0x620] sm:$0xff]
    %v689 = vld [vmem:[#allocation7 + $0x628] sm:$0xff]
    %v690 = vld [vmem:[#allocation7 + $0x630] sm:$0xff]
    %v691 = vld [vmem:[#allocation7 + $0x638] sm:$0xff]
    %v692 = vld [vmem:[#allocation7 + $0x640] sm:$0xff]
    %v693 = vld [vmem:[#allocation7 + $0x648] sm:$0xff]
    %v694 = vld [vmem:[#allocation7 + $0x650] sm:$0xff]
    %v695 = vld [vmem:[#allocation7 + $0x658] sm:$0xff]
    %v696 = vld [vmem:[#allocation7 + $0x660] sm:$0xff]
    %v697 = vld [vmem:[#allocation7 + $0x668] sm:$0xff]
    %v698 = vld [vmem:[#allocation7 + $0x670] sm:$0xff]
    %v699 = vld [vmem:[#allocation7 + $0x678] sm:$0xff]
    %v700 = vld [vmem:[#allocation7 + $0x680] sm:$0xff]
    %v701 = vld [vmem:[#allocation7 + $0x688] sm:$0xff]
    %v702 = vld [vmem:[#allocation7 + $0x690] sm:$0xff]
    %v703 = vld [vmem:[#allocation7 + $0x698] sm:$0xff]
    %v704 = vld [vmem:[#allocation7 + $0x6a0] sm:$0xff]
    %v705 = vld [vmem:[#allocation7 + $0x6a8] sm:$0xff]
    %v706 = vld [vmem:[#allocation7 + $0x6b0] sm:$0xff]
    %v707 = vld [vmem:[#allocation7 + $0x6b8] sm:$0xff]
    %v708 = vld [vmem:[#allocation7 + $0x6c0] sm:$0xff]
    %v709 = vld [vmem:[#allocation7 + $0x6c8] sm:$0xff]
    %v710 = vld [vmem:[#allocation7 + $0x6d0] sm:$0xff]
    %v711 = vld [vmem:[#allocation7 + $0x6d8] sm:$0xff]
    %v712 = vld [vmem:[#allocation7 + $0x6e0] sm:$0xff]
    %v713 = vld [vmem:[#allocation7 + $0x6e8] sm:$0xff]
    %v714 = vld [vmem:[#allocation7 + $0x6f0] sm:$0xff]
    %v715 = vld [vmem:[#allocation7 + $0x6f8] sm:$0xff]
    %v716 = vld [vmem:[#allocation7 + $0x700] sm:$0xff]
    %v717 = vld [vmem:[#allocation7 + $0x708] sm:$0xff]
    %v718 = vld [vmem:[#allocation7 + $0x710] sm:$0xff]
    %v719 = vld [vmem:[#allocation7 + $0x718] sm:$0xff]
    %v720 = vld [vmem:[#allocation7 + $0x720] sm:$0xff]
    %v721 = vld [vmem:[#allocation7 + $0x728] sm:$0xff]
    %v722 = vld [vmem:[#allocation7 + $0x730] sm:$0xff]
    %v723 = vld [vmem:[#allocation7 + $0x738] sm:$0xff]
    %v724 = vld [vmem:[#allocation7 + $0x740] sm:$0xff]
    %v725 = vld [vmem:[#allocation7 + $0x748] sm:$0xff]
    %v726 = vld [vmem:[#allocation7 + $0x750] sm:$0xff]
    %v727 = vld [vmem:[#allocation7 + $0x758] sm:$0xff]
    %v728 = vld [vmem:[#allocation7 + $0x760] sm:$0xff]
    %v729 = vld [vmem:[#allocation7 + $0x768] sm:$0xff]
    %v730 = vld [vmem:[#allocation7 + $0x770] sm:$0xff]
    %v731 = vld [vmem:[#allocation7 + $0x778] sm:$0xff]
    %v732 = vld [vmem:[#allocation7 + $0x780] sm:$0xff]
    %v733 = vld [vmem:[#allocation7 + $0x788] sm:$0xff]
    %v734 = vld [vmem:[#allocation7 + $0x790] sm:$0xff]
    %v735 = vld [vmem:[#allocation7 + $0x798] sm:$0xff]
    %v736 = vld [vmem:[#allocation7 + $0x7a0] sm:$0xff]
    %v737 = vld [vmem:[#allocation7 + $0x7a8] sm:$0xff]
    %v738 = vld [vmem:[#allocation7 + $0x7b0] sm:$0xff]
    %v739 = vld [vmem:[#allocation7 + $0x7b8] sm:$0xff]
    %v740 = vld [vmem:[#allocation7 + $0x7c0] sm:$0xff]
    %v741 = vld [vmem:[#allocation7 + $0x7c8] sm:$0xff]
    %v742 = vld [vmem:[#allocation7 + $0x7d0] sm:$0xff]
    %v743 = vld [vmem:[#allocation7 + $0x7d8] sm:$0xff]
    %v744 = vld [vmem:[#allocation7 + $0x7e0] sm:$0xff]
    %v745 = vld [vmem:[#allocation7 + $0x7e8] sm:$0xff]
    %v746 = vld [vmem:[#allocation7 + $0x7f0] sm:$0xff]
    %v747 = vld [vmem:[#allocation7 + $0x7f8] sm:$0xff]
    %v748 = vld [vmem:[#allocation7 + $0x800] sm:$0xff]
    %v749 = vld [vmem:[#allocation7 + $0x808] sm:$0xff]
    %v750 = vld [vmem:[#allocation7 + $0x810] sm:$0xff]
    %v751 = vld [vmem:[#allocation7 + $0x818] sm:$0xff]
    %v752 = vld [vmem:[#allocation7 + $0x820] sm:$0xff]
    %v753 = vld [vmem:[#allocation7 + $0x828] sm:$0xff]
    %v754 = vld [vmem:[#allocation7 + $0x830] sm:$0xff]
    %v755 = vld [vmem:[#allocation7 + $0x838] sm:$0xff]
    %v756 = vld [vmem:[#allocation7 + $0x840] sm:$0xff]
    %v757 = vld [vmem:[#allocation7 + $0x848] sm:$0xff]
    %v758 = vld [vmem:[#allocation7 + $0x850] sm:$0xff]
    %v759 = vld [vmem:[#allocation7 + $0x858] sm:$0xff]
    %v760 = vld [vmem:[#allocation7 + $0x860] sm:$0xff]
    %v761 = vld [vmem:[#allocation7 + $0x868] sm:$0xff]
    %v762 = vld [vmem:[#allocation7 + $0x870] sm:$0xff]
    %v763 = vld [vmem:[#allocation7 + $0x878] sm:$0xff]
    %v764 = vld [vmem:[#allocation7 + $0x880] sm:$0xff]
    %v765 = vld [vmem:[#allocation7 + $0x888] sm:$0xff]
    %v766 = vld [vmem:[#allocation7 + $0x890] sm:$0xff]
    %v767 = vld [vmem:[#allocation7 + $0x898] sm:$0xff]
    %v768 = vld [vmem:[#allocation7 + $0x8a0] sm:$0xff]
    %v769 = vld [vmem:[#allocation7 + $0x8a8] sm:$0xff]
    %v770 = vld [vmem:[#allocation7 + $0x8b0] sm:$0xff]
    %v771 = vld [vmem:[#allocation7 + $0x8b8] sm:$0x77]
    %v772 = vld [vmem:[#allocation7 + $0x8c0] sm:$0x77]
    %v773 = vld [vmem:[#allocation7 + $0x8c8] sm:$0x77]
    %v774 = vld [vmem:[#allocation9] sm:$0x3f]
    %v776 = vperm.slane %v774, 0
    %v777 = vperm.slane %v774, 1
    %v778 = vperm.slane %v774, 2
    %v779 = vperm.slane %v774, 3
    %v780 = vperm.slane %v774, 4
    %v781 = vperm.slane %v774, 5
    %v1070 = vunpack.c.l.b16 %v492
    %v1071 = vunpack.c.h.b16 %v492
    %v1072 = vunpack.c.l.b16 %v493
    %v1073 = vunpack.c.h.b16 %v493
    %v1074 = vunpack.c.l.b16 %v494
    %v1075 = vunpack.c.h.b16 %v494
    %v1076 = vunpack.c.l.b16 %v495
    %v1077 = vunpack.c.h.b16 %v495
    %v1078 = vunpack.c.l.b16 %v496
    %v1079 = vunpack.c.h.b16 %v496
    %v1080 = vunpack.c.l.b16 %v497
    %v1081 = vunpack.c.h.b16 %v497
    %v1082 = vunpack.c.l.b16 %v498
    %v1083 = vunpack.c.h.b16 %v498
    %v1084 = vunpack.c.l.b16 %v499
    %v1085 = vunpack.c.h.b16 %v499
    %v1086 = vunpack.c.l.b16 %v500
    %v1087 = vunpack.c.h.b16 %v500
    %v1088 = vunpack.c.l.b16 %v501
    %v1089 = vunpack.c.h.b16 %v501
    %v1090 = vunpack.c.l.b16 %v502
    %v1091 = vunpack.c.h.b16 %v502
    %v1092 = vunpack.c.l.b16 %v503
    %v1093 = vunpack.c.h.b16 %v503
    %v1094 = vunpack.c.l.b16 %v504
    %v1095 = vunpack.c.h.b16 %v504
    %v1096 = vunpack.c.l.b16 %v505
    %v1097 = vunpack.c.h.b16 %v505
    %v1098 = vunpack.c.l.b16 %v506
    %v1099 = vunpack.c.h.b16 %v506
    %v1100 = vunpack.c.l.b16 %v507
    %v1101 = vunpack.c.h.b16 %v507
    %v1102 = vunpack.c.l.b16 %v508
    %v1103 = vunpack.c.h.b16 %v508
    %v1104 = vunpack.c.l.b16 %v509
    %v1105 = vunpack.c.h.b16 %v509
    %v1106 = vunpack.c.l.b16 %v510
    %v1107 = vunpack.c.h.b16 %v510
    %v1108 = vunpack.c.l.b16 %v511
    %v1109 = vunpack.c.h.b16 %v511
    %v1110 = vunpack.c.l.b16 %v512
    %v1111 = vunpack.c.h.b16 %v512
    %v1112 = vunpack.c.l.b16 %v513
    %v1113 = vunpack.c.h.b16 %v513
    %v1114 = vunpack.c.l.b16 %v514
    %v1115 = vunpack.c.h.b16 %v514
    %v1116 = vunpack.c.l.b16 %v515
    %v1117 = vunpack.c.h.b16 %v515
    %v1118 = vunpack.c.l.b16 %v516
    %v1119 = vunpack.c.h.b16 %v516
    %v1120 = vunpack.c.l.b16 %v517
    %v1121 = vunpack.c.h.b16 %v517
    %v1122 = vunpack.c.l.b16 %v518
    %v1123 = vunpack.c.h.b16 %v518
    %v1124 = vunpack.c.l.b16 %v519
    %v1125 = vunpack.c.h.b16 %v519
    %v1126 = vunpack.c.l.b16 %v520
    %v1127 = vunpack.c.h.b16 %v520
    %v1128 = vunpack.c.l.b16 %v521
    %v1129 = vunpack.c.h.b16 %v521
    %v1130 = vunpack.c.l.b16 %v522
    %v1131 = vunpack.c.h.b16 %v522
    %v1132 = vunpack.c.l.b16 %v523
    %v1133 = vunpack.c.h.b16 %v523
    %v1134 = vunpack.c.l.b16 %v524
    %v1135 = vunpack.c.h.b16 %v524
    %v1136 = vunpack.c.l.b16 %v525
    %v1137 = vunpack.c.h.b16 %v525
    %v1138 = vunpack.c.l.b16 %v526
    %v1139 = vunpack.c.h.b16 %v526
    %v1140 = vunpack.c.l.b16 %v527
    %v1141 = vunpack.c.h.b16 %v527
    %v1142 = vunpack.c.l.b16 %v528
    %v1143 = vunpack.c.h.b16 %v528
    %v1144 = vunpack.c.l.b16 %v529
    %v1145 = vunpack.c.h.b16 %v529
    %v1146 = vunpack.c.l.b16 %v530
    %v1147 = vunpack.c.h.b16 %v530
    %v1148 = vunpack.c.l.b16 %v531
    %v1149 = vunpack.c.h.b16 %v531
    %v1150 = vunpack.c.l.b16 %v532
    %v1151 = vunpack.c.h.b16 %v532
    %v1152 = vunpack.c.l.b16 %v533
    %v1153 = vunpack.c.h.b16 %v533
    %v1154 = vunpack.c.l.b16 %v534
    %v1155 = vunpack.c.h.b16 %v534
    %v1156 = vunpack.c.l.b16 %v535
    %v1157 = vunpack.c.h.b16 %v535
    %v1158 = vunpack.c.l.b16 %v536
    %v1159 = vunpack.c.h.b16 %v536
    %v1160 = vunpack.c.l.b16 %v537
    %v1161 = vunpack.c.h.b16 %v537
    %v1162 = vunpack.c.l.b16 %v538
    %v1163 = vunpack.c.h.b16 %v538
    %v1164 = vunpack.c.l.b16 %v539
    %v1165 = vunpack.c.h.b16 %v539
    %v1166 = vunpack.c.l.b16 %v540
    %v1167 = vunpack.c.h.b16 %v540
    %v1168 = vunpack.c.l.b16 %v541
    %v1169 = vunpack.c.h.b16 %v541
    %v1170 = vunpack.c.l.b16 %v542
    %v1171 = vunpack.c.h.b16 %v542
    %v1172 = vunpack.c.l.b16 %v543
    %v1173 = vunpack.c.h.b16 %v543
    %v1174 = vunpack.c.l.b16 %v544
    %v1175 = vunpack.c.h.b16 %v544
    %v1176 = vunpack.c.l.b16 %v545
    %v1177 = vunpack.c.h.b16 %v545
    %v1178 = vunpack.c.l.b16 %v546
    %v1179 = vunpack.c.h.b16 %v546
    %v1180 = vunpack.c.l.b16 %v547
    %v1181 = vunpack.c.h.b16 %v547
    %v1182 = vunpack.c.l.b16 %v548
    %v1183 = vunpack.c.h.b16 %v548
    %v1184 = vunpack.c.l.b16 %v549
    %v1185 = vunpack.c.h.b16 %v549
    %v1186 = vunpack.c.l.b16 %v550
    %v1187 = vunpack.c.h.b16 %v550
    %v1188 = vunpack.c.l.b16 %v551
    %v1189 = vunpack.c.h.b16 %v551
    %v1190 = vunpack.c.l.b16 %v552
    %v1191 = vunpack.c.h.b16 %v552
    %v1192 = vunpack.c.l.b16 %v553
    %v1193 = vunpack.c.h.b16 %v553
    %v1194 = vunpack.c.l.b16 %v554
    %v1195 = vunpack.c.h.b16 %v554
    %v1196 = vunpack.c.l.b16 %v555
    %v1197 = vunpack.c.h.b16 %v555
    %v1198 = vunpack.c.l.b16 %v556
    %v1199 = vunpack.c.h.b16 %v556
    %v1200 = vunpack.c.l.b16 %v557
    %v1201 = vunpack.c.h.b16 %v557
    %v1202 = vunpack.c.l.b16 %v558
    %v1203 = vunpack.c.h.b16 %v558
    %v1204 = vunpack.c.l.b16 %v559
    %v1205 = vunpack.c.h.b16 %v559
    %v1206 = vunpack.c.l.b16 %v560
    %v1207 = vunpack.c.h.b16 %v560
    %v1208 = vunpack.c.l.b16 %v561
    %v1209 = vunpack.c.h.b16 %v561
    %v1210 = vunpack.c.l.b16 %v562
    %v1211 = vunpack.c.h.b16 %v562
    %v1212 = vunpack.c.l.b16 %v563
    %v1213 = vunpack.c.h.b16 %v563
    %v1214 = vunpack.c.l.b16 %v564
    %v1215 = vunpack.c.h.b16 %v564
    %v1216 = vunpack.c.l.b16 %v565
    %v1217 = vunpack.c.h.b16 %v565
    %v1218 = vunpack.c.l.b16 %v566
    %v1219 = vunpack.c.h.b16 %v566
    %v1220 = vunpack.c.l.b16 %v567
    %v1221 = vunpack.c.h.b16 %v567
    %v1222 = vunpack.c.l.b16 %v568
    %v1223 = vunpack.c.h.b16 %v568
    %v1224 = vunpack.c.l.b16 %v569
    %v1225 = vunpack.c.h.b16 %v569
    %v1226 = vunpack.c.l.b16 %v570
    %v1227 = vunpack.c.h.b16 %v570
    %v1228 = vunpack.c.l.b16 %v571
    %v1229 = vunpack.c.h.b16 %v571
    %v1230 = vunpack.c.l.b16 %v572
    %v1231 = vunpack.c.h.b16 %v572
    %v1232 = vunpack.c.l.b16 %v573
    %v1233 = vunpack.c.h.b16 %v573
    %v1234 = vunpack.c.l.b16 %v574
    %v1235 = vunpack.c.h.b16 %v574
    %v1236 = vunpack.c.l.b16 %v575
    %v1237 = vunpack.c.h.b16 %v575
    %v1238 = vunpack.c.l.b16 %v576
    %v1239 = vunpack.c.h.b16 %v576
    %v1240 = vunpack.c.l.b16 %v577
    %v1241 = vunpack.c.h.b16 %v577
    %v1242 = vunpack.c.l.b16 %v578
    %v1243 = vunpack.c.h.b16 %v578
    %v1244 = vunpack.c.l.b16 %v579
    %v1245 = vunpack.c.h.b16 %v579
    %v1246 = vunpack.c.l.b16 %v580
    %v1247 = vunpack.c.h.b16 %v580
    %v1248 = vunpack.c.l.b16 %v581
    %v1249 = vunpack.c.h.b16 %v581
    %v1250 = vunpack.c.l.b16 %v582
    %v1251 = vunpack.c.h.b16 %v582
    %v1252 = vunpack.c.l.b16 %v583
    %v1253 = vunpack.c.h.b16 %v583
    %v1254 = vunpack.c.l.b16 %v584
    %v1255 = vunpack.c.h.b16 %v584
    %v1256 = vunpack.c.l.b16 %v585
    %v1257 = vunpack.c.h.b16 %v585
    %v1258 = vunpack.c.l.b16 %v586
    %v1259 = vunpack.c.h.b16 %v586
    %v1260 = vunpack.c.l.b16 %v587
    %v1261 = vunpack.c.h.b16 %v587
    %v1262 = vunpack.c.l.b16 %v588
    %v1263 = vunpack.c.h.b16 %v588
    %v1264 = vunpack.c.l.b16 %v589
    %v1265 = vunpack.c.h.b16 %v589
    %v1266 = vunpack.c.l.b16 %v590
    %v1267 = vunpack.c.h.b16 %v590
    %v1268 = vunpack.c.l.b16 %v591
    %v1269 = vunpack.c.h.b16 %v591
    %v1270 = vunpack.c.l.b16 %v592
    %v1271 = vunpack.c.h.b16 %v592
    %v1272 = vunpack.c.l.b16 %v593
    %v1273 = vunpack.c.h.b16 %v593
    %v1274 = vunpack.c.l.b16 %v594
    %v1275 = vunpack.c.h.b16 %v594
    %v1276 = vunpack.c.l.b16 %v595
    %v1277 = vunpack.c.h.b16 %v595
    %v1278 = vunpack.c.l.b16 %v596
    %v1279 = vunpack.c.h.b16 %v596
    %v1280 = vunpack.c.l.b16 %v597
    %v1281 = vunpack.c.h.b16 %v597
    %v1282 = vunpack.c.l.b16 %v598
    %v1283 = vunpack.c.h.b16 %v598
    %v1284 = vunpack.c.l.b16 %v599
    %v1285 = vunpack.c.h.b16 %v599
    %v1286 = vunpack.c.l.b16 %v600
    %v1287 = vunpack.c.h.b16 %v600
    %v1288 = vunpack.c.l.b16 %v601
    %v1289 = vunpack.c.h.b16 %v601
    %v1290 = vunpack.c.l.b16 %v602
    %v1291 = vunpack.c.h.b16 %v602
    %v1292 = vunpack.c.l.b16 %v603
    %v1293 = vunpack.c.h.b16 %v603
    %v1294 = vunpack.c.l.b16 %v604
    %v1295 = vunpack.c.h.b16 %v604
    %v1296 = vunpack.c.l.b16 %v605
    %v1297 = vunpack.c.h.b16 %v605
    %v1298 = vunpack.c.l.b16 %v606
    %v1299 = vunpack.c.h.b16 %v606
    %v1300 = vunpack.c.l.b16 %v607
    %v1301 = vunpack.c.h.b16 %v607
    %v1302 = vunpack.c.l.b16 %v608
    %v1303 = vunpack.c.h.b16 %v608
    %v1304 = vunpack.c.l.b16 %v609
    %v1305 = vunpack.c.h.b16 %v609
    %v1306 = vunpack.c.l.b16 %v610
    %v1307 = vunpack.c.h.b16 %v610
    %v1308 = vunpack.c.l.b16 %v611
    %v1309 = vunpack.c.h.b16 %v611
    %v1310 = vunpack.c.l.b16 %v612
    %v1311 = vunpack.c.h.b16 %v612
    %v1312 = vunpack.c.l.b16 %v613
    %v1313 = vunpack.c.h.b16 %v613
    %v1314 = vunpack.c.l.b16 %v614
    %v1315 = vunpack.c.h.b16 %v614
    %v1316 = vunpack.c.l.b16 %v615
    %v1317 = vunpack.c.h.b16 %v615
    %v1318 = vunpack.c.l.b16 %v616
    %v1319 = vunpack.c.h.b16 %v616
    %v1320 = vunpack.c.l.b16 %v617
    %v1321 = vunpack.c.h.b16 %v617
    %v1322 = vunpack.c.l.b16 %v618
    %v1323 = vunpack.c.h.b16 %v618
    %v1324 = vunpack.c.l.b16 %v619
    %v1325 = vunpack.c.h.b16 %v619
    %v1326 = vunpack.c.l.b16 %v620
    %v1327 = vunpack.c.h.b16 %v620
    %v1328 = vunpack.c.l.b16 %v621
    %v1329 = vunpack.c.h.b16 %v621
    %v1330 = vunpack.c.l.b16 %v622
    %v1331 = vunpack.c.h.b16 %v622
    %v1332 = vunpack.c.l.b16 %v623
    %v1333 = vunpack.c.h.b16 %v623
    %v1334 = vunpack.c.l.b16 %v624
    %v1335 = vunpack.c.h.b16 %v624
    %v1336 = vunpack.c.l.b16 %v625
    %v1337 = vunpack.c.h.b16 %v625
    %v1338 = vunpack.c.l.b16 %v626
    %v1339 = vunpack.c.h.b16 %v626
    %v1340 = vunpack.c.l.b16 %v627
    %v1341 = vunpack.c.h.b16 %v627
    %v1342 = vunpack.c.l.b16 %v628
    %v1343 = vunpack.c.h.b16 %v628
    %v1344 = vunpack.c.l.b16 %v629
    %v1345 = vunpack.c.h.b16 %v629
    %v1346 = vunpack.c.l.b16 %v630
    %v1347 = vunpack.c.h.b16 %v630
    %v1348 = vunpack.c.l.b16 %v631
    %v1349 = vunpack.c.h.b16 %v631
    %v1350 = vunpack.c.l.b16 %v632
    %v1351 = vunpack.c.h.b16 %v632
    %v1352 = vunpack.c.l.b16 %v633
    %v1353 = vunpack.c.h.b16 %v633
    %v1354 = vunpack.c.l.b16 %v634
    %v1355 = vunpack.c.h.b16 %v634
    %v1356 = vunpack.c.l.b16 %v635
    %v1357 = vunpack.c.h.b16 %v635
    %v1358 = vunpack.c.l.b16 %v636
    %v1359 = vunpack.c.h.b16 %v636
    %v1360 = vunpack.c.l.b16 %v637
    %v1361 = vunpack.c.h.b16 %v637
    %v1362 = vunpack.c.l.b16 %v638
    %v1363 = vunpack.c.h.b16 %v638
    %v1364 = vunpack.c.l.b16 %v639
    %v1365 = vunpack.c.h.b16 %v639
    %v1366 = vunpack.c.l.b16 %v640
    %v1367 = vunpack.c.h.b16 %v640
    %v1368 = vunpack.c.l.b16 %v641
    %v1369 = vunpack.c.h.b16 %v641
    %v1370 = vunpack.c.l.b16 %v642
    %v1371 = vunpack.c.h.b16 %v642
    %v1372 = vunpack.c.l.b16 %v643
    %v1373 = vunpack.c.h.b16 %v643
    %v1374 = vunpack.c.l.b16 %v644
    %v1375 = vunpack.c.h.b16 %v644
    %v1376 = vunpack.c.l.b16 %v645
    %v1377 = vunpack.c.h.b16 %v645
    %v1378 = vunpack.c.l.b16 %v646
    %v1379 = vunpack.c.h.b16 %v646
    %v1380 = vunpack.c.l.b16 %v647
    %v1381 = vunpack.c.h.b16 %v647
    %v1382 = vunpack.c.l.b16 %v648
    %v1383 = vunpack.c.h.b16 %v648
    %v1384 = vunpack.c.l.b16 %v649
    %v1385 = vunpack.c.h.b16 %v649
    %v1386 = vunpack.c.l.b16 %v650
    %v1387 = vunpack.c.h.b16 %v650
    %v1388 = vunpack.c.l.b16 %v651
    %v1389 = vunpack.c.h.b16 %v651
    %v1390 = vunpack.c.l.b16 %v652
    %v1391 = vunpack.c.h.b16 %v652
    %v1392 = vunpack.c.l.b16 %v653
    %v1393 = vunpack.c.h.b16 %v653
    %v1394 = vunpack.c.l.b16 %v654
    %v1395 = vunpack.c.h.b16 %v654
    %v1396 = vunpack.c.l.b16 %v655
    %v1397 = vunpack.c.h.b16 %v655
    %v1398 = vunpack.c.l.b16 %v656
    %v1399 = vunpack.c.h.b16 %v656
    %v1400 = vunpack.c.l.b16 %v657
    %v1401 = vunpack.c.h.b16 %v657
    %v1402 = vunpack.c.l.b16 %v658
    %v1403 = vunpack.c.h.b16 %v658
    %v1404 = vunpack.c.l.b16 %v659
    %v1405 = vunpack.c.h.b16 %v659
    %v1406 = vunpack.c.l.b16 %v660
    %v1407 = vunpack.c.h.b16 %v660
    %v1408 = vunpack.c.l.b16 %v661
    %v1409 = vunpack.c.h.b16 %v661
    %v1410 = vunpack.c.l.b16 %v662
    %v1411 = vunpack.c.h.b16 %v662
    %v1412 = vunpack.c.l.b16 %v663
    %v1413 = vunpack.c.h.b16 %v663
    %v1414 = vunpack.c.l.b16 %v664
    %v1415 = vunpack.c.h.b16 %v664
    %v1416 = vunpack.c.l.b16 %v665
    %v1417 = vunpack.c.h.b16 %v665
    %v1418 = vunpack.c.l.b16 %v666
    %v1419 = vunpack.c.h.b16 %v666
    %v1420 = vunpack.c.l.b16 %v667
    %v1421 = vunpack.c.h.b16 %v667
    %v1422 = vunpack.c.l.b16 %v668
    %v1423 = vunpack.c.h.b16 %v668
    %v1424 = vunpack.c.l.b16 %v669
    %v1425 = vunpack.c.h.b16 %v669
    %v1426 = vunpack.c.l.b16 %v670
    %v1427 = vunpack.c.h.b16 %v670
    %v1428 = vunpack.c.l.b16 %v671
    %v1429 = vunpack.c.h.b16 %v671
    %v1430 = vunpack.c.l.b16 %v672
    %v1431 = vunpack.c.h.b16 %v672
    %v1432 = vunpack.c.l.b16 %v673
    %v1433 = vunpack.c.h.b16 %v673
    %v1434 = vunpack.c.l.b16 %v674
    %v1435 = vunpack.c.h.b16 %v674
    %v1436 = vunpack.c.l.b16 %v675
    %v1437 = vunpack.c.h.b16 %v675
    %v1438 = vunpack.c.l.b16 %v676
    %v1439 = vunpack.c.h.b16 %v676
    %v1440 = vunpack.c.l.b16 %v677
    %v1441 = vunpack.c.h.b16 %v677
    %v1442 = vunpack.c.l.b16 %v678
    %v1443 = vunpack.c.h.b16 %v678
    %v1444 = vunpack.c.l.b16 %v679
    %v1445 = vunpack.c.h.b16 %v679
    %v1446 = vunpack.c.l.b16 %v680
    %v1447 = vunpack.c.h.b16 %v680
    %v1448 = vunpack.c.l.b16 %v681
    %v1449 = vunpack.c.h.b16 %v681
    %v1450 = vunpack.c.l.b16 %v682
    %v1451 = vunpack.c.h.b16 %v682
    %v1452 = vunpack.c.l.b16 %v683
    %v1453 = vunpack.c.h.b16 %v683
    %v1454 = vunpack.c.l.b16 %v684
    %v1455 = vunpack.c.h.b16 %v684
    %v1456 = vunpack.c.l.b16 %v685
    %v1457 = vunpack.c.h.b16 %v685
    %v1458 = vunpack.c.l.b16 %v686
    %v1459 = vunpack.c.h.b16 %v686
    %v1460 = vunpack.c.l.b16 %v687
    %v1461 = vunpack.c.h.b16 %v687
    %v1462 = vunpack.c.l.b16 %v688
    %v1463 = vunpack.c.h.b16 %v688
    %v1464 = vunpack.c.l.b16 %v689
    %v1465 = vunpack.c.h.b16 %v689
    %v1466 = vunpack.c.l.b16 %v690
    %v1467 = vunpack.c.h.b16 %v690
    %v1468 = vunpack.c.l.b16 %v691
    %v1469 = vunpack.c.h.b16 %v691
    %v1470 = vunpack.c.l.b16 %v692
    %v1471 = vunpack.c.h.b16 %v692
    %v1472 = vunpack.c.l.b16 %v693
    %v1473 = vunpack.c.h.b16 %v693
    %v1474 = vunpack.c.l.b16 %v694
    %v1475 = vunpack.c.h.b16 %v694
    %v1476 = vunpack.c.l.b16 %v695
    %v1477 = vunpack.c.h.b16 %v695
    %v1478 = vunpack.c.l.b16 %v696
    %v1479 = vunpack.c.h.b16 %v696
    %v1480 = vunpack.c.l.b16 %v697
    %v1481 = vunpack.c.h.b16 %v697
    %v1482 = vunpack.c.l.b16 %v698
    %v1483 = vunpack.c.h.b16 %v698
    %v1484 = vunpack.c.l.b16 %v699
    %v1485 = vunpack.c.h.b16 %v699
    %v1486 = vunpack.c.l.b16 %v700
    %v1487 = vunpack.c.h.b16 %v700
    %v1488 = vunpack.c.l.b16 %v701
    %v1489 = vunpack.c.h.b16 %v701
    %v1490 = vunpack.c.l.b16 %v702
    %v1491 = vunpack.c.h.b16 %v702
    %v1492 = vunpack.c.l.b16 %v703
    %v1493 = vunpack.c.h.b16 %v703
    %v1494 = vunpack.c.l.b16 %v704
    %v1495 = vunpack.c.h.b16 %v704
    %v1496 = vunpack.c.l.b16 %v705
    %v1497 = vunpack.c.h.b16 %v705
    %v1498 = vunpack.c.l.b16 %v706
    %v1499 = vunpack.c.h.b16 %v706
    %v1500 = vunpack.c.l.b16 %v707
    %v1501 = vunpack.c.h.b16 %v707
    %v1502 = vunpack.c.l.b16 %v708
    %v1503 = vunpack.c.h.b16 %v708
    %v1504 = vunpack.c.l.b16 %v709
    %v1505 = vunpack.c.h.b16 %v709
    %v1506 = vunpack.c.l.b16 %v710
    %v1507 = vunpack.c.h.b16 %v710
    %v1508 = vunpack.c.l.b16 %v711
    %v1509 = vunpack.c.h.b16 %v711
    %v1510 = vunpack.c.l.b16 %v712
    %v1511 = vunpack.c.h.b16 %v712
    %v1512 = vunpack.c.l.b16 %v713
    %v1513 = vunpack.c.h.b16 %v713
    %v1514 = vunpack.c.l.b16 %v714
    %v1515 = vunpack.c.h.b16 %v714
    %v1516 = vunpack.c.l.b16 %v715
    %v1517 = vunpack.c.h.b16 %v715
    %v1518 = vunpack.c.l.b16 %v716
    %v1519 = vunpack.c.h.b16 %v716
    %v1520 = vunpack.c.l.b16 %v717
    %v1521 = vunpack.c.h.b16 %v717
    %v1522 = vunpack.c.l.b16 %v718
    %v1523 = vunpack.c.h.b16 %v718
    %v1524 = vunpack.c.l.b16 %v719
    %v1525 = vunpack.c.h.b16 %v719
    %v1526 = vunpack.c.l.b16 %v720
    %v1527 = vunpack.c.h.b16 %v720
    %v1528 = vunpack.c.l.b16 %v721
    %v1529 = vunpack.c.h.b16 %v721
    %v1530 = vunpack.c.l.b16 %v722
    %v1531 = vunpack.c.h.b16 %v722
    %v1532 = vunpack.c.l.b16 %v723
    %v1533 = vunpack.c.h.b16 %v723
    %v1534 = vunpack.c.l.b16 %v724
    %v1535 = vunpack.c.h.b16 %v724
    %v1536 = vunpack.c.l.b16 %v725
    %v1537 = vunpack.c.h.b16 %v725
    %v1538 = vunpack.c.l.b16 %v726
    %v1539 = vunpack.c.h.b16 %v726
    %v1540 = vunpack.c.l.b16 %v727
    %v1541 = vunpack.c.h.b16 %v727
    %v1542 = vunpack.c.l.b16 %v728
    %v1543 = vunpack.c.h.b16 %v728
    %v1544 = vunpack.c.l.b16 %v729
    %v1545 = vunpack.c.h.b16 %v729
    %v1546 = vunpack.c.l.b16 %v730
    %v1547 = vunpack.c.h.b16 %v730
    %v1548 = vunpack.c.l.b16 %v731
    %v1549 = vunpack.c.h.b16 %v731
    %v1550 = vunpack.c.l.b16 %v732
    %v1551 = vunpack.c.h.b16 %v732
    %v1552 = vunpack.c.l.b16 %v733
    %v1553 = vunpack.c.h.b16 %v733
    %v1554 = vunpack.c.l.b16 %v734
    %v1555 = vunpack.c.h.b16 %v734
    %v1556 = vunpack.c.l.b16 %v735
    %v1557 = vunpack.c.h.b16 %v735
    %v1558 = vunpack.c.l.b16 %v736
    %v1559 = vunpack.c.h.b16 %v736
    %v1560 = vunpack.c.l.b16 %v737
    %v1561 = vunpack.c.h.b16 %v737
    %v1562 = vunpack.c.l.b16 %v738
    %v1563 = vunpack.c.h.b16 %v738
    %v1564 = vunpack.c.l.b16 %v739
    %v1565 = vunpack.c.h.b16 %v739
    %v1566 = vunpack.c.l.b16 %v740
    %v1567 = vunpack.c.h.b16 %v740
    %v1568 = vunpack.c.l.b16 %v741
    %v1569 = vunpack.c.h.b16 %v741
    %v1570 = vunpack.c.l.b16 %v742
    %v1571 = vunpack.c.h.b16 %v742
    %v1572 = vunpack.c.l.b16 %v743
    %v1573 = vunpack.c.h.b16 %v743
    %v1574 = vunpack.c.l.b16 %v744
    %v1575 = vunpack.c.h.b16 %v744
    %v1576 = vunpack.c.l.b16 %v745
    %v1577 = vunpack.c.h.b16 %v745
    %v1578 = vunpack.c.l.b16 %v746
    %v1579 = vunpack.c.h.b16 %v746
    %v1580 = vunpack.c.l.b16 %v747
    %v1581 = vunpack.c.h.b16 %v747
    %v1582 = vunpack.c.l.b16 %v748
    %v1583 = vunpack.c.h.b16 %v748
    %v1584 = vunpack.c.l.b16 %v749
    %v1585 = vunpack.c.h.b16 %v749
    %v1586 = vunpack.c.l.b16 %v750
    %v1587 = vunpack.c.h.b16 %v750
    %v1588 = vunpack.c.l.b16 %v751
    %v1589 = vunpack.c.h.b16 %v751
    %v1590 = vunpack.c.l.b16 %v752
    %v1591 = vunpack.c.h.b16 %v752
    %v1592 = vunpack.c.l.b16 %v753
    %v1593 = vunpack.c.h.b16 %v753
    %v1594 = vunpack.c.l.b16 %v754
    %v1595 = vunpack.c.h.b16 %v754
    %v1596 = vunpack.c.l.b16 %v755
    %v1597 = vunpack.c.h.b16 %v755
    %v1598 = vunpack.c.l.b16 %v756
    %v1599 = vunpack.c.h.b16 %v756
    %v1600 = vunpack.c.l.b16 %v757
    %v1601 = vunpack.c.h.b16 %v757
    %v1602 = vunpack.c.l.b16 %v758
    %v1603 = vunpack.c.h.b16 %v758
    %v1604 = vunpack.c.l.b16 %v759
    %v1605 = vunpack.c.h.b16 %v759
    %v1606 = vunpack.c.l.b16 %v760
    %v1607 = vunpack.c.h.b16 %v760
    %v1608 = vunpack.c.l.b16 %v761
    %v1609 = vunpack.c.h.b16 %v761
    %v1610 = vunpack.c.l.b16 %v762
    %v1611 = vunpack.c.h.b16 %v762
    %v1612 = vunpack.c.l.b16 %v763
    %v1613 = vunpack.c.h.b16 %v763
    %v1614 = vunpack.c.l.b16 %v764
    %v1615 = vunpack.c.h.b16 %v764
    %v1616 = vunpack.c.l.b16 %v765
    %v1617 = vunpack.c.h.b16 %v765
    %v1618 = vunpack.c.l.b16 %v766
    %v1619 = vunpack.c.h.b16 %v766
    %v1620 = vunpack.c.l.b16 %v767
    %v1621 = vunpack.c.h.b16 %v767
    %v1622 = vunpack.c.l.b16 %v768
    %v1623 = vunpack.c.h.b16 %v768
    %v1624 = vunpack.c.l.b16 %v769
    %v1625 = vunpack.c.h.b16 %v769
    %v1626 = vunpack.c.l.b16 %v770
    %v1627 = vunpack.c.h.b16 %v770
    %v1628 = vunpack.c.l.b16 %v771
    %v1629 = vunpack.c.h.b16 %v771
    %v1630 = vunpack.c.l.b16 %v772
    %v1631 = vunpack.c.h.b16 %v772
    %v1632 = vunpack.c.l.b16 %v773
    %v1633 = vunpack.c.h.b16 %v773
    %v1634 = vpack.c.b16 %v1076, %v1070
    %v1635 = vpack.c.b16 %v1077, %v1071
    %v1636 = vpack.c.b16 %v1078, %v1072
    %v1637 = vpack.c.b16 %v1079, %v1073
    %v1638 = vpack.c.b16 %v1080, %v1074
    %v1639 = vpack.c.b16 %v1081, %v1075
    %v1640 = vpack.c.b16 %v1088, %v1082
    %v1641 = vpack.c.b16 %v1089, %v1083
    %v1642 = vpack.c.b16 %v1090, %v1084
    %v1643 = vpack.c.b16 %v1091, %v1085
    %v1644 = vpack.c.b16 %v1092, %v1086
    %v1645 = vpack.c.b16 %v1093, %v1087
    %v1646 = vpack.c.b16 %v1100, %v1094
    %v1647 = vpack.c.b16 %v1101, %v1095
    %v1648 = vpack.c.b16 %v1102, %v1096
    %v1649 = vpack.c.b16 %v1103, %v1097
    %v1650 = vpack.c.b16 %v1104, %v1098
    %v1651 = vpack.c.b16 %v1105, %v1099
    %v1652 = vpack.c.b16 %v1112, %v1106
    %v1653 = vpack.c.b16 %v1113, %v1107
    %v1654 = vpack.c.b16 %v1114, %v1108
    %v1655 = vpack.c.b16 %v1115, %v1109
    %v1656 = vpack.c.b16 %v1116, %v1110
    %v1657 = vpack.c.b16 %v1117, %v1111
    %v1658 = vpack.c.b16 %v1124, %v1118
    %v1659 = vpack.c.b16 %v1125, %v1119
    %v1660 = vpack.c.b16 %v1126, %v1120
    %v1661 = vpack.c.b16 %v1127, %v1121
    %v1662 = vpack.c.b16 %v1128, %v1122
    %v1663 = vpack.c.b16 %v1129, %v1123
    %v1664 = vpack.c.b16 %v1136, %v1130
    %v1665 = vpack.c.b16 %v1137, %v1131
    %v1666 = vpack.c.b16 %v1138, %v1132
    %v1667 = vpack.c.b16 %v1139, %v1133
    %v1668 = vpack.c.b16 %v1140, %v1134
    %v1669 = vpack.c.b16 %v1141, %v1135
    %v1670 = vpack.c.b16 %v1148, %v1142
    %v1671 = vpack.c.b16 %v1149, %v1143
    %v1672 = vpack.c.b16 %v1150, %v1144
    %v1673 = vpack.c.b16 %v1151, %v1145
    %v1674 = vpack.c.b16 %v1152, %v1146
    %v1675 = vpack.c.b16 %v1153, %v1147
    %v1676 = vpack.c.b16 %v1160, %v1154
    %v1677 = vpack.c.b16 %v1161, %v1155
    %v1678 = vpack.c.b16 %v1162, %v1156
    %v1679 = vpack.c.b16 %v1163, %v1157
    %v1680 = vpack.c.b16 %v1164, %v1158
    %v1681 = vpack.c.b16 %v1165, %v1159
    %v1682 = vpack.c.b16 %v1172, %v1166
    %v1683 = vpack.c.b16 %v1173, %v1167
    %v1684 = vpack.c.b16 %v1174, %v1168
    %v1685 = vpack.c.b16 %v1175, %v1169
    %v1686 = vpack.c.b16 %v1176, %v1170
    %v1687 = vpack.c.b16 %v1177, %v1171
    %v1688 = vpack.c.b16 %v1184, %v1178
    %v1689 = vpack.c.b16 %v1185, %v1179
    %v1690 = vpack.c.b16 %v1186, %v1180
    %v1691 = vpack.c.b16 %v1187, %v1181
    %v1692 = vpack.c.b16 %v1188, %v1182
    %v1693 = vpack.c.b16 %v1189, %v1183
    %v1694 = vpack.c.b16 %v1196, %v1190
    %v1695 = vpack.c.b16 %v1197, %v1191
    %v1696 = vpack.c.b16 %v1198, %v1192
    %v1697 = vpack.c.b16 %v1199, %v1193
    %v1698 = vpack.c.b16 %v1200, %v1194
    %v1699 = vpack.c.b16 %v1201, %v1195
    %v1700 = vpack.c.b16 %v1208, %v1202
    %v1701 = vpack.c.b16 %v1209, %v1203
    %v1702 = vpack.c.b16 %v1210, %v1204
    %v1703 = vpack.c.b16 %v1211, %v1205
    %v1704 = vpack.c.b16 %v1212, %v1206
    %v1705 = vpack.c.b16 %v1213, %v1207
    %v1706 = vpack.c.b16 %v1220, %v1214
    %v1707 = vpack.c.b16 %v1221, %v1215
    %v1708 = vpack.c.b16 %v1222, %v1216
    %v1709 = vpack.c.b16 %v1223, %v1217
    %v1710 = vpack.c.b16 %v1224, %v1218
    %v1711 = vpack.c.b16 %v1225, %v1219
    %v1712 = vpack.c.b16 %v1232, %v1226
    %v1713 = vpack.c.b16 %v1233, %v1227
    %v1714 = vpack.c.b16 %v1234, %v1228
    %v1715 = vpack.c.b16 %v1235, %v1229
    %v1716 = vpack.c.b16 %v1236, %v1230
    %v1717 = vpack.c.b16 %v1237, %v1231
    %v1718 = vpack.c.b16 %v1244, %v1238
    %v1719 = vpack.c.b16 %v1245, %v1239
    %v1720 = vpack.c.b16 %v1246, %v1240
    %v1721 = vpack.c.b16 %v1247, %v1241
    %v1722 = vpack.c.b16 %v1248, %v1242
    %v1723 = vpack.c.b16 %v1249, %v1243
    %v1724 = vpack.c.b16 %v1256, %v1250
    %v1725 = vpack.c.b16 %v1257, %v1251
    %v1726 = vpack.c.b16 %v1258, %v1252
    %v1727 = vpack.c.b16 %v1259, %v1253
    %v1728 = vpack.c.b16 %v1260, %v1254
    %v1729 = vpack.c.b16 %v1261, %v1255
    %v1730 = vpack.c.b16 %v1268, %v1262
    %v1731 = vpack.c.b16 %v1269, %v1263
    %v1732 = vpack.c.b16 %v1270, %v1264
    %v1733 = vpack.c.b16 %v1271, %v1265
    %v1734 = vpack.c.b16 %v1272, %v1266
    %v1735 = vpack.c.b16 %v1273, %v1267
    %v1736 = vpack.c.b16 %v1280, %v1274
    %v1737 = vpack.c.b16 %v1281, %v1275
    %v1738 = vpack.c.b16 %v1282, %v1276
    %v1739 = vpack.c.b16 %v1283, %v1277
    %v1740 = vpack.c.b16 %v1284, %v1278
    %v1741 = vpack.c.b16 %v1285, %v1279
    %v1742 = vpack.c.b16 %v1292, %v1286
    %v1743 = vpack.c.b16 %v1293, %v1287
    %v1744 = vpack.c.b16 %v1294, %v1288
    %v1745 = vpack.c.b16 %v1295, %v1289
    %v1746 = vpack.c.b16 %v1296, %v1290
    %v1747 = vpack.c.b16 %v1297, %v1291
    %v1748 = vpack.c.b16 %v1304, %v1298
    %v1749 = vpack.c.b16 %v1305, %v1299
    %v1750 = vpack.c.b16 %v1306, %v1300
    %v1751 = vpack.c.b16 %v1307, %v1301
    %v1752 = vpack.c.b16 %v1308, %v1302
    %v1753 = vpack.c.b16 %v1309, %v1303
    %v1754 = vpack.c.b16 %v1316, %v1310
    %v1755 = vpack.c.b16 %v1317, %v1311
    %v1756 = vpack.c.b16 %v1318, %v1312
    %v1757 = vpack.c.b16 %v1319, %v1313
    %v1758 = vpack.c.b16 %v1320, %v1314
    %v1759 = vpack.c.b16 %v1321, %v1315
    %v1760 = vpack.c.b16 %v1328, %v1322
    %v1761 = vpack.c.b16 %v1329, %v1323
    %v1762 = vpack.c.b16 %v1330, %v1324
    %v1763 = vpack.c.b16 %v1331, %v1325
    %v1764 = vpack.c.b16 %v1332, %v1326
    %v1765 = vpack.c.b16 %v1333, %v1327
    %v1766 = vpack.c.b16 %v1340, %v1334
    %v1767 = vpack.c.b16 %v1341, %v1335
    %v1768 = vpack.c.b16 %v1342, %v1336
    %v1769 = vpack.c.b16 %v1343, %v1337
    %v1770 = vpack.c.b16 %v1344, %v1338
    %v1771 = vpack.c.b16 %v1345, %v1339
    %v1772 = vpack.c.b16 %v1352, %v1346
    %v1773 = vpack.c.b16 %v1353, %v1347
    %v1774 = vpack.c.b16 %v1354, %v1348
    %v1775 = vpack.c.b16 %v1355, %v1349
    %v1776 = vpack.c.b16 %v1356, %v1350
    %v1777 = vpack.c.b16 %v1357, %v1351
    %v1778 = vpack.c.b16 %v1364, %v1358
    %v1779 = vpack.c.b16 %v1365, %v1359
    %v1780 = vpack.c.b16 %v1366, %v1360
    %v1781 = vpack.c.b16 %v1367, %v1361
    %v1782 = vpack.c.b16 %v1368, %v1362
    %v1783 = vpack.c.b16 %v1369, %v1363
    %v1784 = vpack.c.b16 %v1376, %v1370
    %v1785 = vpack.c.b16 %v1377, %v1371
    %v1786 = vpack.c.b16 %v1378, %v1372
    %v1787 = vpack.c.b16 %v1379, %v1373
    %v1788 = vpack.c.b16 %v1380, %v1374
    %v1789 = vpack.c.b16 %v1381, %v1375
    %v1790 = vpack.c.b16 %v1388, %v1382
    %v1791 = vpack.c.b16 %v1389, %v1383
    %v1792 = vpack.c.b16 %v1390, %v1384
    %v1793 = vpack.c.b16 %v1391, %v1385
    %v1794 = vpack.c.b16 %v1392, %v1386
    %v1795 = vpack.c.b16 %v1393, %v1387
    %v1796 = vpack.c.b16 %v1400, %v1394
    %v1797 = vpack.c.b16 %v1401, %v1395
    %v1798 = vpack.c.b16 %v1402, %v1396
    %v1799 = vpack.c.b16 %v1403, %v1397
    %v1800 = vpack.c.b16 %v1404, %v1398
    %v1801 = vpack.c.b16 %v1405, %v1399
    %v1802 = vpack.c.b16 %v1412, %v1406
    %v1803 = vpack.c.b16 %v1413, %v1407
    %v1804 = vpack.c.b16 %v1414, %v1408
    %v1805 = vpack.c.b16 %v1415, %v1409
    %v1806 = vpack.c.b16 %v1416, %v1410
    %v1807 = vpack.c.b16 %v1417, %v1411
    %v1808 = vpack.c.b16 %v1424, %v1418
    %v1809 = vpack.c.b16 %v1425, %v1419
    %v1810 = vpack.c.b16 %v1426, %v1420
    %v1811 = vpack.c.b16 %v1427, %v1421
    %v1812 = vpack.c.b16 %v1428, %v1422
    %v1813 = vpack.c.b16 %v1429, %v1423
    %v1814 = vpack.c.b16 %v1436, %v1430
    %v1815 = vpack.c.b16 %v1437, %v1431
    %v1816 = vpack.c.b16 %v1438, %v1432
    %v1817 = vpack.c.b16 %v1439, %v1433
    %v1818 = vpack.c.b16 %v1440, %v1434
    %v1819 = vpack.c.b16 %v1441, %v1435
    %v1820 = vpack.c.b16 %v1448, %v1442
    %v1821 = vpack.c.b16 %v1449, %v1443
    %v1822 = vpack.c.b16 %v1450, %v1444
    %v1823 = vpack.c.b16 %v1451, %v1445
    %v1824 = vpack.c.b16 %v1452, %v1446
    %v1825 = vpack.c.b16 %v1453, %v1447
    %v1826 = vpack.c.b16 %v1460, %v1454
    %v1827 = vpack.c.b16 %v1461, %v1455
    %v1828 = vpack.c.b16 %v1462, %v1456
    %v1829 = vpack.c.b16 %v1463, %v1457
    %v1830 = vpack.c.b16 %v1464, %v1458
    %v1831 = vpack.c.b16 %v1465, %v1459
    %v1832 = vpack.c.b16 %v1472, %v1466
    %v1833 = vpack.c.b16 %v1473, %v1467
    %v1834 = vpack.c.b16 %v1474, %v1468
    %v1835 = vpack.c.b16 %v1475, %v1469
    %v1836 = vpack.c.b16 %v1476, %v1470
    %v1837 = vpack.c.b16 %v1477, %v1471
    %v1838 = vpack.c.b16 %v1484, %v1478
    %v1839 = vpack.c.b16 %v1485, %v1479
    %v1840 = vpack.c.b16 %v1486, %v1480
    %v1841 = vpack.c.b16 %v1487, %v1481
    %v1842 = vpack.c.b16 %v1488, %v1482
    %v1843 = vpack.c.b16 %v1489, %v1483
    %v1844 = vpack.c.b16 %v1496, %v1490
    %v1845 = vpack.c.b16 %v1497, %v1491
    %v1846 = vpack.c.b16 %v1498, %v1492
    %v1847 = vpack.c.b16 %v1499, %v1493
    %v1848 = vpack.c.b16 %v1500, %v1494
    %v1849 = vpack.c.b16 %v1501, %v1495
    %v1850 = vpack.c.b16 %v1508, %v1502
    %v1851 = vpack.c.b16 %v1509, %v1503
    %v1852 = vpack.c.b16 %v1510, %v1504
    %v1853 = vpack.c.b16 %v1511, %v1505
    %v1854 = vpack.c.b16 %v1512, %v1506
    %v1855 = vpack.c.b16 %v1513, %v1507
    %v1856 = vpack.c.b16 %v1520, %v1514
    %v1857 = vpack.c.b16 %v1521, %v1515
    %v1858 = vpack.c.b16 %v1522, %v1516
    %v1859 = vpack.c.b16 %v1523, %v1517
    %v1860 = vpack.c.b16 %v1524, %v1518
    %v1861 = vpack.c.b16 %v1525, %v1519
    %v1862 = vpack.c.b16 %v1532, %v1526
    %v1863 = vpack.c.b16 %v1533, %v1527
    %v1864 = vpack.c.b16 %v1534, %v1528
    %v1865 = vpack.c.b16 %v1535, %v1529
    %v1866 = vpack.c.b16 %v1536, %v1530
    %v1867 = vpack.c.b16 %v1537, %v1531
    %v1868 = vpack.c.b16 %v1544, %v1538
    %v1869 = vpack.c.b16 %v1545, %v1539
    %v1870 = vpack.c.b16 %v1546, %v1540
    %v1871 = vpack.c.b16 %v1547, %v1541
    %v1872 = vpack.c.b16 %v1548, %v1542
    %v1873 = vpack.c.b16 %v1549, %v1543
    %v1874 = vpack.c.b16 %v1556, %v1550
    %v1875 = vpack.c.b16 %v1557, %v1551
    %v1876 = vpack.c.b16 %v1558, %v1552
    %v1877 = vpack.c.b16 %v1559, %v1553
    %v1878 = vpack.c.b16 %v1560, %v1554
    %v1879 = vpack.c.b16 %v1561, %v1555
    %v1880 = vpack.c.b16 %v1568, %v1562
    %v1881 = vpack.c.b16 %v1569, %v1563
    %v1882 = vpack.c.b16 %v1570, %v1564
    %v1883 = vpack.c.b16 %v1571, %v1565
    %v1884 = vpack.c.b16 %v1572, %v1566
    %v1885 = vpack.c.b16 %v1573, %v1567
    %v1886 = vpack.c.b16 %v1580, %v1574
    %v1887 = vpack.c.b16 %v1581, %v1575
    %v1888 = vpack.c.b16 %v1582, %v1576
    %v1889 = vpack.c.b16 %v1583, %v1577
    %v1890 = vpack.c.b16 %v1584, %v1578
    %v1891 = vpack.c.b16 %v1585, %v1579
    %v1892 = vpack.c.b16 %v1592, %v1586
    %v1893 = vpack.c.b16 %v1593, %v1587
    %v1894 = vpack.c.b16 %v1594, %v1588
    %v1895 = vpack.c.b16 %v1595, %v1589
    %v1896 = vpack.c.b16 %v1596, %v1590
    %v1897 = vpack.c.b16 %v1597, %v1591
    %v1898 = vpack.c.b16 %v1604, %v1598
    %v1899 = vpack.c.b16 %v1605, %v1599
    %v1900 = vpack.c.b16 %v1606, %v1600
    %v1901 = vpack.c.b16 %v1607, %v1601
    %v1902 = vpack.c.b16 %v1608, %v1602
    %v1903 = vpack.c.b16 %v1609, %v1603
    %v1904 = vpack.c.b16 %v1616, %v1610
    %v1905 = vpack.c.b16 %v1617, %v1611
    %v1906 = vpack.c.b16 %v1618, %v1612
    %v1907 = vpack.c.b16 %v1619, %v1613
    %v1908 = vpack.c.b16 %v1620, %v1614
    %v1909 = vpack.c.b16 %v1621, %v1615
    %v1910 = vpack.c.b16 %v1628, %v1622
    %v1911 = vpack.c.b16 %v1629, %v1623
    %v1912 = vpack.c.b16 %v1630, %v1624
    %v1913 = vpack.c.b16 %v1631, %v1625
    %v1914 = vpack.c.b16 %v1632, %v1626
    %v1915 = vpack.c.b16 %v1633, %v1627
    %vm2192 = vcmask 900096
    %v2194 = vsel %vm2192, %v491, 0
    %vm2196 = vcmask 1046528
    %v2198 = vsel %vm2196, %v1910, 0
    %v2201 = vsel %vm2196, %v1911, 0
    %v2204 = vsel %vm2196, %v1912, 0
    %v2207 = vsel %vm2196, %v1913, 0
    %v2210 = vsel %vm2196, %v1914, 0
    %v2213 = vsel %vm2196, %v1915, 0
    %2215 = vmatpush.bf16.msra.mxu0 %v1676
    %2216 = vmatpush.bf16.msra.mxu0 %v1670
    %2217 = vmatpush.bf16.msra.mxu0 %v1664
    %2218 = vmatpush.bf16.msra.mxu0 %v1658
    %2219 = vmatpush.bf16.msra.mxu0 %v1652
    %2220 = vmatpush.bf16.msra.mxu0 %v1646
    %2221 = vmatpush.bf16.msra.mxu0 %v1640
    %2222 = vmatpush.bf16.msra.mxu0 %v1634
    %2223 = vmatmul.bf16.gmra.mxu0 %v486
    %v2224 = vpop.f32.mrf.mxu0
    %v2225 = vadd.f32 %v776, %v2224
    %v2226 = vpop.f32.mrf.mxu0
    %2227 = vdwg.mxu0
    %2228 = vmatpush.bf16.msra.mxu0 %v1724
    %2229 = vmatpush.bf16.msra.mxu0 %v1718
    %2230 = vmatpush.bf16.msra.mxu0 %v1712
    %2231 = vmatpush.bf16.msra.mxu0 %v1706
    %2232 = vmatpush.bf16.msra.mxu0 %v1700
    %2233 = vmatpush.bf16.msra.mxu0 %v1694
    %2234 = vmatpush.bf16.msra.mxu0 %v1688
    %2235 = vmatpush.bf16.msra.mxu0 %v1682
    %2236 = vmatmul.bf16.gmra.mxu0 %v487
    %v2237 = vpop.f32.mrf.mxu0
    %v2238 = vadd.f32 %v2225, %v2237
    %v2239 = vpop.f32.mrf.mxu0
    %2240 = vdwg.mxu0
    %2241 = vmatpush.bf16.msra.mxu0 %v1772
    %2242 = vmatpush.bf16.msra.mxu0 %v1766
    %2243 = vmatpush.bf16.msra.mxu0 %v1760
    %2244 = vmatpush.bf16.msra.mxu0 %v1754
    %2245 = vmatpush.bf16.msra.mxu0 %v1748
    %2246 = vmatpush.bf16.msra.mxu0 %v1742
    %2247 = vmatpush.bf16.msra.mxu0 %v1736
    %2248 = vmatpush.bf16.msra.mxu0 %v1730
    %2249 = vmatmul.bf16.gmra.mxu0 %v488
    %v2250 = vpop.f32.mrf.mxu0
    %v2251 = vadd.f32 %v2238, %v2250
    %v2252 = vpop.f32.mrf.mxu0
    %2253 = vdwg.mxu0
    %2254 = vmatpush.bf16.msra.mxu0 %v1820
    %2255 = vmatpush.bf16.msra.mxu0 %v1814
    %2256 = vmatpush.bf16.msra.mxu0 %v1808
    %2257 = vmatpush.bf16.msra.mxu0 %v1802
    %2258 = vmatpush.bf16.msra.mxu0 %v1796
    %2259 = vmatpush.bf16.msra.mxu0 %v1790
    %2260 = vmatpush.bf16.msra.mxu0 %v1784
    %2261 = vmatpush.bf16.msra.mxu0 %v1778
    %2262 = vmatmul.bf16.gmra.mxu0 %v489
    %v2263 = vpop.f32.mrf.mxu0
    %v2264 = vadd.f32 %v2251, %v2263
    %v2265 = vpop.f32.mrf.mxu0
    %2266 = vdwg.mxu0
    %2267 = vmatpush.bf16.msra.mxu0 %v1868
    %2268 = vmatpush.bf16.msra.mxu0 %v1862
    %2269 = vmatpush.bf16.msra.mxu0 %v1856
    %2270 = vmatpush.bf16.msra.mxu0 %v1850
    %2271 = vmatpush.bf16.msra.mxu0 %v1844
    %2272 = vmatpush.bf16.msra.mxu0 %v1838
    %2273 = vmatpush.bf16.msra.mxu0 %v1832
    %2274 = vmatpush.bf16.msra.mxu0 %v1826
    %2275 = vmatmul.bf16.gmra.mxu0 %v490
    %v2276 = vpop.f32.mrf.mxu0
    %v2277 = vadd.f32 %v2264, %v2276
    %v2278 = vpop.f32.mrf.mxu0
    %2279 = vdwg.mxu0
    %2280 = vmatpush.bf16.msra.mxu0 0
    %2281 = vmatpush.bf16.msra.mxu0 %v2198
    %2282 = vmatpush.bf16.msra.mxu0 %v1904
    %2283 = vmatpush.bf16.msra.mxu0 %v1898
    %2284 = vmatpush.bf16.msra.mxu0 %v1892
    %2285 = vmatpush.bf16.msra.mxu0 %v1886
    %2286 = vmatpush.bf16.msra.mxu0 %v1880
    %2287 = vmatpush.bf16.msra.mxu0 %v1874
    %2288 = vmatmul.bf16.gmra.mxu0 %v2194
    %v2289 = vpop.f32.mrf.mxu0
    %v2290 = vadd.f32 %v2277, %v2289
    %v2291 = vpop.f32.mrf.mxu0
    %2292 = vdwg.mxu0
    %2293 = vmatpush.bf16.msra.mxu0 %v1677
    %2294 = vmatpush.bf16.msra.mxu0 %v1671
    %2295 = vmatpush.bf16.msra.mxu0 %v1665
    %2296 = vmatpush.bf16.msra.mxu0 %v1659
    %2297 = vmatpush.bf16.msra.mxu0 %v1653
    %2298 = vmatpush.bf16.msra.mxu0 %v1647
    %2299 = vmatpush.bf16.msra.mxu0 %v1641
    %2300 = vmatpush.bf16.msra.mxu0 %v1635
    %2301 = vmatmul.bf16.gmra.mxu0 %v486
    %v2302 = vpop.f32.mrf.mxu0
    %v2303 = vadd.f32 %v777, %v2302
    %v2304 = vpop.f32.mrf.mxu0
    %2305 = vdwg.mxu0
    %2306 = vmatpush.bf16.msra.mxu0 %v1725
    %2307 = vmatpush.bf16.msra.mxu0 %v1719
    %2308 = vmatpush.bf16.msra.mxu0 %v1713
    %2309 = vmatpush.bf16.msra.mxu0 %v1707
    %2310 = vmatpush.bf16.msra.mxu0 %v1701
    %2311 = vmatpush.bf16.msra.mxu0 %v1695
    %2312 = vmatpush.bf16.msra.mxu0 %v1689
    %2313 = vmatpush.bf16.msra.mxu0 %v1683
    %2314 = vmatmul.bf16.gmra.mxu0 %v487
    %v2315 = vpop.f32.mrf.mxu0
    %v2316 = vadd.f32 %v2303, %v2315
    %v2317 = vpop.f32.mrf.mxu0
    %2318 = vdwg.mxu0
    %2319 = vmatpush.bf16.msra.mxu0 %v1773
    %2320 = vmatpush.bf16.msra.mxu0 %v1767
    %2321 = vmatpush.bf16.msra.mxu0 %v1761
    %2322 = vmatpush.bf16.msra.mxu0 %v1755
    %2323 = vmatpush.bf16.msra.mxu0 %v1749
    %2324 = vmatpush.bf16.msra.mxu0 %v1743
    %2325 = vmatpush.bf16.msra.mxu0 %v1737
    %2326 = vmatpush.bf16.msra.mxu0 %v1731
    %2327 = vmatmul.bf16.gmra.mxu0 %v488
    %v2328 = vpop.f32.mrf.mxu0
    %v2329 = vadd.f32 %v2316, %v2328
    %v2330 = vpop.f32.mrf.mxu0
    %2331 = vdwg.mxu0
    %2332 = vmatpush.bf16.msra.mxu0 %v1821
    %2333 = vmatpush.bf16.msra.mxu0 %v1815
    %2334 = vmatpush.bf16.msra.mxu0 %v1809
    %2335 = vmatpush.bf16.msra.mxu0 %v1803
    %2336 = vmatpush.bf16.msra.mxu0 %v1797
    %2337 = vmatpush.bf16.msra.mxu0 %v1791
    %2338 = vmatpush.bf16.msra.mxu0 %v1785
    %2339 = vmatpush.bf16.msra.mxu0 %v1779
    %2340 = vmatmul.bf16.gmra.mxu0 %v489
    %v2341 = vpop.f32.mrf.mxu0
    %v2342 = vadd.f32 %v2329, %v2341
    %v2343 = vpop.f32.mrf.mxu0
    %2344 = vdwg.mxu0
    %2345 = vmatpush.bf16.msra.mxu0 %v1869
    %2346 = vmatpush.bf16.msra.mxu0 %v1863
    %2347 = vmatpush.bf16.msra.mxu0 %v1857
    %2348 = vmatpush.bf16.msra.mxu0 %v1851
    %2349 = vmatpush.bf16.msra.mxu0 %v1845
    %2350 = vmatpush.bf16.msra.mxu0 %v1839
    %2351 = vmatpush.bf16.msra.mxu0 %v1833
    %2352 = vmatpush.bf16.msra.mxu0 %v1827
    %2353 = vmatmul.bf16.gmra.mxu0 %v490
    %v2354 = vpop.f32.mrf.mxu0
    %v2355 = vadd.f32 %v2342, %v2354
    %v2356 = vpop.f32.mrf.mxu0
    %2357 = vdwg.mxu0
    %2358 = vmatpush.bf16.msra.mxu0 0
    %2359 = vmatpush.bf16.msra.mxu0 %v2201
    %2360 = vmatpush.bf16.msra.mxu0 %v1905
    %2361 = vmatpush.bf16.msra.mxu0 %v1899
    %2362 = vmatpush.bf16.msra.mxu0 %v1893
    %2363 = vmatpush.bf16.msra.mxu0 %v1887
    %2364 = vmatpush.bf16.msra.mxu0 %v1881
    %2365 = vmatpush.bf16.msra.mxu0 %v1875
    %2366 = vmatmul.bf16.gmra.mxu0 %v2194
    %v2367 = vpop.f32.mrf.mxu0
    %v2368 = vadd.f32 %v2355, %v2367
    %v2369 = vpop.f32.mrf.mxu0
    %2370 = vdwg.mxu0
    %2371 = vmatpush.bf16.msra.mxu0 %v1678
    %2372 = vmatpush.bf16.msra.mxu0 %v1672
    %2373 = vmatpush.bf16.msra.mxu0 %v1666
    %2374 = vmatpush.bf16.msra.mxu0 %v1660
    %2375 = vmatpush.bf16.msra.mxu0 %v1654
    %2376 = vmatpush.bf16.msra.mxu0 %v1648
    %2377 = vmatpush.bf16.msra.mxu0 %v1642
    %2378 = vmatpush.bf16.msra.mxu0 %v1636
    %2379 = vmatmul.bf16.gmra.mxu0 %v486
    %v2380 = vpop.f32.mrf.mxu0
    %v2381 = vadd.f32 %v778, %v2380
    %v2382 = vpop.f32.mrf.mxu0
    %2383 = vdwg.mxu0
    %2384 = vmatpush.bf16.msra.mxu0 %v1726
    %2385 = vmatpush.bf16.msra.mxu0 %v1720
    %2386 = vmatpush.bf16.msra.mxu0 %v1714
    %2387 = vmatpush.bf16.msra.mxu0 %v1708
    %2388 = vmatpush.bf16.msra.mxu0 %v1702
    %2389 = vmatpush.bf16.msra.mxu0 %v1696
    %2390 = vmatpush.bf16.msra.mxu0 %v1690
    %2391 = vmatpush.bf16.msra.mxu0 %v1684
    %2392 = vmatmul.bf16.gmra.mxu0 %v487
    %v2393 = vpop.f32.mrf.mxu0
    %v2394 = vadd.f32 %v2381, %v2393
    %v2395 = vpop.f32.mrf.mxu0
    %2396 = vdwg.mxu0
    %2397 = vmatpush.bf16.msra.mxu0 %v1774
    %2398 = vmatpush.bf16.msra.mxu0 %v1768
    %2399 = vmatpush.bf16.msra.mxu0 %v1762
    %2400 = vmatpush.bf16.msra.mxu0 %v1756
    %2401 = vmatpush.bf16.msra.mxu0 %v1750
    %2402 = vmatpush.bf16.msra.mxu0 %v1744
    %2403 = vmatpush.bf16.msra.mxu0 %v1738
    %2404 = vmatpush.bf16.msra.mxu0 %v1732
    %2405 = vmatmul.bf16.gmra.mxu0 %v488
    %v2406 = vpop.f32.mrf.mxu0
    %v2407 = vadd.f32 %v2394, %v2406
    %v2408 = vpop.f32.mrf.mxu0
    %2409 = vdwg.mxu0
    %2410 = vmatpush.bf16.msra.mxu0 %v1822
    %2411 = vmatpush.bf16.msra.mxu0 %v1816
    %2412 = vmatpush.bf16.msra.mxu0 %v1810
    %2413 = vmatpush.bf16.msra.mxu0 %v1804
    %2414 = vmatpush.bf16.msra.mxu0 %v1798
    %2415 = vmatpush.bf16.msra.mxu0 %v1792
    %2416 = vmatpush.bf16.msra.mxu0 %v1786
    %2417 = vmatpush.bf16.msra.mxu0 %v1780
    %2418 = vmatmul.bf16.gmra.mxu0 %v489
    %v2419 = vpop.f32.mrf.mxu0
    %v2420 = vadd.f32 %v2407, %v2419
    %v2421 = vpop.f32.mrf.mxu0
    %2422 = vdwg.mxu0
    %2423 = vmatpush.bf16.msra.mxu0 %v1870
    %2424 = vmatpush.bf16.msra.mxu0 %v1864
    %2425 = vmatpush.bf16.msra.mxu0 %v1858
    %2426 = vmatpush.bf16.msra.mxu0 %v1852
    %2427 = vmatpush.bf16.msra.mxu0 %v1846
    %2428 = vmatpush.bf16.msra.mxu0 %v1840
    %2429 = vmatpush.bf16.msra.mxu0 %v1834
    %2430 = vmatpush.bf16.msra.mxu0 %v1828
    %2431 = vmatmul.bf16.gmra.mxu0 %v490
    %v2432 = vpop.f32.mrf.mxu0
    %v2433 = vadd.f32 %v2420, %v2432
    %v2434 = vpop.f32.mrf.mxu0
    %2435 = vdwg.mxu0
    %2436 = vmatpush.bf16.msra.mxu0 0
    %2437 = vmatpush.bf16.msra.mxu0 %v2204
    %2438 = vmatpush.bf16.msra.mxu0 %v1906
    %2439 = vmatpush.bf16.msra.mxu0 %v1900
    %2440 = vmatpush.bf16.msra.mxu0 %v1894
    %2441 = vmatpush.bf16.msra.mxu0 %v1888
    %2442 = vmatpush.bf16.msra.mxu0 %v1882
    %2443 = vmatpush.bf16.msra.mxu0 %v1876
    %2444 = vmatmul.bf16.gmra.mxu0 %v2194
    %v2445 = vpop.f32.mrf.mxu0
    %v2446 = vadd.f32 %v2433, %v2445
    %v2447 = vpop.f32.mrf.mxu0
    %2448 = vdwg.mxu0
    %2449 = vmatpush.bf16.msra.mxu0 %v1679
    %2450 = vmatpush.bf16.msra.mxu0 %v1673
    %2451 = vmatpush.bf16.msra.mxu0 %v1667
    %2452 = vmatpush.bf16.msra.mxu0 %v1661
    %2453 = vmatpush.bf16.msra.mxu0 %v1655
    %2454 = vmatpush.bf16.msra.mxu0 %v1649
    %2455 = vmatpush.bf16.msra.mxu0 %v1643
    %2456 = vmatpush.bf16.msra.mxu0 %v1637
    %2457 = vmatmul.bf16.gmra.mxu0 %v486
    %v2458 = vpop.f32.mrf.mxu0
    %v2459 = vadd.f32 %v779, %v2458
    %v2460 = vpop.f32.mrf.mxu0
    %2461 = vdwg.mxu0
    %2462 = vmatpush.bf16.msra.mxu0 %v1727
    %2463 = vmatpush.bf16.msra.mxu0 %v1721
    %2464 = vmatpush.bf16.msra.mxu0 %v1715
    %2465 = vmatpush.bf16.msra.mxu0 %v1709
    %2466 = vmatpush.bf16.msra.mxu0 %v1703
    %2467 = vmatpush.bf16.msra.mxu0 %v1697
    %2468 = vmatpush.bf16.msra.mxu0 %v1691
    %2469 = vmatpush.bf16.msra.mxu0 %v1685
    %2470 = vmatmul.bf16.gmra.mxu0 %v487
    %v2471 = vpop.f32.mrf.mxu0
    %v2472 = vadd.f32 %v2459, %v2471
    %v2473 = vpop.f32.mrf.mxu0
    %2474 = vdwg.mxu0
    %2475 = vmatpush.bf16.msra.mxu0 %v1775
    %2476 = vmatpush.bf16.msra.mxu0 %v1769
    %2477 = vmatpush.bf16.msra.mxu0 %v1763
    %2478 = vmatpush.bf16.msra.mxu0 %v1757
    %2479 = vmatpush.bf16.msra.mxu0 %v1751
    %2480 = vmatpush.bf16.msra.mxu0 %v1745
    %2481 = vmatpush.bf16.msra.mxu0 %v1739
    %2482 = vmatpush.bf16.msra.mxu0 %v1733
    %2483 = vmatmul.bf16.gmra.mxu0 %v488
    %v2484 = vpop.f32.mrf.mxu0
    %v2485 = vadd.f32 %v2472, %v2484
    %v2486 = vpop.f32.mrf.mxu0
    %2487 = vdwg.mxu0
    %2488 = vmatpush.bf16.msra.mxu0 %v1823
    %2489 = vmatpush.bf16.msra.mxu0 %v1817
    %2490 = vmatpush.bf16.msra.mxu0 %v1811
    %2491 = vmatpush.bf16.msra.mxu0 %v1805
    %2492 = vmatpush.bf16.msra.mxu0 %v1799
    %2493 = vmatpush.bf16.msra.mxu0 %v1793
    %2494 = vmatpush.bf16.msra.mxu0 %v1787
    %2495 = vmatpush.bf16.msra.mxu0 %v1781
    %2496 = vmatmul.bf16.gmra.mxu0 %v489
    %v2497 = vpop.f32.mrf.mxu0
    %v2498 = vadd.f32 %v2485, %v2497
    %v2499 = vpop.f32.mrf.mxu0
    %2500 = vdwg.mxu0
    %2501 = vmatpush.bf16.msra.mxu0 %v1871
    %2502 = vmatpush.bf16.msra.mxu0 %v1865
    %2503 = vmatpush.bf16.msra.mxu0 %v1859
    %2504 = vmatpush.bf16.msra.mxu0 %v1853
    %2505 = vmatpush.bf16.msra.mxu0 %v1847
    %2506 = vmatpush.bf16.msra.mxu0 %v1841
    %2507 = vmatpush.bf16.msra.mxu0 %v1835
    %2508 = vmatpush.bf16.msra.mxu0 %v1829
    %2509 = vmatmul.bf16.gmra.mxu0 %v490
    %v2510 = vpop.f32.mrf.mxu0
    %v2511 = vadd.f32 %v2498, %v2510
    %v2512 = vpop.f32.mrf.mxu0
    %2513 = vdwg.mxu0
    %2514 = vmatpush.bf16.msra.mxu0 0
    %2515 = vmatpush.bf16.msra.mxu0 %v2207
    %2516 = vmatpush.bf16.msra.mxu0 %v1907
    %2517 = vmatpush.bf16.msra.mxu0 %v1901
    %2518 = vmatpush.bf16.msra.mxu0 %v1895
    %2519 = vmatpush.bf16.msra.mxu0 %v1889
    %2520 = vmatpush.bf16.msra.mxu0 %v1883
    %2521 = vmatpush.bf16.msra.mxu0 %v1877
    %2522 = vmatmul.bf16.gmra.mxu0 %v2194
    %v2523 = vpop.f32.mrf.mxu0
    %v2524 = vadd.f32 %v2511, %v2523
    %v2525 = vpop.f32.mrf.mxu0
    %2526 = vdwg.mxu0
    %2527 = vmatpush.bf16.msra.mxu0 %v1680
    %2528 = vmatpush.bf16.msra.mxu0 %v1674
    %2529 = vmatpush.bf16.msra.mxu0 %v1668
    %2530 = vmatpush.bf16.msra.mxu0 %v1662
    %2531 = vmatpush.bf16.msra.mxu0 %v1656
    %2532 = vmatpush.bf16.msra.mxu0 %v1650
    %2533 = vmatpush.bf16.msra.mxu0 %v1644
    %2534 = vmatpush.bf16.msra.mxu0 %v1638
    %2535 = vmatmul.bf16.gmra.mxu0 %v486
    %v2536 = vpop.f32.mrf.mxu0
    %v2537 = vadd.f32 %v780, %v2536
    %v2538 = vpop.f32.mrf.mxu0
    %2539 = vdwg.mxu0
    %2540 = vmatpush.bf16.msra.mxu0 %v1728
    %2541 = vmatpush.bf16.msra.mxu0 %v1722
    %2542 = vmatpush.bf16.msra.mxu0 %v1716
    %2543 = vmatpush.bf16.msra.mxu0 %v1710
    %2544 = vmatpush.bf16.msra.mxu0 %v1704
    %2545 = vmatpush.bf16.msra.mxu0 %v1698
    %2546 = vmatpush.bf16.msra.mxu0 %v1692
    %2547 = vmatpush.bf16.msra.mxu0 %v1686
    %2548 = vmatmul.bf16.gmra.mxu0 %v487
    %v2549 = vpop.f32.mrf.mxu0
    %v2550 = vadd.f32 %v2537, %v2549
    %v2551 = vpop.f32.mrf.mxu0
    %2552 = vdwg.mxu0
    %2553 = vmatpush.bf16.msra.mxu0 %v1776
    %2554 = vmatpush.bf16.msra.mxu0 %v1770
    %2555 = vmatpush.bf16.msra.mxu0 %v1764
    %2556 = vmatpush.bf16.msra.mxu0 %v1758
    %2557 = vmatpush.bf16.msra.mxu0 %v1752
    %2558 = vmatpush.bf16.msra.mxu0 %v1746
    %2559 = vmatpush.bf16.msra.mxu0 %v1740
    %2560 = vmatpush.bf16.msra.mxu0 %v1734
    %2561 = vmatmul.bf16.gmra.mxu0 %v488
    %v2562 = vpop.f32.mrf.mxu0
    %v2563 = vadd.f32 %v2550, %v2562
    %v2564 = vpop.f32.mrf.mxu0
    %2565 = vdwg.mxu0
    %2566 = vmatpush.bf16.msra.mxu0 %v1824
    %2567 = vmatpush.bf16.msra.mxu0 %v1818
    %2568 = vmatpush.bf16.msra.mxu0 %v1812
    %2569 = vmatpush.bf16.msra.mxu0 %v1806
    %2570 = vmatpush.bf16.msra.mxu0 %v1800
    %2571 = vmatpush.bf16.msra.mxu0 %v1794
    %2572 = vmatpush.bf16.msra.mxu0 %v1788
    %2573 = vmatpush.bf16.msra.mxu0 %v1782
    %2574 = vmatmul.bf16.gmra.mxu0 %v489
    %v2575 = vpop.f32.mrf.mxu0
    %v2576 = vadd.f32 %v2563, %v2575
    %v2577 = vpop.f32.mrf.mxu0
    %2578 = vdwg.mxu0
    %2579 = vmatpush.bf16.msra.mxu0 %v1872
    %2580 = vmatpush.bf16.msra.mxu0 %v1866
    %2581 = vmatpush.bf16.msra.mxu0 %v1860
    %2582 = vmatpush.bf16.msra.mxu0 %v1854
    %2583 = vmatpush.bf16.msra.mxu0 %v1848
    %2584 = vmatpush.bf16.msra.mxu0 %v1842
    %2585 = vmatpush.bf16.msra.mxu0 %v1836
    %2586 = vmatpush.bf16.msra.mxu0 %v1830
    %2587 = vmatmul.bf16.gmra.mxu0 %v490
    %v2588 = vpop.f32.mrf.mxu0
    %v2589 = vadd.f32 %v2576, %v2588
    %v2590 = vpop.f32.mrf.mxu0
    %2591 = vdwg.mxu0
    %2592 = vmatpush.bf16.msra.mxu0 0
    %2593 = vmatpush.bf16.msra.mxu0 %v2210
    %2594 = vmatpush.bf16.msra.mxu0 %v1908
    %2595 = vmatpush.bf16.msra.mxu0 %v1902
    %2596 = vmatpush.bf16.msra.mxu0 %v1896
    %2597 = vmatpush.bf16.msra.mxu0 %v1890
    %2598 = vmatpush.bf16.msra.mxu0 %v1884
    %2599 = vmatpush.bf16.msra.mxu0 %v1878
    %2600 = vmatmul.bf16.gmra.mxu0 %v2194
    %v2601 = vpop.f32.mrf.mxu0
    %v2602 = vadd.f32 %v2589, %v2601
    %v2603 = vpop.f32.mrf.mxu0
    %2604 = vdwg.mxu0
    %2605 = vmatpush.bf16.msra.mxu0 %v1681
    %2606 = vmatpush.bf16.msra.mxu0 %v1675
    %2607 = vmatpush.bf16.msra.mxu0 %v1669
    %2608 = vmatpush.bf16.msra.mxu0 %v1663
    %2609 = vmatpush.bf16.msra.mxu0 %v1657
    %2610 = vmatpush.bf16.msra.mxu0 %v1651
    %2611 = vmatpush.bf16.msra.mxu0 %v1645
    %2612 = vmatpush.bf16.msra.mxu0 %v1639
    %2613 = vmatmul.bf16.gmra.mxu0 %v486
    %v2614 = vpop.f32.mrf.mxu0
    %v2615 = vadd.f32 %v781, %v2614
    %v2616 = vpop.f32.mrf.mxu0
    %2617 = vdwg.mxu0
    %2618 = vmatpush.bf16.msra.mxu0 %v1729
    %2619 = vmatpush.bf16.msra.mxu0 %v1723
    %2620 = vmatpush.bf16.msra.mxu0 %v1717
    %2621 = vmatpush.bf16.msra.mxu0 %v1711
    %2622 = vmatpush.bf16.msra.mxu0 %v1705
    %2623 = vmatpush.bf16.msra.mxu0 %v1699
    %2624 = vmatpush.bf16.msra.mxu0 %v1693
    %2625 = vmatpush.bf16.msra.mxu0 %v1687
    %2626 = vmatmul.bf16.gmra.mxu0 %v487
    %v2627 = vpop.f32.mrf.mxu0
    %v2628 = vadd.f32 %v2615, %v2627
    %v2629 = vpop.f32.mrf.mxu0
    %2630 = vdwg.mxu0
    %2631 = vmatpush.bf16.msra.mxu0 %v1777
    %2632 = vmatpush.bf16.msra.mxu0 %v1771
    %2633 = vmatpush.bf16.msra.mxu0 %v1765
    %2634 = vmatpush.bf16.msra.mxu0 %v1759
    %2635 = vmatpush.bf16.msra.mxu0 %v1753
    %2636 = vmatpush.bf16.msra.mxu0 %v1747
    %2637 = vmatpush.bf16.msra.mxu0 %v1741
    %2638 = vmatpush.bf16.msra.mxu0 %v1735
    %2639 = vmatmul.bf16.gmra.mxu0 %v488
    %v2640 = vpop.f32.mrf.mxu0
    %v2641 = vadd.f32 %v2628, %v2640
    %v2642 = vpop.f32.mrf.mxu0
    %2643 = vdwg.mxu0
    %2644 = vmatpush.bf16.msra.mxu0 %v1825
    %2645 = vmatpush.bf16.msra.mxu0 %v1819
    %2646 = vmatpush.bf16.msra.mxu0 %v1813
    %2647 = vmatpush.bf16.msra.mxu0 %v1807
    %2648 = vmatpush.bf16.msra.mxu0 %v1801
    %2649 = vmatpush.bf16.msra.mxu0 %v1795
    %2650 = vmatpush.bf16.msra.mxu0 %v1789
    %2651 = vmatpush.bf16.msra.mxu0 %v1783
    %2652 = vmatmul.bf16.gmra.mxu0 %v489
    %v2653 = vpop.f32.mrf.mxu0
    %v2654 = vadd.f32 %v2641, %v2653
    %v2655 = vpop.f32.mrf.mxu0
    %2656 = vdwg.mxu0
    %2657 = vmatpush.bf16.msra.mxu0 %v1873
    %2658 = vmatpush.bf16.msra.mxu0 %v1867
    %2659 = vmatpush.bf16.msra.mxu0 %v1861
    %2660 = vmatpush.bf16.msra.mxu0 %v1855
    %2661 = vmatpush.bf16.msra.mxu0 %v1849
    %2662 = vmatpush.bf16.msra.mxu0 %v1843
    %2663 = vmatpush.bf16.msra.mxu0 %v1837
    %2664 = vmatpush.bf16.msra.mxu0 %v1831
    %2665 = vmatmul.bf16.gmra.mxu0 %v490
    %v2666 = vpop.f32.mrf.mxu0
    %v2667 = vadd.f32 %v2654, %v2666
    %v2668 = vpop.f32.mrf.mxu0
    %2669 = vdwg.mxu0
    %2670 = vmatpush.bf16.msra.mxu0 0
    %2671 = vmatpush.bf16.msra.mxu0 %v2213
    %2672 = vmatpush.bf16.msra.mxu0 %v1909
    %2673 = vmatpush.bf16.msra.mxu0 %v1903
    %2674 = vmatpush.bf16.msra.mxu0 %v1897
    %2675 = vmatpush.bf16.msra.mxu0 %v1891
    %2676 = vmatpush.bf16.msra.mxu0 %v1885
    %2677 = vmatpush.bf16.msra.mxu0 %v1879
    %2678 = vmatmul.bf16.gmra.mxu0 %v2194
    %v2679 = vpop.f32.mrf.mxu0
    %v2680 = vadd.f32 %v2667, %v2679
    %v2681 = vpop.f32.mrf.mxu0
    %2682 = vdwg.mxu0
    %v2683 = vmax.f32 %v2290, 0.0
    %v2684 = vmax.f32 %v2368, 0.0
    %v2685 = vmax.f32 %v2446, 0.0
    %v2686 = vmax.f32 %v2524, 0.0
    %v2687 = vmax.f32 %v2602, 0.0
    %v2688 = vmax.f32 %v2680, 0.0
    %v2689 = vpack.c.bf16 %v2683, %v2683
    %v2690 = vpack.c.bf16 %v2684, %v2684
    %v2691 = vpack.c.bf16 %v2685, %v2685
    %v2692 = vpack.c.bf16 %v2686, %v2686
    %v2693 = vpack.c.bf16 %v2687, %v2687
    %v2694 = vpack.c.bf16 %v2688, %v2688
    %v2695 = vld [vmem:[%s8] sm:$0xf]
    %v2696 = vld [vmem:[%s8 + $0x4] sm:$0xf]
    %v2697 = vld [vmem:[%s8 + $0x8] sm:$0xf]
    %v2698 = vld [vmem:[%s8 + $0xc] sm:$0xf]
    %v2699 = vld [vmem:[%s8 + $0x10] sm:$0xf]
    %v2700 = vld [vmem:[%s8 + $0x14] sm:$0xf]
    %v2701 = vld [vmem:[%s8 + $0x18] sm:$0xf]
    %v2702 = vld [vmem:[%s8 + $0x1c] sm:$0xf]
    %v2703 = vld [vmem:[%s8 + $0x20] sm:$0xf]
    %v2704 = vld [vmem:[%s8 + $0x24] sm:$0xf]
    %v2705 = vld [vmem:[%s8 + $0x28] sm:$0xf]
    %v2706 = vld [vmem:[%s8 + $0x2c] sm:$0xf]
    %v2707 = vld [vmem:[%s8 + $0x30] sm:$0xf]
    %v2708 = vld [vmem:[%s8 + $0x34] sm:$0xf]
    %v2709 = vld [vmem:[%s8 + $0x38] sm:$0xf]
    %v2710 = vld [vmem:[%s8 + $0x3c] sm:$0xf]
    %v2711 = vld [vmem:[%s8 + $0x40] sm:$0xf]
    %v2712 = vld [vmem:[%s8 + $0x44] sm:$0xf]
    %v2713 = vld [vmem:[%s8 + $0x48] sm:$0xf]
    %v2714 = vld [vmem:[%s8 + $0x4c] sm:$0xf]
    %v2715 = vld [vmem:[%s8 + $0x50] sm:$0xf]
    %v2716 = vld [vmem:[%s8 + $0x54] sm:$0xf]
    %v2717 = vld [vmem:[%s8 + $0x58] sm:$0xf]
    %v2718 = vld [vmem:[%s8 + $0x5c] sm:$0xf]
    %v2719 = vld [vmem:[%s8 + $0x60] sm:$0xf]
    %v2720 = vld [vmem:[%s8 + $0x64] sm:$0xf]
    %v2721 = vld [vmem:[%s8 + $0x68] sm:$0xf]
    %v2722 = vld [vmem:[%s8 + $0x6c] sm:$0xf]
    %v2723 = vld [vmem:[%s8 + $0x70] sm:$0xf]
    %v2724 = vld [vmem:[%s8 + $0x74] sm:$0xf]
    %v2725 = vld [vmem:[%s8 + $0x78] sm:$0xf]
    %v2726 = vld [vmem:[%s8 + $0x7c] sm:$0xf]
    %v2727 = vld [vmem:[%s8 + $0x80] sm:$0xf]
    %v2728 = vld [vmem:[%s8 + $0x84] sm:$0xf]
    %v2729 = vld [vmem:[%s8 + $0x88] sm:$0xf]
    %v2730 = vld [vmem:[%s8 + $0x8c] sm:$0xf]
    %v2731 = vld [vmem:[%s8 + $0x90] sm:$0xf]
    %v2732 = vld [vmem:[%s8 + $0x94] sm:$0xf]
    %v2733 = vld [vmem:[%s8 + $0x98] sm:$0xf]
    %v2734 = vld [vmem:[%s8 + $0x9c] sm:$0xf]
    %v2735 = vld [vmem:[%s8 + $0xa0] sm:$0xf]
    %v2736 = vld [vmem:[%s8 + $0xa4] sm:$0xf]
    %v2737 = vld [vmem:[%s8 + $0xa8] sm:$0xf]
    %v2738 = vld [vmem:[%s8 + $0xac] sm:$0xf]
    %v2739 = vld [vmem:[%s8 + $0xb0] sm:$0xf]
    %v2740 = vld [vmem:[%s8 + $0xb4] sm:$0xf]
    %v2741 = vld [vmem:[%s8 + $0xb8] sm:$0xf]
    %v2742 = vld [vmem:[%s8 + $0xbc] sm:$0xf]
    %v2743 = vld [vmem:[%s8 + $0xc0] sm:$0xf]
    %v2744 = vld [vmem:[%s8 + $0xc4] sm:$0xf]
    %v2745 = vld [vmem:[%s8 + $0xc8] sm:$0xf]
    %v2746 = vld [vmem:[%s8 + $0xcc] sm:$0xf]
    %v2747 = vld [vmem:[%s8 + $0xd0] sm:$0xf]
    %v2748 = vld [vmem:[%s8 + $0xd4] sm:$0xf]
    %v2749 = vld [vmem:[%s8 + $0xd8] sm:$0xf]
    %v2750 = vld [vmem:[%s8 + $0xdc] sm:$0xf]
    %v2751 = vld [vmem:[%s8 + $0xe0] sm:$0xf]
    %v2752 = vld [vmem:[%s8 + $0xe4] sm:$0xf]
    %v2753 = vld [vmem:[%s8 + $0xe8] sm:$0xf]
    %v2754 = vld [vmem:[%s8 + $0xec] sm:$0xf]
    %v2755 = vld [vmem:[%s8 + $0xf0] sm:$0xf]
    %v2756 = vld [vmem:[%s8 + $0xf4] sm:$0xf]
    %v2757 = vld [vmem:[%s8 + $0xf8] sm:$0xf]
    %v2758 = vld [vmem:[%s8 + $0xfc] sm:$0xf]
    %v2759 = vld [vmem:[%s8 + $0x100] sm:$0xf]
    %v2760 = vld [vmem:[%s8 + $0x104] sm:$0xf]
    %v2761 = vld [vmem:[%s8 + $0x108] sm:$0xf]
    %v2762 = vld [vmem:[%s8 + $0x10c] sm:$0xf]
    %v2763 = vld [vmem:[%s8 + $0x110] sm:$0xf]
    %v2764 = vld [vmem:[%s8 + $0x114] sm:$0xf]
    %v2765 = vld [vmem:[%s8 + $0x118] sm:$0xf]
    %v2766 = vld [vmem:[%s8 + $0x11c] sm:$0xf]
    %v2767 = vld [vmem:[%s8 + $0x120] sm:$0xf]
    %v2768 = vld [vmem:[%s8 + $0x124] sm:$0xf]
    %v2769 = vld [vmem:[%s8 + $0x128] sm:$0xf]
    %v2770 = vld [vmem:[%s8 + $0x12c] sm:$0xf]
    %v2771 = vld [vmem:[%s8 + $0x130] sm:$0xf]
    %v2772 = vld [vmem:[%s8 + $0x134] sm:$0xf]
    %v2773 = vld [vmem:[%s8 + $0x138] sm:$0xf]
    %v2774 = vld [vmem:[%s8 + $0x13c] sm:$0xf]
    %v2775 = vld [vmem:[%s8 + $0x140] sm:$0xf]
    %v2776 = vld [vmem:[%s8 + $0x144] sm:$0xf]
    %v2777 = vld [vmem:[%s8 + $0x148] sm:$0xf]
    %v2778 = vld [vmem:[%s8 + $0x14c] sm:$0xf]
    %v2779 = vld [vmem:[%s8 + $0x150] sm:$0xf]
    %v2780 = vld [vmem:[%s8 + $0x154] sm:$0xf]
    %v2781 = vld [vmem:[%s8 + $0x158] sm:$0xf]
    %v2782 = vld [vmem:[%s8 + $0x15c] sm:$0xf]
    %v2783 = vld [vmem:[%s8 + $0x160] sm:$0xf]
    %v2784 = vld [vmem:[%s8 + $0x164] sm:$0xf]
    %v2785 = vld [vmem:[%s8 + $0x168] sm:$0xf]
    %v2786 = vld [vmem:[%s8 + $0x16c] sm:$0xf]
    %v2787 = vld [vmem:[%s8 + $0x170] sm:$0xf]
    %v2788 = vld [vmem:[%s8 + $0x174] sm:$0x7]
    %v2789 = vld [vmem:[#allocation10] sm:$0x1]
    %v2791 = vperm.slane %v2789, 0
    %v2887 = vunpack.c.l.b16 %v2695
    %v2888 = vunpack.c.l.b16 %v2696
    %v2889 = vunpack.c.l.b16 %v2697
    %v2890 = vunpack.c.l.b16 %v2698
    %v2891 = vunpack.c.l.b16 %v2699
    %v2892 = vunpack.c.l.b16 %v2700
    %v2893 = vunpack.c.l.b16 %v2701
    %v2894 = vunpack.c.l.b16 %v2702
    %v2895 = vunpack.c.l.b16 %v2703
    %v2896 = vunpack.c.l.b16 %v2704
    %v2897 = vunpack.c.l.b16 %v2705
    %v2898 = vunpack.c.l.b16 %v2706
    %v2899 = vunpack.c.l.b16 %v2707
    %v2900 = vunpack.c.l.b16 %v2708
    %v2901 = vunpack.c.l.b16 %v2709
    %v2902 = vunpack.c.l.b16 %v2710
    %v2903 = vunpack.c.l.b16 %v2711
    %v2904 = vunpack.c.l.b16 %v2712
    %v2905 = vunpack.c.l.b16 %v2713
    %v2906 = vunpack.c.l.b16 %v2714
    %v2907 = vunpack.c.l.b16 %v2715
    %v2908 = vunpack.c.l.b16 %v2716
    %v2909 = vunpack.c.l.b16 %v2717
    %v2910 = vunpack.c.l.b16 %v2718
    %v2911 = vunpack.c.l.b16 %v2719
    %v2912 = vunpack.c.l.b16 %v2720
    %v2913 = vunpack.c.l.b16 %v2721
    %v2914 = vunpack.c.l.b16 %v2722
    %v2915 = vunpack.c.l.b16 %v2723
    %v2916 = vunpack.c.l.b16 %v2724
    %v2917 = vunpack.c.l.b16 %v2725
    %v2918 = vunpack.c.l.b16 %v2726
    %v2919 = vunpack.c.l.b16 %v2727
    %v2920 = vunpack.c.l.b16 %v2728
    %v2921 = vunpack.c.l.b16 %v2729
    %v2922 = vunpack.c.l.b16 %v2730
    %v2923 = vunpack.c.l.b16 %v2731
    %v2924 = vunpack.c.l.b16 %v2732
    %v2925 = vunpack.c.l.b16 %v2733
    %v2926 = vunpack.c.l.b16 %v2734
    %v2927 = vunpack.c.l.b16 %v2735
    %v2928 = vunpack.c.l.b16 %v2736
    %v2929 = vunpack.c.l.b16 %v2737
    %v2930 = vunpack.c.l.b16 %v2738
    %v2931 = vunpack.c.l.b16 %v2739
    %v2932 = vunpack.c.l.b16 %v2740
    %v2933 = vunpack.c.l.b16 %v2741
    %v2934 = vunpack.c.l.b16 %v2742
    %v2935 = vunpack.c.l.b16 %v2743
    %v2936 = vunpack.c.l.b16 %v2744
    %v2937 = vunpack.c.l.b16 %v2745
    %v2938 = vunpack.c.l.b16 %v2746
    %v2939 = vunpack.c.l.b16 %v2747
    %v2940 = vunpack.c.l.b16 %v2748
    %v2941 = vunpack.c.l.b16 %v2749
    %v2942 = vunpack.c.l.b16 %v2750
    %v2943 = vunpack.c.l.b16 %v2751
    %v2944 = vunpack.c.l.b16 %v2752
    %v2945 = vunpack.c.l.b16 %v2753
    %v2946 = vunpack.c.l.b16 %v2754
    %v2947 = vunpack.c.l.b16 %v2755
    %v2948 = vunpack.c.l.b16 %v2756
    %v2949 = vunpack.c.l.b16 %v2757
    %v2950 = vunpack.c.l.b16 %v2758
    %v2951 = vunpack.c.l.b16 %v2759
    %v2952 = vunpack.c.l.b16 %v2760
    %v2953 = vunpack.c.l.b16 %v2761
    %v2954 = vunpack.c.l.b16 %v2762
    %v2955 = vunpack.c.l.b16 %v2763
    %v2956 = vunpack.c.l.b16 %v2764
    %v2957 = vunpack.c.l.b16 %v2765
    %v2958 = vunpack.c.l.b16 %v2766
    %v2959 = vunpack.c.l.b16 %v2767
    %v2960 = vunpack.c.l.b16 %v2768
    %v2961 = vunpack.c.l.b16 %v2769
    %v2962 = vunpack.c.l.b16 %v2770
    %v2963 = vunpack.c.l.b16 %v2771
    %v2964 = vunpack.c.l.b16 %v2772
    %v2965 = vunpack.c.l.b16 %v2773
    %v2966 = vunpack.c.l.b16 %v2774
    %v2967 = vunpack.c.l.b16 %v2775
    %v2968 = vunpack.c.l.b16 %v2776
    %v2969 = vunpack.c.l.b16 %v2777
    %v2970 = vunpack.c.l.b16 %v2778
    %v2971 = vunpack.c.l.b16 %v2779
    %v2972 = vunpack.c.l.b16 %v2780
    %v2973 = vunpack.c.l.b16 %v2781
    %v2974 = vunpack.c.l.b16 %v2782
    %v2975 = vunpack.c.l.b16 %v2783
    %v2976 = vunpack.c.l.b16 %v2784
    %v2977 = vunpack.c.l.b16 %v2785
    %v2978 = vunpack.c.l.b16 %v2786
    %v2979 = vunpack.c.l.b16 %v2787
    %v2980 = vunpack.c.l.b16 %v2788
    %v2981 = vpack.c.b16 %v2888, %v2887
    %v2982 = vpack.c.b16 %v2890, %v2889
    %v2983 = vpack.c.b16 %v2892, %v2891
    %v2984 = vpack.c.b16 %v2894, %v2893
    %v2985 = vpack.c.b16 %v2896, %v2895
    %v2986 = vpack.c.b16 %v2898, %v2897
    %v2987 = vpack.c.b16 %v2900, %v2899
    %v2988 = vpack.c.b16 %v2902, %v2901
    %v2989 = vpack.c.b16 %v2904, %v2903
    %v2990 = vpack.c.b16 %v2906, %v2905
    %v2991 = vpack.c.b16 %v2908, %v2907
    %v2992 = vpack.c.b16 %v2910, %v2909
    %v2993 = vpack.c.b16 %v2912, %v2911
    %v2994 = vpack.c.b16 %v2914, %v2913
    %v2995 = vpack.c.b16 %v2916, %v2915
    %v2996 = vpack.c.b16 %v2918, %v2917
    %v2997 = vpack.c.b16 %v2920, %v2919
    %v2998 = vpack.c.b16 %v2922, %v2921
    %v2999 = vpack.c.b16 %v2924, %v2923
    %v3000 = vpack.c.b16 %v2926, %v2925
    %v3001 = vpack.c.b16 %v2928, %v2927
    %v3002 = vpack.c.b16 %v2930, %v2929
    %v3003 = vpack.c.b16 %v2932, %v2931
    %v3004 = vpack.c.b16 %v2934, %v2933
    %v3005 = vpack.c.b16 %v2936, %v2935
    %v3006 = vpack.c.b16 %v2938, %v2937
    %v3007 = vpack.c.b16 %v2940, %v2939
    %v3008 = vpack.c.b16 %v2942, %v2941
    %v3009 = vpack.c.b16 %v2944, %v2943
    %v3010 = vpack.c.b16 %v2946, %v2945
    %v3011 = vpack.c.b16 %v2948, %v2947
    %v3012 = vpack.c.b16 %v2950, %v2949
    %v3013 = vpack.c.b16 %v2952, %v2951
    %v3014 = vpack.c.b16 %v2954, %v2953
    %v3015 = vpack.c.b16 %v2956, %v2955
    %v3016 = vpack.c.b16 %v2958, %v2957
    %v3017 = vpack.c.b16 %v2960, %v2959
    %v3018 = vpack.c.b16 %v2962, %v2961
    %v3019 = vpack.c.b16 %v2964, %v2963
    %v3020 = vpack.c.b16 %v2966, %v2965
    %v3021 = vpack.c.b16 %v2968, %v2967
    %v3022 = vpack.c.b16 %v2970, %v2969
    %v3023 = vpack.c.b16 %v2972, %v2971
    %v3024 = vpack.c.b16 %v2974, %v2973
    %v3025 = vpack.c.b16 %v2976, %v2975
    %v3026 = vpack.c.b16 %v2978, %v2977
    %v3027 = vpack.c.b16 %v2980, %v2979
    %v3075 = vsel %vm2192, %v2694, 0
    %v3078 = vsel %vm2196, %v3027, 0
    %3080 = vmatpush.bf16.msra.mxu0 %v2988
    %3081 = vmatpush.bf16.msra.mxu0 %v2987
    %3082 = vmatpush.bf16.msra.mxu0 %v2986
    %3083 = vmatpush.bf16.msra.mxu0 %v2985
    %3084 = vmatpush.bf16.msra.mxu0 %v2984
    %3085 = vmatpush.bf16.msra.mxu0 %v2983
    %3086 = vmatpush.bf16.msra.mxu0 %v2982
    %3087 = vmatpush.bf16.msra.mxu0 %v2981
    %3088 = vmatmul.bf16.gmra.mxu0 %v2689
    %v3089 = vpop.f32.mrf.mxu0
    %v3090 = vadd.f32 %v2791, %v3089
    %v3091 = vpop.f32.mrf.mxu0
    %3092 = vdwg.mxu0
    %3093 = vmatpush.bf16.msra.mxu0 %v2996
    %3094 = vmatpush.bf16.msra.mxu0 %v2995
    %3095 = vmatpush.bf16.msra.mxu0 %v2994
    %3096 = vmatpush.bf16.msra.mxu0 %v2993
    %3097 = vmatpush.bf16.msra.mxu0 %v2992
    %3098 = vmatpush.bf16.msra.mxu0 %v2991
    %3099 = vmatpush.bf16.msra.mxu0 %v2990
    %3100 = vmatpush.bf16.msra.mxu0 %v2989
    %3101 = vmatmul.bf16.gmra.mxu0 %v2690
    %v3102 = vpop.f32.mrf.mxu0
    %v3103 = vadd.f32 %v3090, %v3102
    %v3104 = vpop.f32.mrf.mxu0
    %3105 = vdwg.mxu0
    %3106 = vmatpush.bf16.msra.mxu0 %v3004
    %3107 = vmatpush.bf16.msra.mxu0 %v3003
    %3108 = vmatpush.bf16.msra.mxu0 %v3002
    %3109 = vmatpush.bf16.msra.mxu0 %v3001
    %3110 = vmatpush.bf16.msra.mxu0 %v3000
    %3111 = vmatpush.bf16.msra.mxu0 %v2999
    %3112 = vmatpush.bf16.msra.mxu0 %v2998
    %3113 = vmatpush.bf16.msra.mxu0 %v2997
    %3114 = vmatmul.bf16.gmra.mxu0 %v2691
    %v3115 = vpop.f32.mrf.mxu0
    %v3116 = vadd.f32 %v3103, %v3115
    %v3117 = vpop.f32.mrf.mxu0
    %3118 = vdwg.mxu0
    %3119 = vmatpush.bf16.msra.mxu0 %v3012
    %3120 = vmatpush.bf16.msra.mxu0 %v3011
    %3121 = vmatpush.bf16.msra.mxu0 %v3010
    %3122 = vmatpush.bf16.msra.mxu0 %v3009
    %3123 = vmatpush.bf16.msra.mxu0 %v3008
    %3124 = vmatpush.bf16.msra.mxu0 %v3007
    %3125 = vmatpush.bf16.msra.mxu0 %v3006
    %3126 = vmatpush.bf16.msra.mxu0 %v3005
    %3127 = vmatmul.bf16.gmra.mxu0 %v2692
    %v3128 = vpop.f32.mrf.mxu0
    %v3129 = vadd.f32 %v3116, %v3128
    %v3130 = vpop.f32.mrf.mxu0
    %3131 = vdwg.mxu0
    %3132 = vmatpush.bf16.msra.mxu0 %v3020
    %3133 = vmatpush.bf16.msra.mxu0 %v3019
    %3134 = vmatpush.bf16.msra.mxu0 %v3018
    %3135 = vmatpush.bf16.msra.mxu0 %v3017
    %3136 = vmatpush.bf16.msra.mxu0 %v3016
    %3137 = vmatpush.bf16.msra.mxu0 %v3015
    %3138 = vmatpush.bf16.msra.mxu0 %v3014
    %3139 = vmatpush.bf16.msra.mxu0 %v3013
    %3140 = vmatmul.bf16.gmra.mxu0 %v2693
    %v3141 = vpop.f32.mrf.mxu0
    %v3142 = vadd.f32 %v3129, %v3141
    %v3143 = vpop.f32.mrf.mxu0
    %3144 = vdwg.mxu0
    %3145 = vmatpush.bf16.msra.mxu0 0
    %3146 = vmatpush.bf16.msra.mxu0 %v3078
    %3147 = vmatpush.bf16.msra.mxu0 %v3026
    %3148 = vmatpush.bf16.msra.mxu0 %v3025
    %3149 = vmatpush.bf16.msra.mxu0 %v3024
    %3150 = vmatpush.bf16.msra.mxu0 %v3023
    %3151 = vmatpush.bf16.msra.mxu0 %v3022
    %3152 = vmatpush.bf16.msra.mxu0 %v3021
    %3153 = vmatmul.bf16.gmra.mxu0 %v3075
    %v3154 = vpop.f32.mrf.mxu0
    %v3155 = vadd.f32 %v3142, %v3154
    %v3156 = vpop.f32.mrf.mxu0
    %3157 = vdwg.mxu0
    %v3158 = vlaneseq
    %v3159 = vand.u32 %v3158, 127
    %v3160 = vmax.f32 %v3155, -4.0
    %v3161 = vmin.f32 %v3160, 15.0
    %v3162 = vmul.f32 %v3161, 1.442695
    %v3163 = vpow.pop %v3162
    %vm3164 = vcmp.ge.s32.totalorder %v3159, 6
    %v3165 = vsel %vm3164, %v3163, %v3155
    %v3166 = vmul.f32 %v3165, %v232
    %v3167 = vpack.c.bf16 %v3166, %v3166
    %v3168 = vld [vmem:[#allocation12] sm:$0xff]
    %v3169 = vld [vmem:[#allocation12 + $0x8] sm:$0xff]
    %v3170 = vld [vmem:[#allocation12 + $0x10] sm:$0xff]
    %v3171 = vld [vmem:[#allocation13] sm:$0xff]
    %v3172 = vld [vmem:[#allocation13 + $0x8] sm:$0xff]
    %v3173 = vld [vmem:[#allocation13 + $0x10] sm:$0xff]
    %v3174 = vld [vmem:[#allocation13 + $0x18] sm:$0x33]
    %v3175 = vld [vmem:[#allocation13 + $0x20] sm:$0x33]
    %v3176 = vld [vmem:[#allocation13 + $0x28] sm:$0x33]
    %v3183 = vunpack.c.l.b16 %v3171
    %v3184 = vunpack.c.h.b16 %v3171
    %v3185 = vunpack.c.l.b16 %v3172
    %v3186 = vunpack.c.h.b16 %v3172
    %v3187 = vunpack.c.l.b16 %v3173
    %v3188 = vunpack.c.h.b16 %v3173
    %v3189 = vunpack.c.l.b16 %v3174
    %v3190 = vunpack.c.h.b16 %v3174
    %v3191 = vunpack.c.l.b16 %v3175
    %v3192 = vunpack.c.h.b16 %v3175
    %v3193 = vunpack.c.l.b16 %v3176
    %v3194 = vunpack.c.h.b16 %v3176
    %v3195 = vpack.c.b16 %v3189, %v3183
    %v3196 = vpack.c.b16 %v3190, %v3184
    %v3197 = vpack.c.b16 %v3191, %v3185
    %v3198 = vpack.c.b16 %v3192, %v3186
    %v3199 = vpack.c.b16 %v3193, %v3187
    %v3200 = vpack.c.b16 %v3194, %v3188
    %vm3201 = vcmask 97280
    %v3203 = vsel %vm3201, %v3167, 0
    %vm3205 = vcmask 1045504
    %v3207 = vsel %vm3205, %v3195, 0
    %v3210 = vsel %vm3205, %v3196, 0
    %v3213 = vsel %vm3205, %v3197, 0
    %v3216 = vsel %vm3205, %v3198, 0
    %v3219 = vsel %vm3205, %v3199, 0
    %v3222 = vsel %vm3205, %v3200, 0
    %3224 = vmatpush.bf16.msra.mxu0 0
    %3225 = vmatpush.bf16.msra.mxu0 0
    %3226 = vmatpush.bf16.msra.mxu0 0
    %3227 = vmatpush.bf16.msra.mxu0 0
    %3228 = vmatpush.bf16.msra.mxu0 0
    %3229 = vmatpush.bf16.msra.mxu0 0
    %3230 = vmatpush.bf16.msra.mxu0 0
    %3231 = vmatpush.bf16.msra.mxu0 %v3207
    %3232 = vmatmul.bf16.gmra.mxu0 %v3203
    %v3233 = vpop.f32.mrf.mxu0
    %v3234 = vadd.f32 0.0, %v3233
    %v3235 = vpop.f32.mrf.mxu0
    %3236 = vdwg.mxu0
    %3237 = vmatpush.bf16.msra.mxu0 0
    %3238 = vmatpush.bf16.msra.mxu0 0
    %3239 = vmatpush.bf16.msra.mxu0 0
    %3240 = vmatpush.bf16.msra.mxu0 0
    %3241 = vmatpush.bf16.msra.mxu0 0
    %3242 = vmatpush.bf16.msra.mxu0 0
    %3243 = vmatpush.bf16.msra.mxu0 0
    %3244 = vmatpush.bf16.msra.mxu0 %v3210
    %3245 = vmatmul.bf16.gmra.mxu0 %v3203
    %v3246 = vpop.f32.mrf.mxu0
    %v3247 = vadd.f32 0.0, %v3246
    %v3248 = vpop.f32.mrf.mxu0
    %3249 = vdwg.mxu0
    %3250 = vmatpush.bf16.msra.mxu0 0
    %3251 = vmatpush.bf16.msra.mxu0 0
    %3252 = vmatpush.bf16.msra.mxu0 0
    %3253 = vmatpush.bf16.msra.mxu0 0
    %3254 = vmatpush.bf16.msra.mxu0 0
    %3255 = vmatpush.bf16.msra.mxu0 0
    %3256 = vmatpush.bf16.msra.mxu0 0
    %3257 = vmatpush.bf16.msra.mxu0 %v3213
    %3258 = vmatmul.bf16.gmra.mxu0 %v3203
    %v3259 = vpop.f32.mrf.mxu0
    %v3260 = vadd.f32 0.0, %v3259
    %v3261 = vpop.f32.mrf.mxu0
    %3262 = vdwg.mxu0
    %3263 = vmatpush.bf16.msra.mxu0 0
    %3264 = vmatpush.bf16.msra.mxu0 0
    %3265 = vmatpush.bf16.msra.mxu0 0
    %3266 = vmatpush.bf16.msra.mxu0 0
    %3267 = vmatpush.bf16.msra.mxu0 0
    %3268 = vmatpush.bf16.msra.mxu0 0
    %3269 = vmatpush.bf16.msra.mxu0 0
    %3270 = vmatpush.bf16.msra.mxu0 %v3216
    %3271 = vmatmul.bf16.gmra.mxu0 %v3203
    %v3272 = vpop.f32.mrf.mxu0
    %v3273 = vadd.f32 0.0, %v3272
    %v3274 = vpop.f32.mrf.mxu0
    %3275 = vdwg.mxu0
    %3276 = vmatpush.bf16.msra.mxu0 0
    %3277 = vmatpush.bf16.msra.mxu0 0
    %3278 = vmatpush.bf16.msra.mxu0 0
    %3279 = vmatpush.bf16.msra.mxu0 0
    %3280 = vmatpush.bf16.msra.mxu0 0
    %3281 = vmatpush.bf16.msra.mxu0 0
    %3282 = vmatpush.bf16.msra.mxu0 0
    %3283 = vmatpush.bf16.msra.mxu0 %v3219
    %3284 = vmatmul.bf16.gmra.mxu0 %v3203
    %v3285 = vpop.f32.mrf.mxu0
    %v3286 = vadd.f32 0.0, %v3285
    %v3287 = vpop.f32.mrf.mxu0
    %3288 = vdwg.mxu0
    %3289 = vmatpush.bf16.msra.mxu0 0
    %3290 = vmatpush.bf16.msra.mxu0 0
    %3291 = vmatpush.bf16.msra.mxu0 0
    %3292 = vmatpush.bf16.msra.mxu0 0
    %3293 = vmatpush.bf16.msra.mxu0 0
    %3294 = vmatpush.bf16.msra.mxu0 0
    %3295 = vmatpush.bf16.msra.mxu0 0
    %3296 = vmatpush.bf16.msra.mxu0 %v3222
    %3297 = vmatmul.bf16.gmra.mxu0 %v3203
    %v3298 = vpop.f32.mrf.mxu0
    %v3299 = vadd.f32 0.0, %v3298
    %v3300 = vpop.f32.mrf.mxu0
    %3301 = vdwg.mxu0
    %v3305 = vunpack.c.l.b16 %v3168
    %v3306 = vunpack.c.h.b16 %v3168
    %v3307 = vunpack.c.l.b16 %v3169
    %v3308 = vunpack.c.h.b16 %v3169
    %v3309 = vunpack.c.l.b16 %v3170
    %v3310 = vunpack.c.h.b16 %v3170
    %v3311 = vpack.c.b16 %v3305, %v3305
    %v3312 = vpack.c.b16 %v3306, %v3306
    %v3313 = vpack.c.b16 %v3307, %v3307
    %v3314 = vpack.c.b16 %v3308, %v3308
    %v3315 = vpack.c.b16 %v3309, %v3309
    %v3316 = vpack.c.b16 %v3310, %v3310
    %v3318 = vsel %vm363, %v3311, 0
    %v3321 = vsel %vm363, %v3312, 0
    %v3324 = vsel %vm363, %v3313, 0
    %v3327 = vsel %vm363, %v3314, 0
    %v3330 = vsel %vm363, %v3315, 0
    %v3333 = vsel %vm363, %v3316, 0
    %3335 = vmatpush.bf16.msra.mxu0 0
    %3336 = vmatpush.bf16.msra.mxu0 0
    %3337 = vmatpush.bf16.msra.mxu0 0
    %3338 = vmatpush.bf16.msra.mxu0 0
    %3339 = vmatpush.bf16.msra.mxu0 0
    %3340 = vmatpush.bf16.msra.mxu0 0
    %3341 = vmatpush.bf16.msra.mxu0 0
    %3342 = vmatpush.bf16.msra.mxu0 %v3318
    %3343 = vmatmul.bf16.gmra.mxu0 %v361
    %v3344 = vpop.f32.mrf.mxu0
    %v3345 = vadd.f32 %v3234, %v3344
    %v3346 = vpop.f32.mrf.mxu0
    %3347 = vdwg.mxu0
    %3348 = vmatpush.bf16.msra.mxu0 0
    %3349 = vmatpush.bf16.msra.mxu0 0
    %3350 = vmatpush.bf16.msra.mxu0 0
    %3351 = vmatpush.bf16.msra.mxu0 0
    %3352 = vmatpush.bf16.msra.mxu0 0
    %3353 = vmatpush.bf16.msra.mxu0 0
    %3354 = vmatpush.bf16.msra.mxu0 0
    %3355 = vmatpush.bf16.msra.mxu0 %v3321
    %3356 = vmatmul.bf16.gmra.mxu0 %v361
    %v3357 = vpop.f32.mrf.mxu0
    %v3358 = vadd.f32 %v3247, %v3357
    %v3359 = vpop.f32.mrf.mxu0
    %3360 = vdwg.mxu0
    %3361 = vmatpush.bf16.msra.mxu0 0
    %3362 = vmatpush.bf16.msra.mxu0 0
    %3363 = vmatpush.bf16.msra.mxu0 0
    %3364 = vmatpush.bf16.msra.mxu0 0
    %3365 = vmatpush.bf16.msra.mxu0 0
    %3366 = vmatpush.bf16.msra.mxu0 0
    %3367 = vmatpush.bf16.msra.mxu0 0
    %3368 = vmatpush.bf16.msra.mxu0 %v3324
    %3369 = vmatmul.bf16.gmra.mxu0 %v361
    %v3370 = vpop.f32.mrf.mxu0
    %v3371 = vadd.f32 %v3260, %v3370
    %v3372 = vpop.f32.mrf.mxu0
    %3373 = vdwg.mxu0
    %3374 = vmatpush.bf16.msra.mxu0 0
    %3375 = vmatpush.bf16.msra.mxu0 0
    %3376 = vmatpush.bf16.msra.mxu0 0
    %3377 = vmatpush.bf16.msra.mxu0 0
    %3378 = vmatpush.bf16.msra.mxu0 0
    %3379 = vmatpush.bf16.msra.mxu0 0
    %3380 = vmatpush.bf16.msra.mxu0 0
    %3381 = vmatpush.bf16.msra.mxu0 %v3327
    %3382 = vmatmul.bf16.gmra.mxu0 %v361
    %v3383 = vpop.f32.mrf.mxu0
    %v3384 = vadd.f32 %v3273, %v3383
    %v3385 = vpop.f32.mrf.mxu0
    %3386 = vdwg.mxu0
    %3387 = vmatpush.bf16.msra.mxu0 0
    %3388 = vmatpush.bf16.msra.mxu0 0
    %3389 = vmatpush.bf16.msra.mxu0 0
    %3390 = vmatpush.bf16.msra.mxu0 0
    %3391 = vmatpush.bf16.msra.mxu0 0
    %3392 = vmatpush.bf16.msra.mxu0 0
    %3393 = vmatpush.bf16.msra.mxu0 0
    %3394 = vmatpush.bf16.msra.mxu0 %v3330
    %3395 = vmatmul.bf16.gmra.mxu0 %v361
    %v3396 = vpop.f32.mrf.mxu0
    %v3397 = vadd.f32 %v3286, %v3396
    %v3398 = vpop.f32.mrf.mxu0
    %3399 = vdwg.mxu0
    %3400 = vmatpush.bf16.msra.mxu0 0
    %3401 = vmatpush.bf16.msra.mxu0 0
    %3402 = vmatpush.bf16.msra.mxu0 0
    %3403 = vmatpush.bf16.msra.mxu0 0
    %3404 = vmatpush.bf16.msra.mxu0 0
    %3405 = vmatpush.bf16.msra.mxu0 0
    %3406 = vmatpush.bf16.msra.mxu0 0
    %3407 = vmatpush.bf16.msra.mxu0 %v3333
    %3408 = vmatmul.bf16.gmra.mxu0 %v361
    %v3409 = vpop.f32.mrf.mxu0
    %v3410 = vadd.f32 %v3299, %v3409
    %v3411 = vpop.f32.mrf.mxu0
    %3412 = vdwg.mxu0
    %v3413 = vld [vmem:[#allocation15] sm:$0x3f]
    %v3415 = vperm.slane %v3413, 0
    %v3416 = vperm.slane %v3413, 1
    %v3417 = vperm.slane %v3413, 2
    %v3418 = vperm.slane %v3413, 3
    %v3419 = vperm.slane %v3413, 4
    %v3420 = vperm.slane %v3413, 5
    %v3427 = vadd.f32 %v3345, %v3415
    %v3428 = vadd.f32 %v3358, %v3416
    %v3429 = vadd.f32 %v3371, %v3417
    %v3430 = vadd.f32 %v3384, %v3418
    %v3431 = vadd.f32 %v3397, %v3419
    %v3432 = vadd.f32 %v3410, %v3420
    %v3433 = vmax.f32 %v3427, 0.0
    %v3434 = vmax.f32 %v3428, 0.0
    %v3435 = vmax.f32 %v3429, 0.0
    %v3436 = vmax.f32 %v3430, 0.0
    %v3437 = vmax.f32 %v3431, 0.0
    %v3438 = vmax.f32 %v3432, 0.0
    %v3439 = vpack.c.bf16 %v3433, %v3433
    %v3440 = vpack.c.bf16 %v3434, %v3434
    %v3441 = vpack.c.bf16 %v3435, %v3435
    %v3442 = vpack.c.bf16 %v3436, %v3436
    %v3443 = vpack.c.bf16 %v3437, %v3437
    %v3444 = vpack.c.bf16 %v3438, %v3438
    %v3445 = vld [vmem:[#allocation16] sm:$0xff]
    %v3446 = vld [vmem:[#allocation16 + $0x8] sm:$0xff]
    %v3447 = vld [vmem:[#allocation16 + $0x10] sm:$0xff]
    %v3448 = vld [vmem:[#allocation16 + $0x18] sm:$0xff]
    %v3449 = vld [vmem:[#allocation16 + $0x20] sm:$0xff]
    %v3450 = vld [vmem:[#allocation16 + $0x28] sm:$0xff]
    %v3451 = vld [vmem:[#allocation16 + $0x30] sm:$0xff]
    %v3452 = vld [vmem:[#allocation16 + $0x38] sm:$0xff]
    %v3453 = vld [vmem:[#allocation16 + $0x40] sm:$0xff]
    %v3454 = vld [vmem:[#allocation16 + $0x48] sm:$0xff]
    %v3455 = vld [vmem:[#allocation16 + $0x50] sm:$0xff]
    %v3456 = vld [vmem:[#allocation16 + $0x58] sm:$0xff]
    %v3457 = vld [vmem:[#allocation16 + $0x60] sm:$0xff]
    %v3458 = vld [vmem:[#allocation16 + $0x68] sm:$0xff]
    %v3459 = vld [vmem:[#allocation16 + $0x70] sm:$0xff]
    %v3460 = vld [vmem:[#allocation16 + $0x78] sm:$0xff]
    %v3461 = vld [vmem:[#allocation16 + $0x80] sm:$0xff]
    %v3462 = vld [vmem:[#allocation16 + $0x88] sm:$0xff]
    %v3463 = vld [vmem:[#allocation16 + $0x90] sm:$0xff]
    %v3464 = vld [vmem:[#allocation16 + $0x98] sm:$0xff]
    %v3465 = vld [vmem:[#allocation16 + $0xa0] sm:$0xff]
    %v3466 = vld [vmem:[#allocation16 + $0xa8] sm:$0xff]
    %v3467 = vld [vmem:[#allocation16 + $0xb0] sm:$0xff]
    %v3468 = vld [vmem:[#allocation16 + $0xb8] sm:$0xff]
    %v3469 = vld [vmem:[#allocation16 + $0xc0] sm:$0xff]
    %v3470 = vld [vmem:[#allocation16 + $0xc8] sm:$0xff]
    %v3471 = vld [vmem:[#allocation16 + $0xd0] sm:$0xff]
    %v3472 = vld [vmem:[#allocation16 + $0xd8] sm:$0xff]
    %v3473 = vld [vmem:[#allocation16 + $0xe0] sm:$0xff]
    %v3474 = vld [vmem:[#allocation16 + $0xe8] sm:$0xff]
    %v3475 = vld [vmem:[#allocation16 + $0xf0] sm:$0xff]
    %v3476 = vld [vmem:[#allocation16 + $0xf8] sm:$0xff]
    %v3477 = vld [vmem:[#allocation16 + $0x100] sm:$0xff]
    %v3478 = vld [vmem:[#allocation16 + $0x108] sm:$0xff]
    %v3479 = vld [vmem:[#allocation16 + $0x110] sm:$0xff]
    %v3480 = vld [vmem:[#allocation16 + $0x118] sm:$0xff]
    %v3481 = vld [vmem:[#allocation16 + $0x120] sm:$0xff]
    %v3482 = vld [vmem:[#allocation16 + $0x128] sm:$0xff]
    %v3483 = vld [vmem:[#allocation16 + $0x130] sm:$0xff]
    %v3484 = vld [vmem:[#allocation16 + $0x138] sm:$0xff]
    %v3485 = vld [vmem:[#allocation16 + $0x140] sm:$0xff]
    %v3486 = vld [vmem:[#allocation16 + $0x148] sm:$0xff]
    %v3487 = vld [vmem:[#allocation16 + $0x150] sm:$0xff]
    %v3488 = vld [vmem:[#allocation16 + $0x158] sm:$0xff]
    %v3489 = vld [vmem:[#allocation16 + $0x160] sm:$0xff]
    %v3490 = vld [vmem:[#allocation16 + $0x168] sm:$0xff]
    %v3491 = vld [vmem:[#allocation16 + $0x170] sm:$0xff]
    %v3492 = vld [vmem:[#allocation16 + $0x178] sm:$0xff]
    %v3493 = vld [vmem:[#allocation16 + $0x180] sm:$0xff]
    %v3494 = vld [vmem:[#allocation16 + $0x188] sm:$0xff]
    %v3495 = vld [vmem:[#allocation16 + $0x190] sm:$0xff]
    %v3496 = vld [vmem:[#allocation16 + $0x198] sm:$0xff]
    %v3497 = vld [vmem:[#allocation16 + $0x1a0] sm:$0xff]
    %v3498 = vld [vmem:[#allocation16 + $0x1a8] sm:$0xff]
    %v3499 = vld [vmem:[#allocation16 + $0x1b0] sm:$0xff]
    %v3500 = vld [vmem:[#allocation16 + $0x1b8] sm:$0xff]
    %v3501 = vld [vmem:[#allocation16 + $0x1c0] sm:$0xff]
    %v3502 = vld [vmem:[#allocation16 + $0x1c8] sm:$0xff]
    %v3503 = vld [vmem:[#allocation16 + $0x1d0] sm:$0xff]
    %v3504 = vld [vmem:[#allocation16 + $0x1d8] sm:$0xff]
    %v3505 = vld [vmem:[#allocation16 + $0x1e0] sm:$0xff]
    %v3506 = vld [vmem:[#allocation16 + $0x1e8] sm:$0xff]
    %v3507 = vld [vmem:[#allocation16 + $0x1f0] sm:$0xff]
    %v3508 = vld [vmem:[#allocation16 + $0x1f8] sm:$0xff]
    %v3509 = vld [vmem:[#allocation16 + $0x200] sm:$0xff]
    %v3510 = vld [vmem:[#allocation16 + $0x208] sm:$0xff]
    %v3511 = vld [vmem:[#allocation16 + $0x210] sm:$0xff]
    %v3512 = vld [vmem:[#allocation16 + $0x218] sm:$0xff]
    %v3513 = vld [vmem:[#allocation16 + $0x220] sm:$0xff]
    %v3514 = vld [vmem:[#allocation16 + $0x228] sm:$0xff]
    %v3515 = vld [vmem:[#allocation16 + $0x230] sm:$0xff]
    %v3516 = vld [vmem:[#allocation16 + $0x238] sm:$0xff]
    %v3517 = vld [vmem:[#allocation16 + $0x240] sm:$0xff]
    %v3518 = vld [vmem:[#allocation16 + $0x248] sm:$0xff]
    %v3519 = vld [vmem:[#allocation16 + $0x250] sm:$0xff]
    %v3520 = vld [vmem:[#allocation16 + $0x258] sm:$0xff]
    %v3521 = vld [vmem:[#allocation16 + $0x260] sm:$0xff]
    %v3522 = vld [vmem:[#allocation16 + $0x268] sm:$0xff]
    %v3523 = vld [vmem:[#allocation16 + $0x270] sm:$0xff]
    %v3524 = vld [vmem:[#allocation16 + $0x278] sm:$0xff]
    %v3525 = vld [vmem:[#allocation16 + $0x280] sm:$0xff]
    %v3526 = vld [vmem:[#allocation16 + $0x288] sm:$0xff]
    %v3527 = vld [vmem:[#allocation16 + $0x290] sm:$0xff]
    %v3528 = vld [vmem:[#allocation16 + $0x298] sm:$0xff]
    %v3529 = vld [vmem:[#allocation16 + $0x2a0] sm:$0xff]
    %v3530 = vld [vmem:[#allocation16 + $0x2a8] sm:$0xff]
    %v3531 = vld [vmem:[#allocation16 + $0x2b0] sm:$0xff]
    %v3532 = vld [vmem:[#allocation16 + $0x2b8] sm:$0xff]
    %v3533 = vld [vmem:[#allocation16 + $0x2c0] sm:$0xff]
    %v3534 = vld [vmem:[#allocation16 + $0x2c8] sm:$0xff]
    %v3535 = vld [vmem:[#allocation16 + $0x2d0] sm:$0xff]
    %v3536 = vld [vmem:[#allocation16 + $0x2d8] sm:$0xff]
    %v3537 = vld [vmem:[#allocation16 + $0x2e0] sm:$0xff]
    %v3538 = vld [vmem:[#allocation16 + $0x2e8] sm:$0xff]
    %v3539 = vld [vmem:[#allocation16 + $0x2f0] sm:$0xff]
    %v3540 = vld [vmem:[#allocation16 + $0x2f8] sm:$0xff]
    %v3541 = vld [vmem:[#allocation16 + $0x300] sm:$0xff]
    %v3542 = vld [vmem:[#allocation16 + $0x308] sm:$0xff]
    %v3543 = vld [vmem:[#allocation16 + $0x310] sm:$0xff]
    %v3544 = vld [vmem:[#allocation16 + $0x318] sm:$0xff]
    %v3545 = vld [vmem:[#allocation16 + $0x320] sm:$0xff]
    %v3546 = vld [vmem:[#allocation16 + $0x328] sm:$0xff]
    %v3547 = vld [vmem:[#allocation16 + $0x330] sm:$0xff]
    %v3548 = vld [vmem:[#allocation16 + $0x338] sm:$0xff]
    %v3549 = vld [vmem:[#allocation16 + $0x340] sm:$0xff]
    %v3550 = vld [vmem:[#allocation16 + $0x348] sm:$0xff]
    %v3551 = vld [vmem:[#allocation16 + $0x350] sm:$0xff]
    %v3552 = vld [vmem:[#allocation16 + $0x358] sm:$0xff]
    %v3553 = vld [vmem:[#allocation16 + $0x360] sm:$0xff]
    %v3554 = vld [vmem:[#allocation16 + $0x368] sm:$0xff]
    %v3555 = vld [vmem:[#allocation16 + $0x370] sm:$0xff]
    %v3556 = vld [vmem:[#allocation16 + $0x378] sm:$0xff]
    %v3557 = vld [vmem:[#allocation16 + $0x380] sm:$0xff]
    %v3558 = vld [vmem:[#allocation16 + $0x388] sm:$0xff]
    %v3559 = vld [vmem:[#allocation16 + $0x390] sm:$0xff]
    %v3560 = vld [vmem:[#allocation16 + $0x398] sm:$0xff]
    %v3561 = vld [vmem:[#allocation16 + $0x3a0] sm:$0xff]
    %v3562 = vld [vmem:[#allocation16 + $0x3a8] sm:$0xff]
    %v3563 = vld [vmem:[#allocation16 + $0x3b0] sm:$0xff]
    %v3564 = vld [vmem:[#allocation16 + $0x3b8] sm:$0xff]
    %v3565 = vld [vmem:[#allocation16 + $0x3c0] sm:$0xff]
    %v3566 = vld [vmem:[#allocation16 + $0x3c8] sm:$0xff]
    %v3567 = vld [vmem:[#allocation16 + $0x3d0] sm:$0xff]
    %v3568 = vld [vmem:[#allocation16 + $0x3d8] sm:$0xff]
    %v3569 = vld [vmem:[#allocation16 + $0x3e0] sm:$0xff]
    %v3570 = vld [vmem:[#allocation16 + $0x3e8] sm:$0xff]
    %v3571 = vld [vmem:[#allocation16 + $0x3f0] sm:$0xff]
    %v3572 = vld [vmem:[#allocation16 + $0x3f8] sm:$0xff]
    %v3573 = vld [vmem:[#allocation16 + $0x400] sm:$0xff]
    %v3574 = vld [vmem:[#allocation16 + $0x408] sm:$0xff]
    %v3575 = vld [vmem:[#allocation16 + $0x410] sm:$0xff]
    %v3576 = vld [vmem:[#allocation16 + $0x418] sm:$0xff]
    %v3577 = vld [vmem:[#allocation16 + $0x420] sm:$0xff]
    %v3578 = vld [vmem:[#allocation16 + $0x428] sm:$0xff]
    %v3579 = vld [vmem:[#allocation16 + $0x430] sm:$0xff]
    %v3580 = vld [vmem:[#allocation16 + $0x438] sm:$0xff]
    %v3581 = vld [vmem:[#allocation16 + $0x440] sm:$0xff]
    %v3582 = vld [vmem:[#allocation16 + $0x448] sm:$0xff]
    %v3583 = vld [vmem:[#allocation16 + $0x450] sm:$0xff]
    %v3584 = vld [vmem:[#allocation16 + $0x458] sm:$0xff]
    %v3585 = vld [vmem:[#allocation16 + $0x460] sm:$0xff]
    %v3586 = vld [vmem:[#allocation16 + $0x468] sm:$0xff]
    %v3587 = vld [vmem:[#allocation16 + $0x470] sm:$0xff]
    %v3588 = vld [vmem:[#allocation16 + $0x478] sm:$0xff]
    %v3589 = vld [vmem:[#allocation16 + $0x480] sm:$0xff]
    %v3590 = vld [vmem:[#allocation16 + $0x488] sm:$0xff]
    %v3591 = vld [vmem:[#allocation16 + $0x490] sm:$0xff]
    %v3592 = vld [vmem:[#allocation16 + $0x498] sm:$0xff]
    %v3593 = vld [vmem:[#allocation16 + $0x4a0] sm:$0xff]
    %v3594 = vld [vmem:[#allocation16 + $0x4a8] sm:$0xff]
    %v3595 = vld [vmem:[#allocation16 + $0x4b0] sm:$0xff]
    %v3596 = vld [vmem:[#allocation16 + $0x4b8] sm:$0xff]
    %v3597 = vld [vmem:[#allocation16 + $0x4c0] sm:$0xff]
    %v3598 = vld [vmem:[#allocation16 + $0x4c8] sm:$0xff]
    %v3599 = vld [vmem:[#allocation16 + $0x4d0] sm:$0xff]
    %v3600 = vld [vmem:[#allocation16 + $0x4d8] sm:$0xff]
    %v3601 = vld [vmem:[#allocation16 + $0x4e0] sm:$0xff]
    %v3602 = vld [vmem:[#allocation16 + $0x4e8] sm:$0xff]
    %v3603 = vld [vmem:[#allocation16 + $0x4f0] sm:$0xff]
    %v3604 = vld [vmem:[#allocation16 + $0x4f8] sm:$0xff]
    %v3605 = vld [vmem:[#allocation16 + $0x500] sm:$0xff]
    %v3606 = vld [vmem:[#allocation16 + $0x508] sm:$0xff]
    %v3607 = vld [vmem:[#allocation16 + $0x510] sm:$0xff]
    %v3608 = vld [vmem:[#allocation16 + $0x518] sm:$0xff]
    %v3609 = vld [vmem:[#allocation16 + $0x520] sm:$0xff]
    %v3610 = vld [vmem:[#allocation16 + $0x528] sm:$0xff]
    %v3611 = vld [vmem:[#allocation16 + $0x530] sm:$0xff]
    %v3612 = vld [vmem:[#allocation16 + $0x538] sm:$0xff]
    %v3613 = vld [vmem:[#allocation16 + $0x540] sm:$0xff]
    %v3614 = vld [vmem:[#allocation16 + $0x548] sm:$0xff]
    %v3615 = vld [vmem:[#allocation16 + $0x550] sm:$0xff]
    %v3616 = vld [vmem:[#allocation16 + $0x558] sm:$0xff]
    %v3617 = vld [vmem:[#allocation16 + $0x560] sm:$0xff]
    %v3618 = vld [vmem:[#allocation16 + $0x568] sm:$0xff]
    %v3619 = vld [vmem:[#allocation16 + $0x570] sm:$0xff]
    %v3620 = vld [vmem:[#allocation16 + $0x578] sm:$0xff]
    %v3621 = vld [vmem:[#allocation16 + $0x580] sm:$0xff]
    %v3622 = vld [vmem:[#allocation16 + $0x588] sm:$0xff]
    %v3623 = vld [vmem:[#allocation16 + $0x590] sm:$0xff]
    %v3624 = vld [vmem:[#allocation16 + $0x598] sm:$0xff]
    %v3625 = vld [vmem:[#allocation16 + $0x5a0] sm:$0xff]
    %v3626 = vld [vmem:[#allocation16 + $0x5a8] sm:$0xff]
    %v3627 = vld [vmem:[#allocation16 + $0x5b0] sm:$0xff]
    %v3628 = vld [vmem:[#allocation16 + $0x5b8] sm:$0xff]
    %v3629 = vld [vmem:[#allocation16 + $0x5c0] sm:$0xff]
    %v3630 = vld [vmem:[#allocation16 + $0x5c8] sm:$0xff]
    %v3631 = vld [vmem:[#allocation16 + $0x5d0] sm:$0xff]
    %v3632 = vld [vmem:[#allocation16 + $0x5d8] sm:$0xff]
    %v3633 = vld [vmem:[#allocation16 + $0x5e0] sm:$0xff]
    %v3634 = vld [vmem:[#allocation16 + $0x5e8] sm:$0xff]
    %v3635 = vld [vmem:[#allocation16 + $0x5f0] sm:$0xff]
    %v3636 = vld [vmem:[#allocation16 + $0x5f8] sm:$0xff]
    %v3637 = vld [vmem:[#allocation16 + $0x600] sm:$0xff]
    %v3638 = vld [vmem:[#allocation16 + $0x608] sm:$0xff]
    %v3639 = vld [vmem:[#allocation16 + $0x610] sm:$0xff]
    %v3640 = vld [vmem:[#allocation16 + $0x618] sm:$0xff]
    %v3641 = vld [vmem:[#allocation16 + $0x620] sm:$0xff]
    %v3642 = vld [vmem:[#allocation16 + $0x628] sm:$0xff]
    %v3643 = vld [vmem:[#allocation16 + $0x630] sm:$0xff]
    %v3644 = vld [vmem:[#allocation16 + $0x638] sm:$0xff]
    %v3645 = vld [vmem:[#allocation16 + $0x640] sm:$0xff]
    %v3646 = vld [vmem:[#allocation16 + $0x648] sm:$0xff]
    %v3647 = vld [vmem:[#allocation16 + $0x650] sm:$0xff]
    %v3648 = vld [vmem:[#allocation16 + $0x658] sm:$0xff]
    %v3649 = vld [vmem:[#allocation16 + $0x660] sm:$0xff]
    %v3650 = vld [vmem:[#allocation16 + $0x668] sm:$0xff]
    %v3651 = vld [vmem:[#allocation16 + $0x670] sm:$0xff]
    %v3652 = vld [vmem:[#allocation16 + $0x678] sm:$0xff]
    %v3653 = vld [vmem:[#allocation16 + $0x680] sm:$0xff]
    %v3654 = vld [vmem:[#allocation16 + $0x688] sm:$0xff]
    %v3655 = vld [vmem:[#allocation16 + $0x690] sm:$0xff]
    %v3656 = vld [vmem:[#allocation16 + $0x698] sm:$0xff]
    %v3657 = vld [vmem:[#allocation16 + $0x6a0] sm:$0xff]
    %v3658 = vld [vmem:[#allocation16 + $0x6a8] sm:$0xff]
    %v3659 = vld [vmem:[#allocation16 + $0x6b0] sm:$0xff]
    %v3660 = vld [vmem:[#allocation16 + $0x6b8] sm:$0xff]
    %v3661 = vld [vmem:[#allocation16 + $0x6c0] sm:$0xff]
    %v3662 = vld [vmem:[#allocation16 + $0x6c8] sm:$0xff]
    %v3663 = vld [vmem:[#allocation16 + $0x6d0] sm:$0xff]
    %v3664 = vld [vmem:[#allocation16 + $0x6d8] sm:$0xff]
    %v3665 = vld [vmem:[#allocation16 + $0x6e0] sm:$0xff]
    %v3666 = vld [vmem:[#allocation16 + $0x6e8] sm:$0xff]
    %v3667 = vld [vmem:[#allocation16 + $0x6f0] sm:$0xff]
    %v3668 = vld [vmem:[#allocation16 + $0x6f8] sm:$0xff]
    %v3669 = vld [vmem:[#allocation16 + $0x700] sm:$0xff]
    %v3670 = vld [vmem:[#allocation16 + $0x708] sm:$0xff]
    %v3671 = vld [vmem:[#allocation16 + $0x710] sm:$0xff]
    %v3672 = vld [vmem:[#allocation16 + $0x718] sm:$0xff]
    %v3673 = vld [vmem:[#allocation16 + $0x720] sm:$0xff]
    %v3674 = vld [vmem:[#allocation16 + $0x728] sm:$0xff]
    %v3675 = vld [vmem:[#allocation16 + $0x730] sm:$0xff]
    %v3676 = vld [vmem:[#allocation16 + $0x738] sm:$0xff]
    %v3677 = vld [vmem:[#allocation16 + $0x740] sm:$0xff]
    %v3678 = vld [vmem:[#allocation16 + $0x748] sm:$0xff]
    %v3679 = vld [vmem:[#allocation16 + $0x750] sm:$0xff]
    %v3680 = vld [vmem:[#allocation16 + $0x758] sm:$0xff]
    %v3681 = vld [vmem:[#allocation16 + $0x760] sm:$0xff]
    %v3682 = vld [vmem:[#allocation16 + $0x768] sm:$0xff]
    %v3683 = vld [vmem:[#allocation16 + $0x770] sm:$0xff]
    %v3684 = vld [vmem:[#allocation16 + $0x778] sm:$0xff]
    %v3685 = vld [vmem:[#allocation16 + $0x780] sm:$0xff]
    %v3686 = vld [vmem:[#allocation16 + $0x788] sm:$0xff]
    %v3687 = vld [vmem:[#allocation16 + $0x790] sm:$0xff]
    %v3688 = vld [vmem:[#allocation16 + $0x798] sm:$0xff]
    %v3689 = vld [vmem:[#allocation16 + $0x7a0] sm:$0xff]
    %v3690 = vld [vmem:[#allocation16 + $0x7a8] sm:$0xff]
    %v3691 = vld [vmem:[#allocation16 + $0x7b0] sm:$0xff]
    %v3692 = vld [vmem:[#allocation16 + $0x7b8] sm:$0xff]
    %v3693 = vld [vmem:[#allocation16 + $0x7c0] sm:$0xff]
    %v3694 = vld [vmem:[#allocation16 + $0x7c8] sm:$0xff]
    %v3695 = vld [vmem:[#allocation16 + $0x7d0] sm:$0xff]
    %v3696 = vld [vmem:[#allocation16 + $0x7d8] sm:$0xff]
    %v3697 = vld [vmem:[#allocation16 + $0x7e0] sm:$0xff]
    %v3698 = vld [vmem:[#allocation16 + $0x7e8] sm:$0xff]
    %v3699 = vld [vmem:[#allocation16 + $0x7f0] sm:$0xff]
    %v3700 = vld [vmem:[#allocation16 + $0x7f8] sm:$0xff]
    %v3701 = vld [vmem:[#allocation16 + $0x800] sm:$0xff]
    %v3702 = vld [vmem:[#allocation16 + $0x808] sm:$0xff]
    %v3703 = vld [vmem:[#allocation16 + $0x810] sm:$0xff]
    %v3704 = vld [vmem:[#allocation16 + $0x818] sm:$0xff]
    %v3705 = vld [vmem:[#allocation16 + $0x820] sm:$0xff]
    %v3706 = vld [vmem:[#allocation16 + $0x828] sm:$0xff]
    %v3707 = vld [vmem:[#allocation16 + $0x830] sm:$0xff]
    %v3708 = vld [vmem:[#allocation16 + $0x838] sm:$0xff]
    %v3709 = vld [vmem:[#allocation16 + $0x840] sm:$0xff]
    %v3710 = vld [vmem:[#allocation16 + $0x848] sm:$0xff]
    %v3711 = vld [vmem:[#allocation16 + $0x850] sm:$0xff]
    %v3712 = vld [vmem:[#allocation16 + $0x858] sm:$0xff]
    %v3713 = vld [vmem:[#allocation16 + $0x860] sm:$0xff]
    %v3714 = vld [vmem:[#allocation16 + $0x868] sm:$0xff]
    %v3715 = vld [vmem:[#allocation16 + $0x870] sm:$0xff]
    %v3716 = vld [vmem:[#allocation16 + $0x878] sm:$0xff]
    %v3717 = vld [vmem:[#allocation16 + $0x880] sm:$0xff]
    %v3718 = vld [vmem:[#allocation16 + $0x888] sm:$0xff]
    %v3719 = vld [vmem:[#allocation16 + $0x890] sm:$0xff]
    %v3720 = vld [vmem:[#allocation16 + $0x898] sm:$0xff]
    %v3721 = vld [vmem:[#allocation16 + $0x8a0] sm:$0xff]
    %v3722 = vld [vmem:[#allocation16 + $0x8a8] sm:$0xff]
    %v3723 = vld [vmem:[#allocation16 + $0x8b0] sm:$0xff]
    %v3724 = vld [vmem:[#allocation16 + $0x8b8] sm:$0x77]
    %v3725 = vld [vmem:[#allocation16 + $0x8c0] sm:$0x77]
    %v3726 = vld [vmem:[#allocation16 + $0x8c8] sm:$0x77]
    %v3727 = vld [vmem:[#allocation18] sm:$0x3f]
    %v3729 = vperm.slane %v3727, 0
    %v3730 = vperm.slane %v3727, 1
    %v3731 = vperm.slane %v3727, 2
    %v3732 = vperm.slane %v3727, 3
    %v3733 = vperm.slane %v3727, 4
    %v3734 = vperm.slane %v3727, 5
    %v4023 = vunpack.c.l.b16 %v3445
    %v4024 = vunpack.c.h.b16 %v3445
    %v4025 = vunpack.c.l.b16 %v3446
    %v4026 = vunpack.c.h.b16 %v3446
    %v4027 = vunpack.c.l.b16 %v3447
    %v4028 = vunpack.c.h.b16 %v3447
    %v4029 = vunpack.c.l.b16 %v3448
    %v4030 = vunpack.c.h.b16 %v3448
    %v4031 = vunpack.c.l.b16 %v3449
    %v4032 = vunpack.c.h.b16 %v3449
    %v4033 = vunpack.c.l.b16 %v3450
    %v4034 = vunpack.c.h.b16 %v3450
    %v4035 = vunpack.c.l.b16 %v3451
    %v4036 = vunpack.c.h.b16 %v3451
    %v4037 = vunpack.c.l.b16 %v3452
    %v4038 = vunpack.c.h.b16 %v3452
    %v4039 = vunpack.c.l.b16 %v3453
    %v4040 = vunpack.c.h.b16 %v3453
    %v4041 = vunpack.c.l.b16 %v3454
    %v4042 = vunpack.c.h.b16 %v3454
    %v4043 = vunpack.c.l.b16 %v3455
    %v4044 = vunpack.c.h.b16 %v3455
    %v4045 = vunpack.c.l.b16 %v3456
    %v4046 = vunpack.c.h.b16 %v3456
    %v4047 = vunpack.c.l.b16 %v3457
    %v4048 = vunpack.c.h.b16 %v3457
    %v4049 = vunpack.c.l.b16 %v3458
    %v4050 = vunpack.c.h.b16 %v3458
    %v4051 = vunpack.c.l.b16 %v3459
    %v4052 = vunpack.c.h.b16 %v3459
    %v4053 = vunpack.c.l.b16 %v3460
    %v4054 = vunpack.c.h.b16 %v3460
    %v4055 = vunpack.c.l.b16 %v3461
    %v4056 = vunpack.c.h.b16 %v3461
    %v4057 = vunpack.c.l.b16 %v3462
    %v4058 = vunpack.c.h.b16 %v3462
    %v4059 = vunpack.c.l.b16 %v3463
    %v4060 = vunpack.c.h.b16 %v3463
    %v4061 = vunpack.c.l.b16 %v3464
    %v4062 = vunpack.c.h.b16 %v3464
    %v4063 = vunpack.c.l.b16 %v3465
    %v4064 = vunpack.c.h.b16 %v3465
    %v4065 = vunpack.c.l.b16 %v3466
    %v4066 = vunpack.c.h.b16 %v3466
    %v4067 = vunpack.c.l.b16 %v3467
    %v4068 = vunpack.c.h.b16 %v3467
    %v4069 = vunpack.c.l.b16 %v3468
    %v4070 = vunpack.c.h.b16 %v3468
    %v4071 = vunpack.c.l.b16 %v3469
    %v4072 = vunpack.c.h.b16 %v3469
    %v4073 = vunpack.c.l.b16 %v3470
    %v4074 = vunpack.c.h.b16 %v3470
    %v4075 = vunpack.c.l.b16 %v3471
    %v4076 = vunpack.c.h.b16 %v3471
    %v4077 = vunpack.c.l.b16 %v3472
    %v4078 = vunpack.c.h.b16 %v3472
    %v4079 = vunpack.c.l.b16 %v3473
    %v4080 = vunpack.c.h.b16 %v3473
    %v4081 = vunpack.c.l.b16 %v3474
    %v4082 = vunpack.c.h.b16 %v3474
    %v4083 = vunpack.c.l.b16 %v3475
    %v4084 = vunpack.c.h.b16 %v3475
    %v4085 = vunpack.c.l.b16 %v3476
    %v4086 = vunpack.c.h.b16 %v3476
    %v4087 = vunpack.c.l.b16 %v3477
    %v4088 = vunpack.c.h.b16 %v3477
    %v4089 = vunpack.c.l.b16 %v3478
    %v4090 = vunpack.c.h.b16 %v3478
    %v4091 = vunpack.c.l.b16 %v3479
    %v4092 = vunpack.c.h.b16 %v3479
    %v4093 = vunpack.c.l.b16 %v3480
    %v4094 = vunpack.c.h.b16 %v3480
    %v4095 = vunpack.c.l.b16 %v3481
    %v4096 = vunpack.c.h.b16 %v3481
    %v4097 = vunpack.c.l.b16 %v3482
    %v4098 = vunpack.c.h.b16 %v3482
    %v4099 = vunpack.c.l.b16 %v3483
    %v4100 = vunpack.c.h.b16 %v3483
    %v4101 = vunpack.c.l.b16 %v3484
    %v4102 = vunpack.c.h.b16 %v3484
    %v4103 = vunpack.c.l.b16 %v3485
    %v4104 = vunpack.c.h.b16 %v3485
    %v4105 = vunpack.c.l.b16 %v3486
    %v4106 = vunpack.c.h.b16 %v3486
    %v4107 = vunpack.c.l.b16 %v3487
    %v4108 = vunpack.c.h.b16 %v3487
    %v4109 = vunpack.c.l.b16 %v3488
    %v4110 = vunpack.c.h.b16 %v3488
    %v4111 = vunpack.c.l.b16 %v3489
    %v4112 = vunpack.c.h.b16 %v3489
    %v4113 = vunpack.c.l.b16 %v3490
    %v4114 = vunpack.c.h.b16 %v3490
    %v4115 = vunpack.c.l.b16 %v3491
    %v4116 = vunpack.c.h.b16 %v3491
    %v4117 = vunpack.c.l.b16 %v3492
    %v4118 = vunpack.c.h.b16 %v3492
    %v4119 = vunpack.c.l.b16 %v3493
    %v4120 = vunpack.c.h.b16 %v3493
    %v4121 = vunpack.c.l.b16 %v3494
    %v4122 = vunpack.c.h.b16 %v3494
    %v4123 = vunpack.c.l.b16 %v3495
    %v4124 = vunpack.c.h.b16 %v3495
    %v4125 = vunpack.c.l.b16 %v3496
    %v4126 = vunpack.c.h.b16 %v3496
    %v4127 = vunpack.c.l.b16 %v3497
    %v4128 = vunpack.c.h.b16 %v3497
    %v4129 = vunpack.c.l.b16 %v3498
    %v4130 = vunpack.c.h.b16 %v3498
    %v4131 = vunpack.c.l.b16 %v3499
    %v4132 = vunpack.c.h.b16 %v3499
    %v4133 = vunpack.c.l.b16 %v3500
    %v4134 = vunpack.c.h.b16 %v3500
    %v4135 = vunpack.c.l.b16 %v3501
    %v4136 = vunpack.c.h.b16 %v3501
    %v4137 = vunpack.c.l.b16 %v3502
    %v4138 = vunpack.c.h.b16 %v3502
    %v4139 = vunpack.c.l.b16 %v3503
    %v4140 = vunpack.c.h.b16 %v3503
    %v4141 = vunpack.c.l.b16 %v3504
    %v4142 = vunpack.c.h.b16 %v3504
    %v4143 = vunpack.c.l.b16 %v3505
    %v4144 = vunpack.c.h.b16 %v3505
    %v4145 = vunpack.c.l.b16 %v3506
    %v4146 = vunpack.c.h.b16 %v3506
    %v4147 = vunpack.c.l.b16 %v3507
    %v4148 = vunpack.c.h.b16 %v3507
    %v4149 = vunpack.c.l.b16 %v3508
    %v4150 = vunpack.c.h.b16 %v3508
    %v4151 = vunpack.c.l.b16 %v3509
    %v4152 = vunpack.c.h.b16 %v3509
    %v4153 = vunpack.c.l.b16 %v3510
    %v4154 = vunpack.c.h.b16 %v3510
    %v4155 = vunpack.c.l.b16 %v3511
    %v4156 = vunpack.c.h.b16 %v3511
    %v4157 = vunpack.c.l.b16 %v3512
    %v4158 = vunpack.c.h.b16 %v3512
    %v4159 = vunpack.c.l.b16 %v3513
    %v4160 = vunpack.c.h.b16 %v3513
    %v4161 = vunpack.c.l.b16 %v3514
    %v4162 = vunpack.c.h.b16 %v3514
    %v4163 = vunpack.c.l.b16 %v3515
    %v4164 = vunpack.c.h.b16 %v3515
    %v4165 = vunpack.c.l.b16 %v3516
    %v4166 = vunpack.c.h.b16 %v3516
    %v4167 = vunpack.c.l.b16 %v3517
    %v4168 = vunpack.c.h.b16 %v3517
    %v4169 = vunpack.c.l.b16 %v3518
    %v4170 = vunpack.c.h.b16 %v3518
    %v4171 = vunpack.c.l.b16 %v3519
    %v4172 = vunpack.c.h.b16 %v3519
    %v4173 = vunpack.c.l.b16 %v3520
    %v4174 = vunpack.c.h.b16 %v3520
    %v4175 = vunpack.c.l.b16 %v3521
    %v4176 = vunpack.c.h.b16 %v3521
    %v4177 = vunpack.c.l.b16 %v3522
    %v4178 = vunpack.c.h.b16 %v3522
    %v4179 = vunpack.c.l.b16 %v3523
    %v4180 = vunpack.c.h.b16 %v3523
    %v4181 = vunpack.c.l.b16 %v3524
    %v4182 = vunpack.c.h.b16 %v3524
    %v4183 = vunpack.c.l.b16 %v3525
    %v4184 = vunpack.c.h.b16 %v3525
    %v4185 = vunpack.c.l.b16 %v3526
    %v4186 = vunpack.c.h.b16 %v3526
    %v4187 = vunpack.c.l.b16 %v3527
    %v4188 = vunpack.c.h.b16 %v3527
    %v4189 = vunpack.c.l.b16 %v3528
    %v4190 = vunpack.c.h.b16 %v3528
    %v4191 = vunpack.c.l.b16 %v3529
    %v4192 = vunpack.c.h.b16 %v3529
    %v4193 = vunpack.c.l.b16 %v3530
    %v4194 = vunpack.c.h.b16 %v3530
    %v4195 = vunpack.c.l.b16 %v3531
    %v4196 = vunpack.c.h.b16 %v3531
    %v4197 = vunpack.c.l.b16 %v3532
    %v4198 = vunpack.c.h.b16 %v3532
    %v4199 = vunpack.c.l.b16 %v3533
    %v4200 = vunpack.c.h.b16 %v3533
    %v4201 = vunpack.c.l.b16 %v3534
    %v4202 = vunpack.c.h.b16 %v3534
    %v4203 = vunpack.c.l.b16 %v3535
    %v4204 = vunpack.c.h.b16 %v3535
    %v4205 = vunpack.c.l.b16 %v3536
    %v4206 = vunpack.c.h.b16 %v3536
    %v4207 = vunpack.c.l.b16 %v3537
    %v4208 = vunpack.c.h.b16 %v3537
    %v4209 = vunpack.c.l.b16 %v3538
    %v4210 = vunpack.c.h.b16 %v3538
    %v4211 = vunpack.c.l.b16 %v3539
    %v4212 = vunpack.c.h.b16 %v3539
    %v4213 = vunpack.c.l.b16 %v3540
    %v4214 = vunpack.c.h.b16 %v3540
    %v4215 = vunpack.c.l.b16 %v3541
    %v4216 = vunpack.c.h.b16 %v3541
    %v4217 = vunpack.c.l.b16 %v3542
    %v4218 = vunpack.c.h.b16 %v3542
    %v4219 = vunpack.c.l.b16 %v3543
    %v4220 = vunpack.c.h.b16 %v3543
    %v4221 = vunpack.c.l.b16 %v3544
    %v4222 = vunpack.c.h.b16 %v3544
    %v4223 = vunpack.c.l.b16 %v3545
    %v4224 = vunpack.c.h.b16 %v3545
    %v4225 = vunpack.c.l.b16 %v3546
    %v4226 = vunpack.c.h.b16 %v3546
    %v4227 = vunpack.c.l.b16 %v3547
    %v4228 = vunpack.c.h.b16 %v3547
    %v4229 = vunpack.c.l.b16 %v3548
    %v4230 = vunpack.c.h.b16 %v3548
    %v4231 = vunpack.c.l.b16 %v3549
    %v4232 = vunpack.c.h.b16 %v3549
    %v4233 = vunpack.c.l.b16 %v3550
    %v4234 = vunpack.c.h.b16 %v3550
    %v4235 = vunpack.c.l.b16 %v3551
    %v4236 = vunpack.c.h.b16 %v3551
    %v4237 = vunpack.c.l.b16 %v3552
    %v4238 = vunpack.c.h.b16 %v3552
    %v4239 = vunpack.c.l.b16 %v3553
    %v4240 = vunpack.c.h.b16 %v3553
    %v4241 = vunpack.c.l.b16 %v3554
    %v4242 = vunpack.c.h.b16 %v3554
    %v4243 = vunpack.c.l.b16 %v3555
    %v4244 = vunpack.c.h.b16 %v3555
    %v4245 = vunpack.c.l.b16 %v3556
    %v4246 = vunpack.c.h.b16 %v3556
    %v4247 = vunpack.c.l.b16 %v3557
    %v4248 = vunpack.c.h.b16 %v3557
    %v4249 = vunpack.c.l.b16 %v3558
    %v4250 = vunpack.c.h.b16 %v3558
    %v4251 = vunpack.c.l.b16 %v3559
    %v4252 = vunpack.c.h.b16 %v3559
    %v4253 = vunpack.c.l.b16 %v3560
    %v4254 = vunpack.c.h.b16 %v3560
    %v4255 = vunpack.c.l.b16 %v3561
    %v4256 = vunpack.c.h.b16 %v3561
    %v4257 = vunpack.c.l.b16 %v3562
    %v4258 = vunpack.c.h.b16 %v3562
    %v4259 = vunpack.c.l.b16 %v3563
    %v4260 = vunpack.c.h.b16 %v3563
    %v4261 = vunpack.c.l.b16 %v3564
    %v4262 = vunpack.c.h.b16 %v3564
    %v4263 = vunpack.c.l.b16 %v3565
    %v4264 = vunpack.c.h.b16 %v3565
    %v4265 = vunpack.c.l.b16 %v3566
    %v4266 = vunpack.c.h.b16 %v3566
    %v4267 = vunpack.c.l.b16 %v3567
    %v4268 = vunpack.c.h.b16 %v3567
    %v4269 = vunpack.c.l.b16 %v3568
    %v4270 = vunpack.c.h.b16 %v3568
    %v4271 = vunpack.c.l.b16 %v3569
    %v4272 = vunpack.c.h.b16 %v3569
    %v4273 = vunpack.c.l.b16 %v3570
    %v4274 = vunpack.c.h.b16 %v3570
    %v4275 = vunpack.c.l.b16 %v3571
    %v4276 = vunpack.c.h.b16 %v3571
    %v4277 = vunpack.c.l.b16 %v3572
    %v4278 = vunpack.c.h.b16 %v3572
    %v4279 = vunpack.c.l.b16 %v3573
    %v4280 = vunpack.c.h.b16 %v3573
    %v4281 = vunpack.c.l.b16 %v3574
    %v4282 = vunpack.c.h.b16 %v3574
    %v4283 = vunpack.c.l.b16 %v3575
    %v4284 = vunpack.c.h.b16 %v3575
    %v4285 = vunpack.c.l.b16 %v3576
    %v4286 = vunpack.c.h.b16 %v3576
    %v4287 = vunpack.c.l.b16 %v3577
    %v4288 = vunpack.c.h.b16 %v3577
    %v4289 = vunpack.c.l.b16 %v3578
    %v4290 = vunpack.c.h.b16 %v3578
    %v4291 = vunpack.c.l.b16 %v3579
    %v4292 = vunpack.c.h.b16 %v3579
    %v4293 = vunpack.c.l.b16 %v3580
    %v4294 = vunpack.c.h.b16 %v3580
    %v4295 = vunpack.c.l.b16 %v3581
    %v4296 = vunpack.c.h.b16 %v3581
    %v4297 = vunpack.c.l.b16 %v3582
    %v4298 = vunpack.c.h.b16 %v3582
    %v4299 = vunpack.c.l.b16 %v3583
    %v4300 = vunpack.c.h.b16 %v3583
    %v4301 = vunpack.c.l.b16 %v3584
    %v4302 = vunpack.c.h.b16 %v3584
    %v4303 = vunpack.c.l.b16 %v3585
    %v4304 = vunpack.c.h.b16 %v3585
    %v4305 = vunpack.c.l.b16 %v3586
    %v4306 = vunpack.c.h.b16 %v3586
    %v4307 = vunpack.c.l.b16 %v3587
    %v4308 = vunpack.c.h.b16 %v3587
    %v4309 = vunpack.c.l.b16 %v3588
    %v4310 = vunpack.c.h.b16 %v3588
    %v4311 = vunpack.c.l.b16 %v3589
    %v4312 = vunpack.c.h.b16 %v3589
    %v4313 = vunpack.c.l.b16 %v3590
    %v4314 = vunpack.c.h.b16 %v3590
    %v4315 = vunpack.c.l.b16 %v3591
    %v4316 = vunpack.c.h.b16 %v3591
    %v4317 = vunpack.c.l.b16 %v3592
    %v4318 = vunpack.c.h.b16 %v3592
    %v4319 = vunpack.c.l.b16 %v3593
    %v4320 = vunpack.c.h.b16 %v3593
    %v4321 = vunpack.c.l.b16 %v3594
    %v4322 = vunpack.c.h.b16 %v3594
    %v4323 = vunpack.c.l.b16 %v3595
    %v4324 = vunpack.c.h.b16 %v3595
    %v4325 = vunpack.c.l.b16 %v3596
    %v4326 = vunpack.c.h.b16 %v3596
    %v4327 = vunpack.c.l.b16 %v3597
    %v4328 = vunpack.c.h.b16 %v3597
    %v4329 = vunpack.c.l.b16 %v3598
    %v4330 = vunpack.c.h.b16 %v3598
    %v4331 = vunpack.c.l.b16 %v3599
    %v4332 = vunpack.c.h.b16 %v3599
    %v4333 = vunpack.c.l.b16 %v3600
    %v4334 = vunpack.c.h.b16 %v3600
    %v4335 = vunpack.c.l.b16 %v3601
    %v4336 = vunpack.c.h.b16 %v3601
    %v4337 = vunpack.c.l.b16 %v3602
    %v4338 = vunpack.c.h.b16 %v3602
    %v4339 = vunpack.c.l.b16 %v3603
    %v4340 = vunpack.c.h.b16 %v3603
    %v4341 = vunpack.c.l.b16 %v3604
    %v4342 = vunpack.c.h.b16 %v3604
    %v4343 = vunpack.c.l.b16 %v3605
    %v4344 = vunpack.c.h.b16 %v3605
    %v4345 = vunpack.c.l.b16 %v3606
    %v4346 = vunpack.c.h.b16 %v3606
    %v4347 = vunpack.c.l.b16 %v3607
    %v4348 = vunpack.c.h.b16 %v3607
    %v4349 = vunpack.c.l.b16 %v3608
    %v4350 = vunpack.c.h.b16 %v3608
    %v4351 = vunpack.c.l.b16 %v3609
    %v4352 = vunpack.c.h.b16 %v3609
    %v4353 = vunpack.c.l.b16 %v3610
    %v4354 = vunpack.c.h.b16 %v3610
    %v4355 = vunpack.c.l.b16 %v3611
    %v4356 = vunpack.c.h.b16 %v3611
    %v4357 = vunpack.c.l.b16 %v3612
    %v4358 = vunpack.c.h.b16 %v3612
    %v4359 = vunpack.c.l.b16 %v3613
    %v4360 = vunpack.c.h.b16 %v3613
    %v4361 = vunpack.c.l.b16 %v3614
    %v4362 = vunpack.c.h.b16 %v3614
    %v4363 = vunpack.c.l.b16 %v3615
    %v4364 = vunpack.c.h.b16 %v3615
    %v4365 = vunpack.c.l.b16 %v3616
    %v4366 = vunpack.c.h.b16 %v3616
    %v4367 = vunpack.c.l.b16 %v3617
    %v4368 = vunpack.c.h.b16 %v3617
    %v4369 = vunpack.c.l.b16 %v3618
    %v4370 = vunpack.c.h.b16 %v3618
    %v4371 = vunpack.c.l.b16 %v3619
    %v4372 = vunpack.c.h.b16 %v3619
    %v4373 = vunpack.c.l.b16 %v3620
    %v4374 = vunpack.c.h.b16 %v3620
    %v4375 = vunpack.c.l.b16 %v3621
    %v4376 = vunpack.c.h.b16 %v3621
    %v4377 = vunpack.c.l.b16 %v3622
    %v4378 = vunpack.c.h.b16 %v3622
    %v4379 = vunpack.c.l.b16 %v3623
    %v4380 = vunpack.c.h.b16 %v3623
    %v4381 = vunpack.c.l.b16 %v3624
    %v4382 = vunpack.c.h.b16 %v3624
    %v4383 = vunpack.c.l.b16 %v3625
    %v4384 = vunpack.c.h.b16 %v3625
    %v4385 = vunpack.c.l.b16 %v3626
    %v4386 = vunpack.c.h.b16 %v3626
    %v4387 = vunpack.c.l.b16 %v3627
    %v4388 = vunpack.c.h.b16 %v3627
    %v4389 = vunpack.c.l.b16 %v3628
    %v4390 = vunpack.c.h.b16 %v3628
    %v4391 = vunpack.c.l.b16 %v3629
    %v4392 = vunpack.c.h.b16 %v3629
    %v4393 = vunpack.c.l.b16 %v3630
    %v4394 = vunpack.c.h.b16 %v3630
    %v4395 = vunpack.c.l.b16 %v3631
    %v4396 = vunpack.c.h.b16 %v3631
    %v4397 = vunpack.c.l.b16 %v3632
    %v4398 = vunpack.c.h.b16 %v3632
    %v4399 = vunpack.c.l.b16 %v3633
    %v4400 = vunpack.c.h.b16 %v3633
    %v4401 = vunpack.c.l.b16 %v3634
    %v4402 = vunpack.c.h.b16 %v3634
    %v4403 = vunpack.c.l.b16 %v3635
    %v4404 = vunpack.c.h.b16 %v3635
    %v4405 = vunpack.c.l.b16 %v3636
    %v4406 = vunpack.c.h.b16 %v3636
    %v4407 = vunpack.c.l.b16 %v3637
    %v4408 = vunpack.c.h.b16 %v3637
    %v4409 = vunpack.c.l.b16 %v3638
    %v4410 = vunpack.c.h.b16 %v3638
    %v4411 = vunpack.c.l.b16 %v3639
    %v4412 = vunpack.c.h.b16 %v3639
    %v4413 = vunpack.c.l.b16 %v3640
    %v4414 = vunpack.c.h.b16 %v3640
    %v4415 = vunpack.c.l.b16 %v3641
    %v4416 = vunpack.c.h.b16 %v3641
    %v4417 = vunpack.c.l.b16 %v3642
    %v4418 = vunpack.c.h.b16 %v3642
    %v4419 = vunpack.c.l.b16 %v3643
    %v4420 = vunpack.c.h.b16 %v3643
    %v4421 = vunpack.c.l.b16 %v3644
    %v4422 = vunpack.c.h.b16 %v3644
    %v4423 = vunpack.c.l.b16 %v3645
    %v4424 = vunpack.c.h.b16 %v3645
    %v4425 = vunpack.c.l.b16 %v3646
    %v4426 = vunpack.c.h.b16 %v3646
    %v4427 = vunpack.c.l.b16 %v3647
    %v4428 = vunpack.c.h.b16 %v3647
    %v4429 = vunpack.c.l.b16 %v3648
    %v4430 = vunpack.c.h.b16 %v3648
    %v4431 = vunpack.c.l.b16 %v3649
    %v4432 = vunpack.c.h.b16 %v3649
    %v4433 = vunpack.c.l.b16 %v3650
    %v4434 = vunpack.c.h.b16 %v3650
    %v4435 = vunpack.c.l.b16 %v3651
    %v4436 = vunpack.c.h.b16 %v3651
    %v4437 = vunpack.c.l.b16 %v3652
    %v4438 = vunpack.c.h.b16 %v3652
    %v4439 = vunpack.c.l.b16 %v3653
    %v4440 = vunpack.c.h.b16 %v3653
    %v4441 = vunpack.c.l.b16 %v3654
    %v4442 = vunpack.c.h.b16 %v3654
    %v4443 = vunpack.c.l.b16 %v3655
    %v4444 = vunpack.c.h.b16 %v3655
    %v4445 = vunpack.c.l.b16 %v3656
    %v4446 = vunpack.c.h.b16 %v3656
    %v4447 = vunpack.c.l.b16 %v3657
    %v4448 = vunpack.c.h.b16 %v3657
    %v4449 = vunpack.c.l.b16 %v3658
    %v4450 = vunpack.c.h.b16 %v3658
    %v4451 = vunpack.c.l.b16 %v3659
    %v4452 = vunpack.c.h.b16 %v3659
    %v4453 = vunpack.c.l.b16 %v3660
    %v4454 = vunpack.c.h.b16 %v3660
    %v4455 = vunpack.c.l.b16 %v3661
    %v4456 = vunpack.c.h.b16 %v3661
    %v4457 = vunpack.c.l.b16 %v3662
    %v4458 = vunpack.c.h.b16 %v3662
    %v4459 = vunpack.c.l.b16 %v3663
    %v4460 = vunpack.c.h.b16 %v3663
    %v4461 = vunpack.c.l.b16 %v3664
    %v4462 = vunpack.c.h.b16 %v3664
    %v4463 = vunpack.c.l.b16 %v3665
    %v4464 = vunpack.c.h.b16 %v3665
    %v4465 = vunpack.c.l.b16 %v3666
    %v4466 = vunpack.c.h.b16 %v3666
    %v4467 = vunpack.c.l.b16 %v3667
    %v4468 = vunpack.c.h.b16 %v3667
    %v4469 = vunpack.c.l.b16 %v3668
    %v4470 = vunpack.c.h.b16 %v3668
    %v4471 = vunpack.c.l.b16 %v3669
    %v4472 = vunpack.c.h.b16 %v3669
    %v4473 = vunpack.c.l.b16 %v3670
    %v4474 = vunpack.c.h.b16 %v3670
    %v4475 = vunpack.c.l.b16 %v3671
    %v4476 = vunpack.c.h.b16 %v3671
    %v4477 = vunpack.c.l.b16 %v3672
    %v4478 = vunpack.c.h.b16 %v3672
    %v4479 = vunpack.c.l.b16 %v3673
    %v4480 = vunpack.c.h.b16 %v3673
    %v4481 = vunpack.c.l.b16 %v3674
    %v4482 = vunpack.c.h.b16 %v3674
    %v4483 = vunpack.c.l.b16 %v3675
    %v4484 = vunpack.c.h.b16 %v3675
    %v4485 = vunpack.c.l.b16 %v3676
    %v4486 = vunpack.c.h.b16 %v3676
    %v4487 = vunpack.c.l.b16 %v3677
    %v4488 = vunpack.c.h.b16 %v3677
    %v4489 = vunpack.c.l.b16 %v3678
    %v4490 = vunpack.c.h.b16 %v3678
    %v4491 = vunpack.c.l.b16 %v3679
    %v4492 = vunpack.c.h.b16 %v3679
    %v4493 = vunpack.c.l.b16 %v3680
    %v4494 = vunpack.c.h.b16 %v3680
    %v4495 = vunpack.c.l.b16 %v3681
    %v4496 = vunpack.c.h.b16 %v3681
    %v4497 = vunpack.c.l.b16 %v3682
    %v4498 = vunpack.c.h.b16 %v3682
    %v4499 = vunpack.c.l.b16 %v3683
    %v4500 = vunpack.c.h.b16 %v3683
    %v4501 = vunpack.c.l.b16 %v3684
    %v4502 = vunpack.c.h.b16 %v3684
    %v4503 = vunpack.c.l.b16 %v3685
    %v4504 = vunpack.c.h.b16 %v3685
    %v4505 = vunpack.c.l.b16 %v3686
    %v4506 = vunpack.c.h.b16 %v3686
    %v4507 = vunpack.c.l.b16 %v3687
    %v4508 = vunpack.c.h.b16 %v3687
    %v4509 = vunpack.c.l.b16 %v3688
    %v4510 = vunpack.c.h.b16 %v3688
    %v4511 = vunpack.c.l.b16 %v3689
    %v4512 = vunpack.c.h.b16 %v3689
    %v4513 = vunpack.c.l.b16 %v3690
    %v4514 = vunpack.c.h.b16 %v3690
    %v4515 = vunpack.c.l.b16 %v3691
    %v4516 = vunpack.c.h.b16 %v3691
    %v4517 = vunpack.c.l.b16 %v3692
    %v4518 = vunpack.c.h.b16 %v3692
    %v4519 = vunpack.c.l.b16 %v3693
    %v4520 = vunpack.c.h.b16 %v3693
    %v4521 = vunpack.c.l.b16 %v3694
    %v4522 = vunpack.c.h.b16 %v3694
    %v4523 = vunpack.c.l.b16 %v3695
    %v4524 = vunpack.c.h.b16 %v3695
    %v4525 = vunpack.c.l.b16 %v3696
    %v4526 = vunpack.c.h.b16 %v3696
    %v4527 = vunpack.c.l.b16 %v3697
    %v4528 = vunpack.c.h.b16 %v3697
    %v4529 = vunpack.c.l.b16 %v3698
    %v4530 = vunpack.c.h.b16 %v3698
    %v4531 = vunpack.c.l.b16 %v3699
    %v4532 = vunpack.c.h.b16 %v3699
    %v4533 = vunpack.c.l.b16 %v3700
    %v4534 = vunpack.c.h.b16 %v3700
    %v4535 = vunpack.c.l.b16 %v3701
    %v4536 = vunpack.c.h.b16 %v3701
    %v4537 = vunpack.c.l.b16 %v3702
    %v4538 = vunpack.c.h.b16 %v3702
    %v4539 = vunpack.c.l.b16 %v3703
    %v4540 = vunpack.c.h.b16 %v3703
    %v4541 = vunpack.c.l.b16 %v3704
    %v4542 = vunpack.c.h.b16 %v3704
    %v4543 = vunpack.c.l.b16 %v3705
    %v4544 = vunpack.c.h.b16 %v3705
    %v4545 = vunpack.c.l.b16 %v3706
    %v4546 = vunpack.c.h.b16 %v3706
    %v4547 = vunpack.c.l.b16 %v3707
    %v4548 = vunpack.c.h.b16 %v3707
    %v4549 = vunpack.c.l.b16 %v3708
    %v4550 = vunpack.c.h.b16 %v3708
    %v4551 = vunpack.c.l.b16 %v3709
    %v4552 = vunpack.c.h.b16 %v3709
    %v4553 = vunpack.c.l.b16 %v3710
    %v4554 = vunpack.c.h.b16 %v3710
    %v4555 = vunpack.c.l.b16 %v3711
    %v4556 = vunpack.c.h.b16 %v3711
    %v4557 = vunpack.c.l.b16 %v3712
    %v4558 = vunpack.c.h.b16 %v3712
    %v4559 = vunpack.c.l.b16 %v3713
    %v4560 = vunpack.c.h.b16 %v3713
    %v4561 = vunpack.c.l.b16 %v3714
    %v4562 = vunpack.c.h.b16 %v3714
    %v4563 = vunpack.c.l.b16 %v3715
    %v4564 = vunpack.c.h.b16 %v3715
    %v4565 = vunpack.c.l.b16 %v3716
    %v4566 = vunpack.c.h.b16 %v3716
    %v4567 = vunpack.c.l.b16 %v3717
    %v4568 = vunpack.c.h.b16 %v3717
    %v4569 = vunpack.c.l.b16 %v3718
    %v4570 = vunpack.c.h.b16 %v3718
    %v4571 = vunpack.c.l.b16 %v3719
    %v4572 = vunpack.c.h.b16 %v3719
    %v4573 = vunpack.c.l.b16 %v3720
    %v4574 = vunpack.c.h.b16 %v3720
    %v4575 = vunpack.c.l.b16 %v3721
    %v4576 = vunpack.c.h.b16 %v3721
    %v4577 = vunpack.c.l.b16 %v3722
    %v4578 = vunpack.c.h.b16 %v3722
    %v4579 = vunpack.c.l.b16 %v3723
    %v4580 = vunpack.c.h.b16 %v3723
    %v4581 = vunpack.c.l.b16 %v3724
    %v4582 = vunpack.c.h.b16 %v3724
    %v4583 = vunpack.c.l.b16 %v3725
    %v4584 = vunpack.c.h.b16 %v3725
    %v4585 = vunpack.c.l.b16 %v3726
    %v4586 = vunpack.c.h.b16 %v3726
    %v4587 = vpack.c.b16 %v4029, %v4023
    %v4588 = vpack.c.b16 %v4030, %v4024
    %v4589 = vpack.c.b16 %v4031, %v4025
    %v4590 = vpack.c.b16 %v4032, %v4026
    %v4591 = vpack.c.b16 %v4033, %v4027
    %v4592 = vpack.c.b16 %v4034, %v4028
    %v4593 = vpack.c.b16 %v4041, %v4035
    %v4594 = vpack.c.b16 %v4042, %v4036
    %v4595 = vpack.c.b16 %v4043, %v4037
    %v4596 = vpack.c.b16 %v4044, %v4038
    %v4597 = vpack.c.b16 %v4045, %v4039
    %v4598 = vpack.c.b16 %v4046, %v4040
    %v4599 = vpack.c.b16 %v4053, %v4047
    %v4600 = vpack.c.b16 %v4054, %v4048
    %v4601 = vpack.c.b16 %v4055, %v4049
    %v4602 = vpack.c.b16 %v4056, %v4050
    %v4603 = vpack.c.b16 %v4057, %v4051
    %v4604 = vpack.c.b16 %v4058, %v4052
    %v4605 = vpack.c.b16 %v4065, %v4059
    %v4606 = vpack.c.b16 %v4066, %v4060
    %v4607 = vpack.c.b16 %v4067, %v4061
    %v4608 = vpack.c.b16 %v4068, %v4062
    %v4609 = vpack.c.b16 %v4069, %v4063
    %v4610 = vpack.c.b16 %v4070, %v4064
    %v4611 = vpack.c.b16 %v4077, %v4071
    %v4612 = vpack.c.b16 %v4078, %v4072
    %v4613 = vpack.c.b16 %v4079, %v4073
    %v4614 = vpack.c.b16 %v4080, %v4074
    %v4615 = vpack.c.b16 %v4081, %v4075
    %v4616 = vpack.c.b16 %v4082, %v4076
    %v4617 = vpack.c.b16 %v4089, %v4083
    %v4618 = vpack.c.b16 %v4090, %v4084
    %v4619 = vpack.c.b16 %v4091, %v4085
    %v4620 = vpack.c.b16 %v4092, %v4086
    %v4621 = vpack.c.b16 %v4093, %v4087
    %v4622 = vpack.c.b16 %v4094, %v4088
    %v4623 = vpack.c.b16 %v4101, %v4095
    %v4624 = vpack.c.b16 %v4102, %v4096
    %v4625 = vpack.c.b16 %v4103, %v4097
    %v4626 = vpack.c.b16 %v4104, %v4098
    %v4627 = vpack.c.b16 %v4105, %v4099
    %v4628 = vpack.c.b16 %v4106, %v4100
    %v4629 = vpack.c.b16 %v4113, %v4107
    %v4630 = vpack.c.b16 %v4114, %v4108
    %v4631 = vpack.c.b16 %v4115, %v4109
    %v4632 = vpack.c.b16 %v4116, %v4110
    %v4633 = vpack.c.b16 %v4117, %v4111
    %v4634 = vpack.c.b16 %v4118, %v4112
    %v4635 = vpack.c.b16 %v4125, %v4119
    %v4636 = vpack.c.b16 %v4126, %v4120
    %v4637 = vpack.c.b16 %v4127, %v4121
    %v4638 = vpack.c.b16 %v4128, %v4122
    %v4639 = vpack.c.b16 %v4129, %v4123
    %v4640 = vpack.c.b16 %v4130, %v4124
    %v4641 = vpack.c.b16 %v4137, %v4131
    %v4642 = vpack.c.b16 %v4138, %v4132
    %v4643 = vpack.c.b16 %v4139, %v4133
    %v4644 = vpack.c.b16 %v4140, %v4134
    %v4645 = vpack.c.b16 %v4141, %v4135
    %v4646 = vpack.c.b16 %v4142, %v4136
    %v4647 = vpack.c.b16 %v4149, %v4143
    %v4648 = vpack.c.b16 %v4150, %v4144
    %v4649 = vpack.c.b16 %v4151, %v4145
    %v4650 = vpack.c.b16 %v4152, %v4146
    %v4651 = vpack.c.b16 %v4153, %v4147
    %v4652 = vpack.c.b16 %v4154, %v4148
    %v4653 = vpack.c.b16 %v4161, %v4155
    %v4654 = vpack.c.b16 %v4162, %v4156
    %v4655 = vpack.c.b16 %v4163, %v4157
    %v4656 = vpack.c.b16 %v4164, %v4158
    %v4657 = vpack.c.b16 %v4165, %v4159
    %v4658 = vpack.c.b16 %v4166, %v4160
    %v4659 = vpack.c.b16 %v4173, %v4167
    %v4660 = vpack.c.b16 %v4174, %v4168
    %v4661 = vpack.c.b16 %v4175, %v4169
    %v4662 = vpack.c.b16 %v4176, %v4170
    %v4663 = vpack.c.b16 %v4177, %v4171
    %v4664 = vpack.c.b16 %v4178, %v4172
    %v4665 = vpack.c.b16 %v4185, %v4179
    %v4666 = vpack.c.b16 %v4186, %v4180
    %v4667 = vpack.c.b16 %v4187, %v4181
    %v4668 = vpack.c.b16 %v4188, %v4182
    %v4669 = vpack.c.b16 %v4189, %v4183
    %v4670 = vpack.c.b16 %v4190, %v4184
    %v4671 = vpack.c.b16 %v4197, %v4191
    %v4672 = vpack.c.b16 %v4198, %v4192
    %v4673 = vpack.c.b16 %v4199, %v4193
    %v4674 = vpack.c.b16 %v4200, %v4194
    %v4675 = vpack.c.b16 %v4201, %v4195
    %v4676 = vpack.c.b16 %v4202, %v4196
    %v4677 = vpack.c.b16 %v4209, %v4203
    %v4678 = vpack.c.b16 %v4210, %v4204
    %v4679 = vpack.c.b16 %v4211, %v4205
    %v4680 = vpack.c.b16 %v4212, %v4206
    %v4681 = vpack.c.b16 %v4213, %v4207
    %v4682 = vpack.c.b16 %v4214, %v4208
    %v4683 = vpack.c.b16 %v4221, %v4215
    %v4684 = vpack.c.b16 %v4222, %v4216
    %v4685 = vpack.c.b16 %v4223, %v4217
    %v4686 = vpack.c.b16 %v4224, %v4218
    %v4687 = vpack.c.b16 %v4225, %v4219
    %v4688 = vpack.c.b16 %v4226, %v4220
    %v4689 = vpack.c.b16 %v4233, %v4227
    %v4690 = vpack.c.b16 %v4234, %v4228
    %v4691 = vpack.c.b16 %v4235, %v4229
    %v4692 = vpack.c.b16 %v4236, %v4230
    %v4693 = vpack.c.b16 %v4237, %v4231
    %v4694 = vpack.c.b16 %v4238, %v4232
    %v4695 = vpack.c.b16 %v4245, %v4239
    %v4696 = vpack.c.b16 %v4246, %v4240
    %v4697 = vpack.c.b16 %v4247, %v4241
    %v4698 = vpack.c.b16 %v4248, %v4242
    %v4699 = vpack.c.b16 %v4249, %v4243
    %v4700 = vpack.c.b16 %v4250, %v4244
    %v4701 = vpack.c.b16 %v4257, %v4251
    %v4702 = vpack.c.b16 %v4258, %v4252
    %v4703 = vpack.c.b16 %v4259, %v4253
    %v4704 = vpack.c.b16 %v4260, %v4254
    %v4705 = vpack.c.b16 %v4261, %v4255
    %v4706 = vpack.c.b16 %v4262, %v4256
    %v4707 = vpack.c.b16 %v4269, %v4263
    %v4708 = vpack.c.b16 %v4270, %v4264
    %v4709 = vpack.c.b16 %v4271, %v4265
    %v4710 = vpack.c.b16 %v4272, %v4266
    %v4711 = vpack.c.b16 %v4273, %v4267
    %v4712 = vpack.c.b16 %v4274, %v4268
    %v4713 = vpack.c.b16 %v4281, %v4275
    %v4714 = vpack.c.b16 %v4282, %v4276
    %v4715 = vpack.c.b16 %v4283, %v4277
    %v4716 = vpack.c.b16 %v4284, %v4278
    %v4717 = vpack.c.b16 %v4285, %v4279
    %v4718 = vpack.c.b16 %v4286, %v4280
    %v4719 = vpack.c.b16 %v4293, %v4287
    %v4720 = vpack.c.b16 %v4294, %v4288
    %v4721 = vpack.c.b16 %v4295, %v4289
    %v4722 = vpack.c.b16 %v4296, %v4290
    %v4723 = vpack.c.b16 %v4297, %v4291
    %v4724 = vpack.c.b16 %v4298, %v4292
    %v4725 = vpack.c.b16 %v4305, %v4299
    %v4726 = vpack.c.b16 %v4306, %v4300
    %v4727 = vpack.c.b16 %v4307, %v4301
    %v4728 = vpack.c.b16 %v4308, %v4302
    %v4729 = vpack.c.b16 %v4309, %v4303
    %v4730 = vpack.c.b16 %v4310, %v4304
    %v4731 = vpack.c.b16 %v4317, %v4311
    %v4732 = vpack.c.b16 %v4318, %v4312
    %v4733 = vpack.c.b16 %v4319, %v4313
    %v4734 = vpack.c.b16 %v4320, %v4314
    %v4735 = vpack.c.b16 %v4321, %v4315
    %v4736 = vpack.c.b16 %v4322, %v4316
    %v4737 = vpack.c.b16 %v4329, %v4323
    %v4738 = vpack.c.b16 %v4330, %v4324
    %v4739 = vpack.c.b16 %v4331, %v4325
    %v4740 = vpack.c.b16 %v4332, %v4326
    %v4741 = vpack.c.b16 %v4333, %v4327
    %v4742 = vpack.c.b16 %v4334, %v4328
    %v4743 = vpack.c.b16 %v4341, %v4335
    %v4744 = vpack.c.b16 %v4342, %v4336
    %v4745 = vpack.c.b16 %v4343, %v4337
    %v4746 = vpack.c.b16 %v4344, %v4338
    %v4747 = vpack.c.b16 %v4345, %v4339
    %v4748 = vpack.c.b16 %v4346, %v4340
    %v4749 = vpack.c.b16 %v4353, %v4347
    %v4750 = vpack.c.b16 %v4354, %v4348
    %v4751 = vpack.c.b16 %v4355, %v4349
    %v4752 = vpack.c.b16 %v4356, %v4350
    %v4753 = vpack.c.b16 %v4357, %v4351
    %v4754 = vpack.c.b16 %v4358, %v4352
    %v4755 = vpack.c.b16 %v4365, %v4359
    %v4756 = vpack.c.b16 %v4366, %v4360
    %v4757 = vpack.c.b16 %v4367, %v4361
    %v4758 = vpack.c.b16 %v4368, %v4362
    %v4759 = vpack.c.b16 %v4369, %v4363
    %v4760 = vpack.c.b16 %v4370, %v4364
    %v4761 = vpack.c.b16 %v4377, %v4371
    %v4762 = vpack.c.b16 %v4378, %v4372
    %v4763 = vpack.c.b16 %v4379, %v4373
    %v4764 = vpack.c.b16 %v4380, %v4374
    %v4765 = vpack.c.b16 %v4381, %v4375
    %v4766 = vpack.c.b16 %v4382, %v4376
    %v4767 = vpack.c.b16 %v4389, %v4383
    %v4768 = vpack.c.b16 %v4390, %v4384
    %v4769 = vpack.c.b16 %v4391, %v4385
    %v4770 = vpack.c.b16 %v4392, %v4386
    %v4771 = vpack.c.b16 %v4393, %v4387
    %v4772 = vpack.c.b16 %v4394, %v4388
    %v4773 = vpack.c.b16 %v4401, %v4395
    %v4774 = vpack.c.b16 %v4402, %v4396
    %v4775 = vpack.c.b16 %v4403, %v4397
    %v4776 = vpack.c.b16 %v4404, %v4398
    %v4777 = vpack.c.b16 %v4405, %v4399
    %v4778 = vpack.c.b16 %v4406, %v4400
    %v4779 = vpack.c.b16 %v4413, %v4407
    %v4780 = vpack.c.b16 %v4414, %v4408
    %v4781 = vpack.c.b16 %v4415, %v4409
    %v4782 = vpack.c.b16 %v4416, %v4410
    %v4783 = vpack.c.b16 %v4417, %v4411
    %v4784 = vpack.c.b16 %v4418, %v4412
    %v4785 = vpack.c.b16 %v4425, %v4419
    %v4786 = vpack.c.b16 %v4426, %v4420
    %v4787 = vpack.c.b16 %v4427, %v4421
    %v4788 = vpack.c.b16 %v4428, %v4422
    %v4789 = vpack.c.b16 %v4429, %v4423
    %v4790 = vpack.c.b16 %v4430, %v4424
    %v4791 = vpack.c.b16 %v4437, %v4431
    %v4792 = vpack.c.b16 %v4438, %v4432
    %v4793 = vpack.c.b16 %v4439, %v4433
    %v4794 = vpack.c.b16 %v4440, %v4434
    %v4795 = vpack.c.b16 %v4441, %v4435
    %v4796 = vpack.c.b16 %v4442, %v4436
    %v4797 = vpack.c.b16 %v4449, %v4443
    %v4798 = vpack.c.b16 %v4450, %v4444
    %v4799 = vpack.c.b16 %v4451, %v4445
    %v4800 = vpack.c.b16 %v4452, %v4446
    %v4801 = vpack.c.b16 %v4453, %v4447
    %v4802 = vpack.c.b16 %v4454, %v4448
    %v4803 = vpack.c.b16 %v4461, %v4455
    %v4804 = vpack.c.b16 %v4462, %v4456
    %v4805 = vpack.c.b16 %v4463, %v4457
    %v4806 = vpack.c.b16 %v4464, %v4458
    %v4807 = vpack.c.b16 %v4465, %v4459
    %v4808 = vpack.c.b16 %v4466, %v4460
    %v4809 = vpack.c.b16 %v4473, %v4467
    %v4810 = vpack.c.b16 %v4474, %v4468
    %v4811 = vpack.c.b16 %v4475, %v4469
    %v4812 = vpack.c.b16 %v4476, %v4470
    %v4813 = vpack.c.b16 %v4477, %v4471
    %v4814 = vpack.c.b16 %v4478, %v4472
    %v4815 = vpack.c.b16 %v4485, %v4479
    %v4816 = vpack.c.b16 %v4486, %v4480
    %v4817 = vpack.c.b16 %v4487, %v4481
    %v4818 = vpack.c.b16 %v4488, %v4482
    %v4819 = vpack.c.b16 %v4489, %v4483
    %v4820 = vpack.c.b16 %v4490, %v4484
    %v4821 = vpack.c.b16 %v4497, %v4491
    %v4822 = vpack.c.b16 %v4498, %v4492
    %v4823 = vpack.c.b16 %v4499, %v4493
    %v4824 = vpack.c.b16 %v4500, %v4494
    %v4825 = vpack.c.b16 %v4501, %v4495
    %v4826 = vpack.c.b16 %v4502, %v4496
    %v4827 = vpack.c.b16 %v4509, %v4503
    %v4828 = vpack.c.b16 %v4510, %v4504
    %v4829 = vpack.c.b16 %v4511, %v4505
    %v4830 = vpack.c.b16 %v4512, %v4506
    %v4831 = vpack.c.b16 %v4513, %v4507
    %v4832 = vpack.c.b16 %v4514, %v4508
    %v4833 = vpack.c.b16 %v4521, %v4515
    %v4834 = vpack.c.b16 %v4522, %v4516
    %v4835 = vpack.c.b16 %v4523, %v4517
    %v4836 = vpack.c.b16 %v4524, %v4518
    %v4837 = vpack.c.b16 %v4525, %v4519
    %v4838 = vpack.c.b16 %v4526, %v4520
    %v4839 = vpack.c.b16 %v4533, %v4527
    %v4840 = vpack.c.b16 %v4534, %v4528
    %v4841 = vpack.c.b16 %v4535, %v4529
    %v4842 = vpack.c.b16 %v4536, %v4530
    %v4843 = vpack.c.b16 %v4537, %v4531
    %v4844 = vpack.c.b16 %v4538, %v4532
    %v4845 = vpack.c.b16 %v4545, %v4539
    %v4846 = vpack.c.b16 %v4546, %v4540
    %v4847 = vpack.c.b16 %v4547, %v4541
    %v4848 = vpack.c.b16 %v4548, %v4542
    %v4849 = vpack.c.b16 %v4549, %v4543
    %v4850 = vpack.c.b16 %v4550, %v4544
    %v4851 = vpack.c.b16 %v4557, %v4551
    %v4852 = vpack.c.b16 %v4558, %v4552
    %v4853 = vpack.c.b16 %v4559, %v4553
    %v4854 = vpack.c.b16 %v4560, %v4554
    %v4855 = vpack.c.b16 %v4561, %v4555
    %v4856 = vpack.c.b16 %v4562, %v4556
    %v4857 = vpack.c.b16 %v4569, %v4563
    %v4858 = vpack.c.b16 %v4570, %v4564
    %v4859 = vpack.c.b16 %v4571, %v4565
    %v4860 = vpack.c.b16 %v4572, %v4566
    %v4861 = vpack.c.b16 %v4573, %v4567
    %v4862 = vpack.c.b16 %v4574, %v4568
    %v4863 = vpack.c.b16 %v4581, %v4575
    %v4864 = vpack.c.b16 %v4582, %v4576
    %v4865 = vpack.c.b16 %v4583, %v4577
    %v4866 = vpack.c.b16 %v4584, %v4578
    %v4867 = vpack.c.b16 %v4585, %v4579
    %v4868 = vpack.c.b16 %v4586, %v4580
    %v5146 = vsel %vm2192, %v3444, 0
    %v5149 = vsel %vm2196, %v4863, 0
    %v5152 = vsel %vm2196, %v4864, 0
    %v5155 = vsel %vm2196, %v4865, 0
    %v5158 = vsel %vm2196, %v4866, 0
    %v5161 = vsel %vm2196, %v4867, 0
    %v5164 = vsel %vm2196, %v4868, 0
    %5166 = vmatpush.bf16.msra.mxu0 %v4629
    %5167 = vmatpush.bf16.msra.mxu0 %v4623
    %5168 = vmatpush.bf16.msra.mxu0 %v4617
    %5169 = vmatpush.bf16.msra.mxu0 %v4611
    %5170 = vmatpush.bf16.msra.mxu0 %v4605
    %5171 = vmatpush.bf16.msra.mxu0 %v4599
    %5172 = vmatpush.bf16.msra.mxu0 %v4593
    %5173 = vmatpush.bf16.msra.mxu0 %v4587
    %5174 = vmatmul.bf16.gmra.mxu0 %v3439
    %v5175 = vpop.f32.mrf.mxu0
    %v5176 = vadd.f32 %v3729, %v5175
    %v5177 = vpop.f32.mrf.mxu0
    %5178 = vdwg.mxu0
    %5179 = vmatpush.bf16.msra.mxu0 %v4677
    %5180 = vmatpush.bf16.msra.mxu0 %v4671
    %5181 = vmatpush.bf16.msra.mxu0 %v4665
    %5182 = vmatpush.bf16.msra.mxu0 %v4659
    %5183 = vmatpush.bf16.msra.mxu0 %v4653
    %5184 = vmatpush.bf16.msra.mxu0 %v4647
    %5185 = vmatpush.bf16.msra.mxu0 %v4641
    %5186 = vmatpush.bf16.msra.mxu0 %v4635
    %5187 = vmatmul.bf16.gmra.mxu0 %v3440
    %v5188 = vpop.f32.mrf.mxu0
    %v5189 = vadd.f32 %v5176, %v5188
    %v5190 = vpop.f32.mrf.mxu0
    %5191 = vdwg.mxu0
    %5192 = vmatpush.bf16.msra.mxu0 %v4725
    %5193 = vmatpush.bf16.msra.mxu0 %v4719
    %5194 = vmatpush.bf16.msra.mxu0 %v4713
    %5195 = vmatpush.bf16.msra.mxu0 %v4707
    %5196 = vmatpush.bf16.msra.mxu0 %v4701
    %5197 = vmatpush.bf16.msra.mxu0 %v4695
    %5198 = vmatpush.bf16.msra.mxu0 %v4689
    %5199 = vmatpush.bf16.msra.mxu0 %v4683
    %5200 = vmatmul.bf16.gmra.mxu0 %v3441
    %v5201 = vpop.f32.mrf.mxu0
    %v5202 = vadd.f32 %v5189, %v5201
    %v5203 = vpop.f32.mrf.mxu0
    %5204 = vdwg.mxu0
    %5205 = vmatpush.bf16.msra.mxu0 %v4773
    %5206 = vmatpush.bf16.msra.mxu0 %v4767
    %5207 = vmatpush.bf16.msra.mxu0 %v4761
    %5208 = vmatpush.bf16.msra.mxu0 %v4755
    %5209 = vmatpush.bf16.msra.mxu0 %v4749
    %5210 = vmatpush.bf16.msra.mxu0 %v4743
    %5211 = vmatpush.bf16.msra.mxu0 %v4737
    %5212 = vmatpush.bf16.msra.mxu0 %v4731
    %5213 = vmatmul.bf16.gmra.mxu0 %v3442
    %v5214 = vpop.f32.mrf.mxu0
    %v5215 = vadd.f32 %v5202, %v5214
    %v5216 = vpop.f32.mrf.mxu0
    %5217 = vdwg.mxu0
    %5218 = vmatpush.bf16.msra.mxu0 %v4821
    %5219 = vmatpush.bf16.msra.mxu0 %v4815
    %5220 = vmatpush.bf16.msra.mxu0 %v4809
    %5221 = vmatpush.bf16.msra.mxu0 %v4803
    %5222 = vmatpush.bf16.msra.mxu0 %v4797
    %5223 = vmatpush.bf16.msra.mxu0 %v4791
    %5224 = vmatpush.bf16.msra.mxu0 %v4785
    %5225 = vmatpush.bf16.msra.mxu0 %v4779
    %5226 = vmatmul.bf16.gmra.mxu0 %v3443
    %v5227 = vpop.f32.mrf.mxu0
    %v5228 = vadd.f32 %v5215, %v5227
    %v5229 = vpop.f32.mrf.mxu0
    %5230 = vdwg.mxu0
    %5231 = vmatpush.bf16.msra.mxu0 0
    %5232 = vmatpush.bf16.msra.mxu0 %v5149
    %5233 = vmatpush.bf16.msra.mxu0 %v4857
    %5234 = vmatpush.bf16.msra.mxu0 %v4851
    %5235 = vmatpush.bf16.msra.mxu0 %v4845
    %5236 = vmatpush.bf16.msra.mxu0 %v4839
    %5237 = vmatpush.bf16.msra.mxu0 %v4833
    %5238 = vmatpush.bf16.msra.mxu0 %v4827
    %5239 = vmatmul.bf16.gmra.mxu0 %v5146
    %v5240 = vpop.f32.mrf.mxu0
    %v5241 = vadd.f32 %v5228, %v5240
    %v5242 = vpop.f32.mrf.mxu0
    %5243 = vdwg.mxu0
    %5244 = vmatpush.bf16.msra.mxu0 %v4630
    %5245 = vmatpush.bf16.msra.mxu0 %v4624
    %5246 = vmatpush.bf16.msra.mxu0 %v4618
    %5247 = vmatpush.bf16.msra.mxu0 %v4612
    %5248 = vmatpush.bf16.msra.mxu0 %v4606
    %5249 = vmatpush.bf16.msra.mxu0 %v4600
    %5250 = vmatpush.bf16.msra.mxu0 %v4594
    %5251 = vmatpush.bf16.msra.mxu0 %v4588
    %5252 = vmatmul.bf16.gmra.mxu0 %v3439
    %v5253 = vpop.f32.mrf.mxu0
    %v5254 = vadd.f32 %v3730, %v5253
    %v5255 = vpop.f32.mrf.mxu0
    %5256 = vdwg.mxu0
    %5257 = vmatpush.bf16.msra.mxu0 %v4678
    %5258 = vmatpush.bf16.msra.mxu0 %v4672
    %5259 = vmatpush.bf16.msra.mxu0 %v4666
    %5260 = vmatpush.bf16.msra.mxu0 %v4660
    %5261 = vmatpush.bf16.msra.mxu0 %v4654
    %5262 = vmatpush.bf16.msra.mxu0 %v4648
    %5263 = vmatpush.bf16.msra.mxu0 %v4642
    %5264 = vmatpush.bf16.msra.mxu0 %v4636
    %5265 = vmatmul.bf16.gmra.mxu0 %v3440
    %v5266 = vpop.f32.mrf.mxu0
    %v5267 = vadd.f32 %v5254, %v5266
    %v5268 = vpop.f32.mrf.mxu0
    %5269 = vdwg.mxu0
    %5270 = vmatpush.bf16.msra.mxu0 %v4726
    %5271 = vmatpush.bf16.msra.mxu0 %v4720
    %5272 = vmatpush.bf16.msra.mxu0 %v4714
    %5273 = vmatpush.bf16.msra.mxu0 %v4708
    %5274 = vmatpush.bf16.msra.mxu0 %v4702
    %5275 = vmatpush.bf16.msra.mxu0 %v4696
    %5276 = vmatpush.bf16.msra.mxu0 %v4690
    %5277 = vmatpush.bf16.msra.mxu0 %v4684
    %5278 = vmatmul.bf16.gmra.mxu0 %v3441
    %v5279 = vpop.f32.mrf.mxu0
    %v5280 = vadd.f32 %v5267, %v5279
    %v5281 = vpop.f32.mrf.mxu0
    %5282 = vdwg.mxu0
    %5283 = vmatpush.bf16.msra.mxu0 %v4774
    %5284 = vmatpush.bf16.msra.mxu0 %v4768
    %5285 = vmatpush.bf16.msra.mxu0 %v4762
    %5286 = vmatpush.bf16.msra.mxu0 %v4756
    %5287 = vmatpush.bf16.msra.mxu0 %v4750
    %5288 = vmatpush.bf16.msra.mxu0 %v4744
    %5289 = vmatpush.bf16.msra.mxu0 %v4738
    %5290 = vmatpush.bf16.msra.mxu0 %v4732
    %5291 = vmatmul.bf16.gmra.mxu0 %v3442
    %v5292 = vpop.f32.mrf.mxu0
    %v5293 = vadd.f32 %v5280, %v5292
    %v5294 = vpop.f32.mrf.mxu0
    %5295 = vdwg.mxu0
    %5296 = vmatpush.bf16.msra.mxu0 %v4822
    %5297 = vmatpush.bf16.msra.mxu0 %v4816
    %5298 = vmatpush.bf16.msra.mxu0 %v4810
    %5299 = vmatpush.bf16.msra.mxu0 %v4804
    %5300 = vmatpush.bf16.msra.mxu0 %v4798
    %5301 = vmatpush.bf16.msra.mxu0 %v4792
    %5302 = vmatpush.bf16.msra.mxu0 %v4786
    %5303 = vmatpush.bf16.msra.mxu0 %v4780
    %5304 = vmatmul.bf16.gmra.mxu0 %v3443
    %v5305 = vpop.f32.mrf.mxu0
    %v5306 = vadd.f32 %v5293, %v5305
    %v5307 = vpop.f32.mrf.mxu0
    %5308 = vdwg.mxu0
    %5309 = vmatpush.bf16.msra.mxu0 0
    %5310 = vmatpush.bf16.msra.mxu0 %v5152
    %5311 = vmatpush.bf16.msra.mxu0 %v4858
    %5312 = vmatpush.bf16.msra.mxu0 %v4852
    %5313 = vmatpush.bf16.msra.mxu0 %v4846
    %5314 = vmatpush.bf16.msra.mxu0 %v4840
    %5315 = vmatpush.bf16.msra.mxu0 %v4834
    %5316 = vmatpush.bf16.msra.mxu0 %v4828
    %5317 = vmatmul.bf16.gmra.mxu0 %v5146
    %v5318 = vpop.f32.mrf.mxu0
    %v5319 = vadd.f32 %v5306, %v5318
    %v5320 = vpop.f32.mrf.mxu0
    %5321 = vdwg.mxu0
    %5322 = vmatpush.bf16.msra.mxu0 %v4631
    %5323 = vmatpush.bf16.msra.mxu0 %v4625
    %5324 = vmatpush.bf16.msra.mxu0 %v4619
    %5325 = vmatpush.bf16.msra.mxu0 %v4613
    %5326 = vmatpush.bf16.msra.mxu0 %v4607
    %5327 = vmatpush.bf16.msra.mxu0 %v4601
    %5328 = vmatpush.bf16.msra.mxu0 %v4595
    %5329 = vmatpush.bf16.msra.mxu0 %v4589
    %5330 = vmatmul.bf16.gmra.mxu0 %v3439
    %v5331 = vpop.f32.mrf.mxu0
    %v5332 = vadd.f32 %v3731, %v5331
    %v5333 = vpop.f32.mrf.mxu0
    %5334 = vdwg.mxu0
    %5335 = vmatpush.bf16.msra.mxu0 %v4679
    %5336 = vmatpush.bf16.msra.mxu0 %v4673
    %5337 = vmatpush.bf16.msra.mxu0 %v4667
    %5338 = vmatpush.bf16.msra.mxu0 %v4661
    %5339 = vmatpush.bf16.msra.mxu0 %v4655
    %5340 = vmatpush.bf16.msra.mxu0 %v4649
    %5341 = vmatpush.bf16.msra.mxu0 %v4643
    %5342 = vmatpush.bf16.msra.mxu0 %v4637
    %5343 = vmatmul.bf16.gmra.mxu0 %v3440
    %v5344 = vpop.f32.mrf.mxu0
    %v5345 = vadd.f32 %v5332, %v5344
    %v5346 = vpop.f32.mrf.mxu0
    %5347 = vdwg.mxu0
    %5348 = vmatpush.bf16.msra.mxu0 %v4727
    %5349 = vmatpush.bf16.msra.mxu0 %v4721
    %5350 = vmatpush.bf16.msra.mxu0 %v4715
    %5351 = vmatpush.bf16.msra.mxu0 %v4709
    %5352 = vmatpush.bf16.msra.mxu0 %v4703
    %5353 = vmatpush.bf16.msra.mxu0 %v4697
    %5354 = vmatpush.bf16.msra.mxu0 %v4691
    %5355 = vmatpush.bf16.msra.mxu0 %v4685
    %5356 = vmatmul.bf16.gmra.mxu0 %v3441
    %v5357 = vpop.f32.mrf.mxu0
    %v5358 = vadd.f32 %v5345, %v5357
    %v5359 = vpop.f32.mrf.mxu0
    %5360 = vdwg.mxu0
    %5361 = vmatpush.bf16.msra.mxu0 %v4775
    %5362 = vmatpush.bf16.msra.mxu0 %v4769
    %5363 = vmatpush.bf16.msra.mxu0 %v4763
    %5364 = vmatpush.bf16.msra.mxu0 %v4757
    %5365 = vmatpush.bf16.msra.mxu0 %v4751
    %5366 = vmatpush.bf16.msra.mxu0 %v4745
    %5367 = vmatpush.bf16.msra.mxu0 %v4739
    %5368 = vmatpush.bf16.msra.mxu0 %v4733
    %5369 = vmatmul.bf16.gmra.mxu0 %v3442
    %v5370 = vpop.f32.mrf.mxu0
    %v5371 = vadd.f32 %v5358, %v5370
    %v5372 = vpop.f32.mrf.mxu0
    %5373 = vdwg.mxu0
    %5374 = vmatpush.bf16.msra.mxu0 %v4823
    %5375 = vmatpush.bf16.msra.mxu0 %v4817
    %5376 = vmatpush.bf16.msra.mxu0 %v4811
    %5377 = vmatpush.bf16.msra.mxu0 %v4805
    %5378 = vmatpush.bf16.msra.mxu0 %v4799
    %5379 = vmatpush.bf16.msra.mxu0 %v4793
    %5380 = vmatpush.bf16.msra.mxu0 %v4787
    %5381 = vmatpush.bf16.msra.mxu0 %v4781
    %5382 = vmatmul.bf16.gmra.mxu0 %v3443
    %v5383 = vpop.f32.mrf.mxu0
    %v5384 = vadd.f32 %v5371, %v5383
    %v5385 = vpop.f32.mrf.mxu0
    %5386 = vdwg.mxu0
    %5387 = vmatpush.bf16.msra.mxu0 0
    %5388 = vmatpush.bf16.msra.mxu0 %v5155
    %5389 = vmatpush.bf16.msra.mxu0 %v4859
    %5390 = vmatpush.bf16.msra.mxu0 %v4853
    %5391 = vmatpush.bf16.msra.mxu0 %v4847
    %5392 = vmatpush.bf16.msra.mxu0 %v4841
    %5393 = vmatpush.bf16.msra.mxu0 %v4835
    %5394 = vmatpush.bf16.msra.mxu0 %v4829
    %5395 = vmatmul.bf16.gmra.mxu0 %v5146
    %v5396 = vpop.f32.mrf.mxu0
    %v5397 = vadd.f32 %v5384, %v5396
    %v5398 = vpop.f32.mrf.mxu0
    %5399 = vdwg.mxu0
    %5400 = vmatpush.bf16.msra.mxu0 %v4632
    %5401 = vmatpush.bf16.msra.mxu0 %v4626
    %5402 = vmatpush.bf16.msra.mxu0 %v4620
    %5403 = vmatpush.bf16.msra.mxu0 %v4614
    %5404 = vmatpush.bf16.msra.mxu0 %v4608
    %5405 = vmatpush.bf16.msra.mxu0 %v4602
    %5406 = vmatpush.bf16.msra.mxu0 %v4596
    %5407 = vmatpush.bf16.msra.mxu0 %v4590
    %5408 = vmatmul.bf16.gmra.mxu0 %v3439
    %v5409 = vpop.f32.mrf.mxu0
    %v5410 = vadd.f32 %v3732, %v5409
    %v5411 = vpop.f32.mrf.mxu0
    %5412 = vdwg.mxu0
    %5413 = vmatpush.bf16.msra.mxu0 %v4680
    %5414 = vmatpush.bf16.msra.mxu0 %v4674
    %5415 = vmatpush.bf16.msra.mxu0 %v4668
    %5416 = vmatpush.bf16.msra.mxu0 %v4662
    %5417 = vmatpush.bf16.msra.mxu0 %v4656
    %5418 = vmatpush.bf16.msra.mxu0 %v4650
    %5419 = vmatpush.bf16.msra.mxu0 %v4644
    %5420 = vmatpush.bf16.msra.mxu0 %v4638
    %5421 = vmatmul.bf16.gmra.mxu0 %v3440
    %v5422 = vpop.f32.mrf.mxu0
    %v5423 = vadd.f32 %v5410, %v5422
    %v5424 = vpop.f32.mrf.mxu0
    %5425 = vdwg.mxu0
    %5426 = vmatpush.bf16.msra.mxu0 %v4728
    %5427 = vmatpush.bf16.msra.mxu0 %v4722
    %5428 = vmatpush.bf16.msra.mxu0 %v4716
    %5429 = vmatpush.bf16.msra.mxu0 %v4710
    %5430 = vmatpush.bf16.msra.mxu0 %v4704
    %5431 = vmatpush.bf16.msra.mxu0 %v4698
    %5432 = vmatpush.bf16.msra.mxu0 %v4692
    %5433 = vmatpush.bf16.msra.mxu0 %v4686
    %5434 = vmatmul.bf16.gmra.mxu0 %v3441
    %v5435 = vpop.f32.mrf.mxu0
    %v5436 = vadd.f32 %v5423, %v5435
    %v5437 = vpop.f32.mrf.mxu0
    %5438 = vdwg.mxu0
    %5439 = vmatpush.bf16.msra.mxu0 %v4776
    %5440 = vmatpush.bf16.msra.mxu0 %v4770
    %5441 = vmatpush.bf16.msra.mxu0 %v4764
    %5442 = vmatpush.bf16.msra.mxu0 %v4758
    %5443 = vmatpush.bf16.msra.mxu0 %v4752
    %5444 = vmatpush.bf16.msra.mxu0 %v4746
    %5445 = vmatpush.bf16.msra.mxu0 %v4740
    %5446 = vmatpush.bf16.msra.mxu0 %v4734
    %5447 = vmatmul.bf16.gmra.mxu0 %v3442
    %v5448 = vpop.f32.mrf.mxu0
    %v5449 = vadd.f32 %v5436, %v5448
    %v5450 = vpop.f32.mrf.mxu0
    %5451 = vdwg.mxu0
    %5452 = vmatpush.bf16.msra.mxu0 %v4824
    %5453 = vmatpush.bf16.msra.mxu0 %v4818
    %5454 = vmatpush.bf16.msra.mxu0 %v4812
    %5455 = vmatpush.bf16.msra.mxu0 %v4806
    %5456 = vmatpush.bf16.msra.mxu0 %v4800
    %5457 = vmatpush.bf16.msra.mxu0 %v4794
    %5458 = vmatpush.bf16.msra.mxu0 %v4788
    %5459 = vmatpush.bf16.msra.mxu0 %v4782
    %5460 = vmatmul.bf16.gmra.mxu0 %v3443
    %v5461 = vpop.f32.mrf.mxu0
    %v5462 = vadd.f32 %v5449, %v5461
    %v5463 = vpop.f32.mrf.mxu0
    %5464 = vdwg.mxu0
    %5465 = vmatpush.bf16.msra.mxu0 0
    %5466 = vmatpush.bf16.msra.mxu0 %v5158
    %5467 = vmatpush.bf16.msra.mxu0 %v4860
    %5468 = vmatpush.bf16.msra.mxu0 %v4854
    %5469 = vmatpush.bf16.msra.mxu0 %v4848
    %5470 = vmatpush.bf16.msra.mxu0 %v4842
    %5471 = vmatpush.bf16.msra.mxu0 %v4836
    %5472 = vmatpush.bf16.msra.mxu0 %v4830
    %5473 = vmatmul.bf16.gmra.mxu0 %v5146
    %v5474 = vpop.f32.mrf.mxu0
    %v5475 = vadd.f32 %v5462, %v5474
    %v5476 = vpop.f32.mrf.mxu0
    %5477 = vdwg.mxu0
    %5478 = vmatpush.bf16.msra.mxu0 %v4633
    %5479 = vmatpush.bf16.msra.mxu0 %v4627
    %5480 = vmatpush.bf16.msra.mxu0 %v4621
    %5481 = vmatpush.bf16.msra.mxu0 %v4615
    %5482 = vmatpush.bf16.msra.mxu0 %v4609
    %5483 = vmatpush.bf16.msra.mxu0 %v4603
    %5484 = vmatpush.bf16.msra.mxu0 %v4597
    %5485 = vmatpush.bf16.msra.mxu0 %v4591
    %5486 = vmatmul.bf16.gmra.mxu0 %v3439
    %v5487 = vpop.f32.mrf.mxu0
    %v5488 = vadd.f32 %v3733, %v5487
    %v5489 = vpop.f32.mrf.mxu0
    %5490 = vdwg.mxu0
    %5491 = vmatpush.bf16.msra.mxu0 %v4681
    %5492 = vmatpush.bf16.msra.mxu0 %v4675
    %5493 = vmatpush.bf16.msra.mxu0 %v4669
    %5494 = vmatpush.bf16.msra.mxu0 %v4663
    %5495 = vmatpush.bf16.msra.mxu0 %v4657
    %5496 = vmatpush.bf16.msra.mxu0 %v4651
    %5497 = vmatpush.bf16.msra.mxu0 %v4645
    %5498 = vmatpush.bf16.msra.mxu0 %v4639
    %5499 = vmatmul.bf16.gmra.mxu0 %v3440
    %v5500 = vpop.f32.mrf.mxu0
    %v5501 = vadd.f32 %v5488, %v5500
    %v5502 = vpop.f32.mrf.mxu0
    %5503 = vdwg.mxu0
    %5504 = vmatpush.bf16.msra.mxu0 %v4729
    %5505 = vmatpush.bf16.msra.mxu0 %v4723
    %5506 = vmatpush.bf16.msra.mxu0 %v4717
    %5507 = vmatpush.bf16.msra.mxu0 %v4711
    %5508 = vmatpush.bf16.msra.mxu0 %v4705
    %5509 = vmatpush.bf16.msra.mxu0 %v4699
    %5510 = vmatpush.bf16.msra.mxu0 %v4693
    %5511 = vmatpush.bf16.msra.mxu0 %v4687
    %5512 = vmatmul.bf16.gmra.mxu0 %v3441
    %v5513 = vpop.f32.mrf.mxu0
    %v5514 = vadd.f32 %v5501, %v5513
    %v5515 = vpop.f32.mrf.mxu0
    %5516 = vdwg.mxu0
    %5517 = vmatpush.bf16.msra.mxu0 %v4777
    %5518 = vmatpush.bf16.msra.mxu0 %v4771
    %5519 = vmatpush.bf16.msra.mxu0 %v4765
    %5520 = vmatpush.bf16.msra.mxu0 %v4759
    %5521 = vmatpush.bf16.msra.mxu0 %v4753
    %5522 = vmatpush.bf16.msra.mxu0 %v4747
    %5523 = vmatpush.bf16.msra.mxu0 %v4741
    %5524 = vmatpush.bf16.msra.mxu0 %v4735
    %5525 = vmatmul.bf16.gmra.mxu0 %v3442
    %v5526 = vpop.f32.mrf.mxu0
    %v5527 = vadd.f32 %v5514, %v5526
    %v5528 = vpop.f32.mrf.mxu0
    %5529 = vdwg.mxu0
    %5530 = vmatpush.bf16.msra.mxu0 %v4825
    %5531 = vmatpush.bf16.msra.mxu0 %v4819
    %5532 = vmatpush.bf16.msra.mxu0 %v4813
    %5533 = vmatpush.bf16.msra.mxu0 %v4807
    %5534 = vmatpush.bf16.msra.mxu0 %v4801
    %5535 = vmatpush.bf16.msra.mxu0 %v4795
    %5536 = vmatpush.bf16.msra.mxu0 %v4789
    %5537 = vmatpush.bf16.msra.mxu0 %v4783
    %5538 = vmatmul.bf16.gmra.mxu0 %v3443
    %v5539 = vpop.f32.mrf.mxu0
    %v5540 = vadd.f32 %v5527, %v5539
    %v5541 = vpop.f32.mrf.mxu0
    %5542 = vdwg.mxu0
    %5543 = vmatpush.bf16.msra.mxu0 0
    %5544 = vmatpush.bf16.msra.mxu0 %v5161
    %5545 = vmatpush.bf16.msra.mxu0 %v4861
    %5546 = vmatpush.bf16.msra.mxu0 %v4855
    %5547 = vmatpush.bf16.msra.mxu0 %v4849
    %5548 = vmatpush.bf16.msra.mxu0 %v4843
    %5549 = vmatpush.bf16.msra.mxu0 %v4837
    %5550 = vmatpush.bf16.msra.mxu0 %v4831
    %5551 = vmatmul.bf16.gmra.mxu0 %v5146
    %v5552 = vpop.f32.mrf.mxu0
    %v5553 = vadd.f32 %v5540, %v5552
    %v5554 = vpop.f32.mrf.mxu0
    %5555 = vdwg.mxu0
    %5556 = vmatpush.bf16.msra.mxu0 %v4634
    %5557 = vmatpush.bf16.msra.mxu0 %v4628
    %5558 = vmatpush.bf16.msra.mxu0 %v4622
    %5559 = vmatpush.bf16.msra.mxu0 %v4616
    %5560 = vmatpush.bf16.msra.mxu0 %v4610
    %5561 = vmatpush.bf16.msra.mxu0 %v4604
    %5562 = vmatpush.bf16.msra.mxu0 %v4598
    %5563 = vmatpush.bf16.msra.mxu0 %v4592
    %5564 = vmatmul.bf16.gmra.mxu0 %v3439
    %v5565 = vpop.f32.mrf.mxu0
    %v5566 = vadd.f32 %v3734, %v5565
    %v5567 = vpop.f32.mrf.mxu0
    %5568 = vdwg.mxu0
    %5569 = vmatpush.bf16.msra.mxu0 %v4682
    %5570 = vmatpush.bf16.msra.mxu0 %v4676
    %5571 = vmatpush.bf16.msra.mxu0 %v4670
    %5572 = vmatpush.bf16.msra.mxu0 %v4664
    %5573 = vmatpush.bf16.msra.mxu0 %v4658
    %5574 = vmatpush.bf16.msra.mxu0 %v4652
    %5575 = vmatpush.bf16.msra.mxu0 %v4646
    %5576 = vmatpush.bf16.msra.mxu0 %v4640
    %5577 = vmatmul.bf16.gmra.mxu0 %v3440
    %v5578 = vpop.f32.mrf.mxu0
    %v5579 = vadd.f32 %v5566, %v5578
    %v5580 = vpop.f32.mrf.mxu0
    %5581 = vdwg.mxu0
    %5582 = vmatpush.bf16.msra.mxu0 %v4730
    %5583 = vmatpush.bf16.msra.mxu0 %v4724
    %5584 = vmatpush.bf16.msra.mxu0 %v4718
    %5585 = vmatpush.bf16.msra.mxu0 %v4712
    %5586 = vmatpush.bf16.msra.mxu0 %v4706
    %5587 = vmatpush.bf16.msra.mxu0 %v4700
    %5588 = vmatpush.bf16.msra.mxu0 %v4694
    %5589 = vmatpush.bf16.msra.mxu0 %v4688
    %5590 = vmatmul.bf16.gmra.mxu0 %v3441
    %v5591 = vpop.f32.mrf.mxu0
    %v5592 = vadd.f32 %v5579, %v5591
    %v5593 = vpop.f32.mrf.mxu0
    %5594 = vdwg.mxu0
    %5595 = vmatpush.bf16.msra.mxu0 %v4778
    %5596 = vmatpush.bf16.msra.mxu0 %v4772
    %5597 = vmatpush.bf16.msra.mxu0 %v4766
    %5598 = vmatpush.bf16.msra.mxu0 %v4760
    %5599 = vmatpush.bf16.msra.mxu0 %v4754
    %5600 = vmatpush.bf16.msra.mxu0 %v4748
    %5601 = vmatpush.bf16.msra.mxu0 %v4742
    %5602 = vmatpush.bf16.msra.mxu0 %v4736
    %5603 = vmatmul.bf16.gmra.mxu0 %v3442
    %v5604 = vpop.f32.mrf.mxu0
    %v5605 = vadd.f32 %v5592, %v5604
    %v5606 = vpop.f32.mrf.mxu0
    %5607 = vdwg.mxu0
    %5608 = vmatpush.bf16.msra.mxu0 %v4826
    %5609 = vmatpush.bf16.msra.mxu0 %v4820
    %5610 = vmatpush.bf16.msra.mxu0 %v4814
    %5611 = vmatpush.bf16.msra.mxu0 %v4808
    %5612 = vmatpush.bf16.msra.mxu0 %v4802
    %5613 = vmatpush.bf16.msra.mxu0 %v4796
    %5614 = vmatpush.bf16.msra.mxu0 %v4790
    %5615 = vmatpush.bf16.msra.mxu0 %v4784
    %5616 = vmatmul.bf16.gmra.mxu0 %v3443
    %v5617 = vpop.f32.mrf.mxu0
    %v5618 = vadd.f32 %v5605, %v5617
    %v5619 = vpop.f32.mrf.mxu0
    %5620 = vdwg.mxu0
    %5621 = vmatpush.bf16.msra.mxu0 0
    %5622 = vmatpush.bf16.msra.mxu0 %v5164
    %5623 = vmatpush.bf16.msra.mxu0 %v4862
    %5624 = vmatpush.bf16.msra.mxu0 %v4856
    %5625 = vmatpush.bf16.msra.mxu0 %v4850
    %5626 = vmatpush.bf16.msra.mxu0 %v4844
    %5627 = vmatpush.bf16.msra.mxu0 %v4838
    %5628 = vmatpush.bf16.msra.mxu0 %v4832
    %5629 = vmatmul.bf16.gmra.mxu0 %v5146
    %v5630 = vpop.f32.mrf.mxu0
    %v5631 = vadd.f32 %v5618, %v5630
    %v5632 = vpop.f32.mrf.mxu0
    %5633 = vdwg.mxu0
    %v5634 = vmax.f32 %v5241, 0.0
    %v5635 = vmax.f32 %v5319, 0.0
    %v5636 = vmax.f32 %v5397, 0.0
    %v5637 = vmax.f32 %v5475, 0.0
    %v5638 = vmax.f32 %v5553, 0.0
    %v5639 = vmax.f32 %v5631, 0.0
    %v5640 = vpack.c.bf16 %v5634, %v5634
    %v5641 = vpack.c.bf16 %v5635, %v5635
    %v5642 = vpack.c.bf16 %v5636, %v5636
    %v5643 = vpack.c.bf16 %v5637, %v5637
    %v5644 = vpack.c.bf16 %v5638, %v5638
    %v5645 = vpack.c.bf16 %v5639, %v5639
    %v5646 = vld [vmem:[%s15] sm:$0xf]
    %v5647 = vld [vmem:[%s15 + $0x4] sm:$0xf]
    %v5648 = vld [vmem:[%s15 + $0x8] sm:$0xf]
    %v5649 = vld [vmem:[%s15 + $0xc] sm:$0xf]
    %v5650 = vld [vmem:[%s15 + $0x10] sm:$0xf]
    %v5651 = vld [vmem:[%s15 + $0x14] sm:$0xf]
    %v5652 = vld [vmem:[%s15 + $0x18] sm:$0xf]
    %v5653 = vld [vmem:[%s15 + $0x1c] sm:$0xf]
    %v5654 = vld [vmem:[%s15 + $0x20] sm:$0xf]
    %v5655 = vld [vmem:[%s15 + $0x24] sm:$0xf]
    %v5656 = vld [vmem:[%s15 + $0x28] sm:$0xf]
    %v5657 = vld [vmem:[%s15 + $0x2c] sm:$0xf]
    %v5658 = vld [vmem:[%s15 + $0x30] sm:$0xf]
    %v5659 = vld [vmem:[%s15 + $0x34] sm:$0xf]
    %v5660 = vld [vmem:[%s15 + $0x38] sm:$0xf]
    %v5661 = vld [vmem:[%s15 + $0x3c] sm:$0xf]
    %v5662 = vld [vmem:[%s15 + $0x40] sm:$0xf]
    %v5663 = vld [vmem:[%s15 + $0x44] sm:$0xf]
    %v5664 = vld [vmem:[%s15 + $0x48] sm:$0xf]
    %v5665 = vld [vmem:[%s15 + $0x4c] sm:$0xf]
    %v5666 = vld [vmem:[%s15 + $0x50] sm:$0xf]
    %v5667 = vld [vmem:[%s15 + $0x54] sm:$0xf]
    %v5668 = vld [vmem:[%s15 + $0x58] sm:$0xf]
    %v5669 = vld [vmem:[%s15 + $0x5c] sm:$0xf]
    %v5670 = vld [vmem:[%s15 + $0x60] sm:$0xf]
    %v5671 = vld [vmem:[%s15 + $0x64] sm:$0xf]
    %v5672 = vld [vmem:[%s15 + $0x68] sm:$0xf]
    %v5673 = vld [vmem:[%s15 + $0x6c] sm:$0xf]
    %v5674 = vld [vmem:[%s15 + $0x70] sm:$0xf]
    %v5675 = vld [vmem:[%s15 + $0x74] sm:$0xf]
    %v5676 = vld [vmem:[%s15 + $0x78] sm:$0xf]
    %v5677 = vld [vmem:[%s15 + $0x7c] sm:$0xf]
    %v5678 = vld [vmem:[%s15 + $0x80] sm:$0xf]
    %v5679 = vld [vmem:[%s15 + $0x84] sm:$0xf]
    %v5680 = vld [vmem:[%s15 + $0x88] sm:$0xf]
    %v5681 = vld [vmem:[%s15 + $0x8c] sm:$0xf]
    %v5682 = vld [vmem:[%s15 + $0x90] sm:$0xf]
    %v5683 = vld [vmem:[%s15 + $0x94] sm:$0xf]
    %v5684 = vld [vmem:[%s15 + $0x98] sm:$0xf]
    %v5685 = vld [vmem:[%s15 + $0x9c] sm:$0xf]
    %v5686 = vld [vmem:[%s15 + $0xa0] sm:$0xf]
    %v5687 = vld [vmem:[%s15 + $0xa4] sm:$0xf]
    %v5688 = vld [vmem:[%s15 + $0xa8] sm:$0xf]
    %v5689 = vld [vmem:[%s15 + $0xac] sm:$0xf]
    %v5690 = vld [vmem:[%s15 + $0xb0] sm:$0xf]
    %v5691 = vld [vmem:[%s15 + $0xb4] sm:$0xf]
    %v5692 = vld [vmem:[%s15 + $0xb8] sm:$0xf]
    %v5693 = vld [vmem:[%s15 + $0xbc] sm:$0xf]
    %v5694 = vld [vmem:[%s15 + $0xc0] sm:$0xf]
    %v5695 = vld [vmem:[%s15 + $0xc4] sm:$0xf]
    %v5696 = vld [vmem:[%s15 + $0xc8] sm:$0xf]
    %v5697 = vld [vmem:[%s15 + $0xcc] sm:$0xf]
    %v5698 = vld [vmem:[%s15 + $0xd0] sm:$0xf]
    %v5699 = vld [vmem:[%s15 + $0xd4] sm:$0xf]
    %v5700 = vld [vmem:[%s15 + $0xd8] sm:$0xf]
    %v5701 = vld [vmem:[%s15 + $0xdc] sm:$0xf]
    %v5702 = vld [vmem:[%s15 + $0xe0] sm:$0xf]
    %v5703 = vld [vmem:[%s15 + $0xe4] sm:$0xf]
    %v5704 = vld [vmem:[%s15 + $0xe8] sm:$0xf]
    %v5705 = vld [vmem:[%s15 + $0xec] sm:$0xf]
    %v5706 = vld [vmem:[%s15 + $0xf0] sm:$0xf]
    %v5707 = vld [vmem:[%s15 + $0xf4] sm:$0xf]
    %v5708 = vld [vmem:[%s15 + $0xf8] sm:$0xf]
    %v5709 = vld [vmem:[%s15 + $0xfc] sm:$0xf]
    %v5710 = vld [vmem:[%s15 + $0x100] sm:$0xf]
    %v5711 = vld [vmem:[%s15 + $0x104] sm:$0xf]
    %v5712 = vld [vmem:[%s15 + $0x108] sm:$0xf]
    %v5713 = vld [vmem:[%s15 + $0x10c] sm:$0xf]
    %v5714 = vld [vmem:[%s15 + $0x110] sm:$0xf]
    %v5715 = vld [vmem:[%s15 + $0x114] sm:$0xf]
    %v5716 = vld [vmem:[%s15 + $0x118] sm:$0xf]
    %v5717 = vld [vmem:[%s15 + $0x11c] sm:$0xf]
    %v5718 = vld [vmem:[%s15 + $0x120] sm:$0xf]
    %v5719 = vld [vmem:[%s15 + $0x124] sm:$0xf]
    %v5720 = vld [vmem:[%s15 + $0x128] sm:$0xf]
    %v5721 = vld [vmem:[%s15 + $0x12c] sm:$0xf]
    %v5722 = vld [vmem:[%s15 + $0x130] sm:$0xf]
    %v5723 = vld [vmem:[%s15 + $0x134] sm:$0xf]
    %v5724 = vld [vmem:[%s15 + $0x138] sm:$0xf]
    %v5725 = vld [vmem:[%s15 + $0x13c] sm:$0xf]
    %v5726 = vld [vmem:[%s15 + $0x140] sm:$0xf]
    %v5727 = vld [vmem:[%s15 + $0x144] sm:$0xf]
    %v5728 = vld [vmem:[%s15 + $0x148] sm:$0xf]
    %v5729 = vld [vmem:[%s15 + $0x14c] sm:$0xf]
    %v5730 = vld [vmem:[%s15 + $0x150] sm:$0xf]
    %v5731 = vld [vmem:[%s15 + $0x154] sm:$0xf]
    %v5732 = vld [vmem:[%s15 + $0x158] sm:$0xf]
    %v5733 = vld [vmem:[%s15 + $0x15c] sm:$0xf]
    %v5734 = vld [vmem:[%s15 + $0x160] sm:$0xf]
    %v5735 = vld [vmem:[%s15 + $0x164] sm:$0xf]
    %v5736 = vld [vmem:[%s15 + $0x168] sm:$0xf]
    %v5737 = vld [vmem:[%s15 + $0x16c] sm:$0xf]
    %v5738 = vld [vmem:[%s15 + $0x170] sm:$0xf]
    %v5739 = vld [vmem:[%s15 + $0x174] sm:$0x7]
    %v5740 = vld [vmem:[#allocation19] sm:$0x1]
    %v5742 = vperm.slane %v5740, 0
    %v5838 = vunpack.c.l.b16 %v5646
    %v5839 = vunpack.c.l.b16 %v5647
    %v5840 = vunpack.c.l.b16 %v5648
    %v5841 = vunpack.c.l.b16 %v5649
    %v5842 = vunpack.c.l.b16 %v5650
    %v5843 = vunpack.c.l.b16 %v5651
    %v5844 = vunpack.c.l.b16 %v5652
    %v5845 = vunpack.c.l.b16 %v5653
    %v5846 = vunpack.c.l.b16 %v5654
    %v5847 = vunpack.c.l.b16 %v5655
    %v5848 = vunpack.c.l.b16 %v5656
    %v5849 = vunpack.c.l.b16 %v5657
    %v5850 = vunpack.c.l.b16 %v5658
    %v5851 = vunpack.c.l.b16 %v5659
    %v5852 = vunpack.c.l.b16 %v5660
    %v5853 = vunpack.c.l.b16 %v5661
    %v5854 = vunpack.c.l.b16 %v5662
    %v5855 = vunpack.c.l.b16 %v5663
    %v5856 = vunpack.c.l.b16 %v5664
    %v5857 = vunpack.c.l.b16 %v5665
    %v5858 = vunpack.c.l.b16 %v5666
    %v5859 = vunpack.c.l.b16 %v5667
    %v5860 = vunpack.c.l.b16 %v5668
    %v5861 = vunpack.c.l.b16 %v5669
    %v5862 = vunpack.c.l.b16 %v5670
    %v5863 = vunpack.c.l.b16 %v5671
    %v5864 = vunpack.c.l.b16 %v5672
    %v5865 = vunpack.c.l.b16 %v5673
    %v5866 = vunpack.c.l.b16 %v5674
    %v5867 = vunpack.c.l.b16 %v5675
    %v5868 = vunpack.c.l.b16 %v5676
    %v5869 = vunpack.c.l.b16 %v5677
    %v5870 = vunpack.c.l.b16 %v5678
    %v5871 = vunpack.c.l.b16 %v5679
    %v5872 = vunpack.c.l.b16 %v5680
    %v5873 = vunpack.c.l.b16 %v5681
    %v5874 = vunpack.c.l.b16 %v5682
    %v5875 = vunpack.c.l.b16 %v5683
    %v5876 = vunpack.c.l.b16 %v5684
    %v5877 = vunpack.c.l.b16 %v5685
    %v5878 = vunpack.c.l.b16 %v5686
    %v5879 = vunpack.c.l.b16 %v5687
    %v5880 = vunpack.c.l.b16 %v5688
    %v5881 = vunpack.c.l.b16 %v5689
    %v5882 = vunpack.c.l.b16 %v5690
    %v5883 = vunpack.c.l.b16 %v5691
    %v5884 = vunpack.c.l.b16 %v5692
    %v5885 = vunpack.c.l.b16 %v5693
    %v5886 = vunpack.c.l.b16 %v5694
    %v5887 = vunpack.c.l.b16 %v5695
    %v5888 = vunpack.c.l.b16 %v5696
    %v5889 = vunpack.c.l.b16 %v5697
    %v5890 = vunpack.c.l.b16 %v5698
    %v5891 = vunpack.c.l.b16 %v5699
    %v5892 = vunpack.c.l.b16 %v5700
    %v5893 = vunpack.c.l.b16 %v5701
    %v5894 = vunpack.c.l.b16 %v5702
    %v5895 = vunpack.c.l.b16 %v5703
    %v5896 = vunpack.c.l.b16 %v5704
    %v5897 = vunpack.c.l.b16 %v5705
    %v5898 = vunpack.c.l.b16 %v5706
    %v5899 = vunpack.c.l.b16 %v5707
    %v5900 = vunpack.c.l.b16 %v5708
    %v5901 = vunpack.c.l.b16 %v5709
    %v5902 = vunpack.c.l.b16 %v5710
    %v5903 = vunpack.c.l.b16 %v5711
    %v5904 = vunpack.c.l.b16 %v5712
    %v5905 = vunpack.c.l.b16 %v5713
    %v5906 = vunpack.c.l.b16 %v5714
    %v5907 = vunpack.c.l.b16 %v5715
    %v5908 = vunpack.c.l.b16 %v5716
    %v5909 = vunpack.c.l.b16 %v5717
    %v5910 = vunpack.c.l.b16 %v5718
    %v5911 = vunpack.c.l.b16 %v5719
    %v5912 = vunpack.c.l.b16 %v5720
    %v5913 = vunpack.c.l.b16 %v5721
    %v5914 = vunpack.c.l.b16 %v5722
    %v5915 = vunpack.c.l.b16 %v5723
    %v5916 = vunpack.c.l.b16 %v5724
    %v5917 = vunpack.c.l.b16 %v5725
    %v5918 = vunpack.c.l.b16 %v5726
    %v5919 = vunpack.c.l.b16 %v5727
    %v5920 = vunpack.c.l.b16 %v5728
    %v5921 = vunpack.c.l.b16 %v5729
    %v5922 = vunpack.c.l.b16 %v5730
    %v5923 = vunpack.c.l.b16 %v5731
    %v5924 = vunpack.c.l.b16 %v5732
    %v5925 = vunpack.c.l.b16 %v5733
    %v5926 = vunpack.c.l.b16 %v5734
    %v5927 = vunpack.c.l.b16 %v5735
    %v5928 = vunpack.c.l.b16 %v5736
    %v5929 = vunpack.c.l.b16 %v5737
    %v5930 = vunpack.c.l.b16 %v5738
    %v5931 = vunpack.c.l.b16 %v5739
    %v5932 = vpack.c.b16 %v5839, %v5838
    %v5933 = vpack.c.b16 %v5841, %v5840
    %v5934 = vpack.c.b16 %v5843, %v5842
    %v5935 = vpack.c.b16 %v5845, %v5844
    %v5936 = vpack.c.b16 %v5847, %v5846
    %v5937 = vpack.c.b16 %v5849, %v5848
    %v5938 = vpack.c.b16 %v5851, %v5850
    %v5939 = vpack.c.b16 %v5853, %v5852
    %v5940 = vpack.c.b16 %v5855, %v5854
    %v5941 = vpack.c.b16 %v5857, %v5856
    %v5942 = vpack.c.b16 %v5859, %v5858
    %v5943 = vpack.c.b16 %v5861, %v5860
    %v5944 = vpack.c.b16 %v5863, %v5862
    %v5945 = vpack.c.b16 %v5865, %v5864
    %v5946 = vpack.c.b16 %v5867, %v5866
    %v5947 = vpack.c.b16 %v5869, %v5868
    %v5948 = vpack.c.b16 %v5871, %v5870
    %v5949 = vpack.c.b16 %v5873, %v5872
    %v5950 = vpack.c.b16 %v5875, %v5874
    %v5951 = vpack.c.b16 %v5877, %v5876
    %v5952 = vpack.c.b16 %v5879, %v5878
    %v5953 = vpack.c.b16 %v5881, %v5880
    %v5954 = vpack.c.b16 %v5883, %v5882
    %v5955 = vpack.c.b16 %v5885, %v5884
    %v5956 = vpack.c.b16 %v5887, %v5886
    %v5957 = vpack.c.b16 %v5889, %v5888
    %v5958 = vpack.c.b16 %v5891, %v5890
    %v5959 = vpack.c.b16 %v5893, %v5892
    %v5960 = vpack.c.b16 %v5895, %v5894
    %v5961 = vpack.c.b16 %v5897, %v5896
    %v5962 = vpack.c.b16 %v5899, %v5898
    %v5963 = vpack.c.b16 %v5901, %v5900
    %v5964 = vpack.c.b16 %v5903, %v5902
    %v5965 = vpack.c.b16 %v5905, %v5904
    %v5966 = vpack.c.b16 %v5907, %v5906
    %v5967 = vpack.c.b16 %v5909, %v5908
    %v5968 = vpack.c.b16 %v5911, %v5910
    %v5969 = vpack.c.b16 %v5913, %v5912
    %v5970 = vpack.c.b16 %v5915, %v5914
    %v5971 = vpack.c.b16 %v5917, %v5916
    %v5972 = vpack.c.b16 %v5919, %v5918
    %v5973 = vpack.c.b16 %v5921, %v5920
    %v5974 = vpack.c.b16 %v5923, %v5922
    %v5975 = vpack.c.b16 %v5925, %v5924
    %v5976 = vpack.c.b16 %v5927, %v5926
    %v5977 = vpack.c.b16 %v5929, %v5928
    %v5978 = vpack.c.b16 %v5931, %v5930
    %v6026 = vsel %vm2192, %v5645, 0
    %v6029 = vsel %vm2196, %v5978, 0
    %6031 = vmatpush.bf16.msra.mxu0 %v5939
    %6032 = vmatpush.bf16.msra.mxu0 %v5938
    %6033 = vmatpush.bf16.msra.mxu0 %v5937
    %6034 = vmatpush.bf16.msra.mxu0 %v5936
    %6035 = vmatpush.bf16.msra.mxu0 %v5935
    %6036 = vmatpush.bf16.msra.mxu0 %v5934
    %6037 = vmatpush.bf16.msra.mxu0 %v5933
    %6038 = vmatpush.bf16.msra.mxu0 %v5932
    %6039 = vmatmul.bf16.gmra.mxu0 %v5640
    %v6040 = vpop.f32.mrf.mxu0
    %v6041 = vadd.f32 %v5742, %v6040
    %v6042 = vpop.f32.mrf.mxu0
    %6043 = vdwg.mxu0
    %6044 = vmatpush.bf16.msra.mxu0 %v5947
    %6045 = vmatpush.bf16.msra.mxu0 %v5946
    %6046 = vmatpush.bf16.msra.mxu0 %v5945
    %6047 = vmatpush.bf16.msra.mxu0 %v5944
    %6048 = vmatpush.bf16.msra.mxu0 %v5943
    %6049 = vmatpush.bf16.msra.mxu0 %v5942
    %6050 = vmatpush.bf16.msra.mxu0 %v5941
    %6051 = vmatpush.bf16.msra.mxu0 %v5940
    %6052 = vmatmul.bf16.gmra.mxu0 %v5641
    %v6053 = vpop.f32.mrf.mxu0
    %v6054 = vadd.f32 %v6041, %v6053
    %v6055 = vpop.f32.mrf.mxu0
    %6056 = vdwg.mxu0
    %6057 = vmatpush.bf16.msra.mxu0 %v5955
    %6058 = vmatpush.bf16.msra.mxu0 %v5954
    %6059 = vmatpush.bf16.msra.mxu0 %v5953
    %6060 = vmatpush.bf16.msra.mxu0 %v5952
    %6061 = vmatpush.bf16.msra.mxu0 %v5951
    %6062 = vmatpush.bf16.msra.mxu0 %v5950
    %6063 = vmatpush.bf16.msra.mxu0 %v5949
    %6064 = vmatpush.bf16.msra.mxu0 %v5948
    %6065 = vmatmul.bf16.gmra.mxu0 %v5642
    %v6066 = vpop.f32.mrf.mxu0
    %v6067 = vadd.f32 %v6054, %v6066
    %v6068 = vpop.f32.mrf.mxu0
    %6069 = vdwg.mxu0
    %6070 = vmatpush.bf16.msra.mxu0 %v5963
    %6071 = vmatpush.bf16.msra.mxu0 %v5962
    %6072 = vmatpush.bf16.msra.mxu0 %v5961
    %6073 = vmatpush.bf16.msra.mxu0 %v5960
    %6074 = vmatpush.bf16.msra.mxu0 %v5959
    %6075 = vmatpush.bf16.msra.mxu0 %v5958
    %6076 = vmatpush.bf16.msra.mxu0 %v5957
    %6077 = vmatpush.bf16.msra.mxu0 %v5956
    %6078 = vmatmul.bf16.gmra.mxu0 %v5643
    %v6079 = vpop.f32.mrf.mxu0
    %v6080 = vadd.f32 %v6067, %v6079
    %v6081 = vpop.f32.mrf.mxu0
    %6082 = vdwg.mxu0
    %6083 = vmatpush.bf16.msra.mxu0 %v5971
    %6084 = vmatpush.bf16.msra.mxu0 %v5970
    %6085 = vmatpush.bf16.msra.mxu0 %v5969
    %6086 = vmatpush.bf16.msra.mxu0 %v5968
    %6087 = vmatpush.bf16.msra.mxu0 %v5967
    %6088 = vmatpush.bf16.msra.mxu0 %v5966
    %6089 = vmatpush.bf16.msra.mxu0 %v5965
    %6090 = vmatpush.bf16.msra.mxu0 %v5964
    %6091 = vmatmul.bf16.gmra.mxu0 %v5644
    %v6092 = vpop.f32.mrf.mxu0
    %v6093 = vadd.f32 %v6080, %v6092
    %v6094 = vpop.f32.mrf.mxu0
    %6095 = vdwg.mxu0
    %6096 = vmatpush.bf16.msra.mxu0 0
    %6097 = vmatpush.bf16.msra.mxu0 %v6029
    %6098 = vmatpush.bf16.msra.mxu0 %v5977
    %6099 = vmatpush.bf16.msra.mxu0 %v5976
    %6100 = vmatpush.bf16.msra.mxu0 %v5975
    %6101 = vmatpush.bf16.msra.mxu0 %v5974
    %6102 = vmatpush.bf16.msra.mxu0 %v5973
    %6103 = vmatpush.bf16.msra.mxu0 %v5972
    %6104 = vmatmul.bf16.gmra.mxu0 %v6026
    %v6105 = vpop.f32.mrf.mxu0
    %v6106 = vadd.f32 %v6093, %v6105
    %v6107 = vpop.f32.mrf.mxu0
    %6108 = vdwg.mxu0
    %v6109 = vtanh.pop %v6106
    %6110 = vst.msk [vmem:[%s17] sm:$0xff] %vm249, %v6109
    %6111 = vst.msk [vmem:[%s18] sm:$0xff] %vm3201, %v3165
    // Predicated region
    $region118: #{vae_forward.1} parent=1 // pred_check
      _
    $region119: #{vae_forward.1} parent=1 // pred_check_branch
      %6113 = sbr.rel (0) target = $region121
    $region120: #{vae_forward.1} parent=1 // pred_region
      _
    $region121: #{vae_forward.1} parent=1 // pred_fallthru
      _
    // Predicated region
    $region122: #{vae_forward.1} parent=1 // pred_check
      _
    $region123: #{vae_forward.1} parent=1 // pred_check_branch
      %6115 = sbr.rel (0) target = $region125
    $region124: #{vae_forward.1} parent=1 // pred_region
      _
    $region125: #{vae_forward.1} parent=1 // pred_fallthru
      _
    // Predicated region
    $region126: #{vae_forward.1} parent=1 // pred_check
      _
    $region127: #{vae_forward.1} parent=1 // pred_check_branch
      %6117 = sbr.rel (0) target = $region129
    $region128: #{vae_forward.1} parent=1 // pred_region
      _
    $region129: #{vae_forward.1} parent=1 // pred_fallthru
      _
    // Predicated region
    $region130: #{vae_forward.1} parent=1 // pred_check
      _
    $region131: #{vae_forward.1} parent=1 // pred_check_branch
      %6119 = sbr.rel (0) target = $region133
    $region132: #{vae_forward.1} parent=1 // pred_region
      _
    $region133: #{vae_forward.1} parent=1 // pred_fallthru
      _
    %6120 = vsyncpa [#allocation3], 1
    %6121 = vsyncpa [#allocation5], 1
    %6122 = vsyncpa [#allocation8], 1
    %6123 = vsyncpa [#allocation11], 1
    %6124 = vsyncpa [#allocation14], 1
    %6125 = vsyncpa [#allocation17], 1
    %6126 = vsyncpa [#allocation20], 1

</llo_original>
